<compile_context>
chip_gen: v6e
topology: v6e:2x2x1
jax: 0.10.0
libtpu: 0.0.40
codegen_flags: <defaults>
</compile_context>

<pallas_src>
import functools

import jax
import jax.numpy as jnp
from jax.experimental import pallas as pl
from jax.experimental.pallas import tpu as pltpu


def _cdiv(a, b):
    return -(-a // b)


def _layer_norm(v, gamma, beta, eps):
    # Centered two-pass variance (review: E[x^2]-E[x]^2 cancels when |mean| >> std).
    mean = jnp.mean(v, axis=-1, keepdims=True)
    c = v - mean
    var = jnp.mean(c * c, axis=-1, keepdims=True)
    return c * jax.lax.rsqrt(var + eps) * gamma + beta


def _mlp_mixer_kernel(x_ref,
                      g_v_ref, be_v_ref, w1v_ref, b1v_ref, w2v_ref, b2v_ref,
                      g_c_ref, be_c_ref, w1c_ref, b1c_ref, w2c_ref, b2c_ref,
                      g_f_ref, be_f_ref, wh_ref,
                      o_ref, *, eps, n_graphs, n_vertex, gelu_bf16):
    bf16 = jnp.bfloat16
    x = x_ref[0].astype(jnp.float32)                                   # (M, C), M = Bb*V

    # ---- vertex (token) mixing: PreNormResidual(Conv1d_k1 FF over the vertex axis) ----
    # Block-diagonal Conv1d weights -> one K = Bb*V matmul covers all Bb graphs.
    y = _layer_norm(x, g_v_ref[...], be_v_ref[...], eps)               # (M, C)
    h = jnp.dot(w1v_ref[...], y.astype(bf16),
                preferred_element_type=jnp.float32) + b1v_ref[...]     # (Bb*Vi, C)
    h = jax.nn.gelu(h, approximate=True)     # tanh GELU (EUP); torch default is erf
    f = jnp.dot(w2v_ref[...], h.astype(bf16),
                preferred_element_type=jnp.float32) + b2v_ref[...]     # (M, C)
    x = x + f

    # ---- channel mixing: PreNormResidual(Linear FF over the channel axis) ----
    y = _layer_norm(x, g_c_ref[...], be_c_ref[...], eps)               # (M, C)
    h = jnp.dot(y.astype(bf16), w1c_ref[...],
                preferred_element_type=jnp.float32) + b1c_ref[...]     # (M, Hc)
    if gelu_bf16:
        # v6e / v7x: bf16 VPU/EUP at ~2x f32 rate; the next matmul needs bf16 anyway.
        h = jax.nn.gelu(h.astype(bf16), approximate=True)
    else:
        # v5e and older have no bf16 VPU/EUP -> keep the transcendental in f32.
        h = jax.nn.gelu(h, approximate=True).astype(bf16)
    f = jnp.dot(h, w2c_ref[...],
                preferred_element_type=jnp.float32) + b2c_ref[...]     # (M, C)
    x = x + f

    # ---- final LayerNorm, per-graph mean pool, batched linear head (no bias) ----
    y = _layer_norm(x, g_f_ref[...], be_f_ref[...], eps)               # (M, C)
    y3 = y.reshape(n_graphs, n_vertex, y.shape[-1])                    # (Bb, V, C) - free: V*rows stay sublane-aligned
    pooled = jnp.sum(y3, axis=1) * (1.0 / n_vertex)                    # (Bb, C)
    out = jnp.dot(pooled.astype(bf16), wh_ref[...],
                  preferred_element_type=jnp.float32)                  # (Bb, O)
    o_ref[0] = out.astype(o_ref.dtype)


def _gelu_bf16_default():
    """bf16 GELU only on chips with bf16 VPU/EUP (v6e / v7x); f32 elsewhere (v5e...)."""
    try:
        kind = jax.devices()[0].device_kind.lower()
    except Exception:
        return False
    return ("v6" in kind) or ("v7" in kind)


def mlp_mixer_forward(x, params, *, eps=1e-5, block_b=None, gelu_bf16=None,
                      vmem_limit_bytes=32 * 1024 * 1024):
    """x: (B, V, C) -> (B, O).  Fused MLPMixer forward (num_layers=1, eval mode)."""
    B, V, C = x.shape
    Vi = params["w1v"].shape[0]
    Hc = params["w1c"].shape[1]
    O = params["wh"].shape[1]

    if gelu_bf16 is None:
        gelu_bf16 = _gelu_bf16_default()

    # Graphs per grid step: MXU wants M = Bb*V in the ~128-512 row range, while the
    # grid should keep >= 2 steps when B allows (v7x has two TensorCores per chip).
    if block_b is None:
        block_b = max(1, min(B, 128 // max(V, 1)))
        while _cdiv(B, block_b) < 2 and block_b > 1:
            block_b = max(1, block_b // 2)
    Bb = block_b
    Bp = _cdiv(B, Bb) * Bb          # padded batch; B % Bb handled by zero-pad + slice
    grid_b = Bp // Bb
    M = Bb * V

    f32, bf16 = jnp.float32, jnp.bfloat16

    if Bp != B:
        x = jnp.concatenate([x, jnp.zeros((Bp - B, V, C), x.dtype)], axis=0)
    # Lane-dense (grid_b, Bb*V, C) slab: one contiguous block per step; the
    # batch/vertex flatten is a free contiguous reshape done once in the wrapper.
    x3d = x.reshape(grid_b, M, C)

    # Block-diagonal token-mixing weights (tens of KiB): vertex mixing for all Bb
    # graphs becomes a single well-shaped matmul instead of Bb tiny K=V/K=Vi ones.
    eye = jnp.eye(Bb, dtype=f32)
    w1v_bd = jnp.kron(eye, params["w1v"].astype(f32)).astype(bf16)       # (Bb*Vi, Bb*V)
    w2v_bd = jnp.kron(eye, params["w2v"].astype(f32)).astype(bf16)       # (Bb*V, Bb*Vi)
    b1v_bd = jnp.tile(params["b1v"].astype(f32), Bb).reshape(Bb * Vi, 1)
    b2v_bd = jnp.tile(params["b2v"].astype(f32), Bb).reshape(Bb * V, 1)

    args = (
        x3d,
        params["gamma_v"].reshape(1, C).astype(f32),
        params["beta_v"].reshape(1, C).astype(f32),
        w1v_bd, b1v_bd, w2v_bd, b2v_bd,
        params["gamma_c"].reshape(1, C).astype(f32),
        params["beta_c"].reshape(1, C).astype(f32),
        params["w1c"].astype(bf16),                       # (C, Hc)
        params["b1c"].reshape(1, Hc).astype(f32),
        params["w2c"].astype(bf16),                       # (Hc, C)
        params["b2c"].reshape(1, C).astype(f32),
        params["gamma_f"].reshape(1, C).astype(f32),
        params["beta_f"].reshape(1, C).astype(f32),
        params["wh"].astype(bf16),                        # (C, O)
    )

    def const_spec(shape):
        return pl.BlockSpec(shape, lambda b: (0,) * len(shape))

    in_specs = [
        pl.BlockSpec((1, M, C), lambda b: (b, 0, 0)),     # Bb packed graphs per step
        const_spec((1, C)), const_spec((1, C)),           # vertex-mix LayerNorm
        const_spec((Bb * Vi, Bb * V)), const_spec((Bb * Vi, 1)),   # Conv1d #1 (block-diag)
        const_spec((Bb * V, Bb * Vi)), const_spec((Bb * V, 1)),    # Conv1d #2 (block-diag)
        const_spec((1, C)), const_spec((1, C)),           # channel-mix LayerNorm
        const_spec((C, Hc)), const_spec((1, Hc)),         # Linear #1
        const_spec((Hc, C)), const_spec((1, C)),          # Linear #2
        const_spec((1, C)), const_spec((1, C)),           # final LayerNorm
        const_spec((C, O)),                               # mlp_head (no bias)
    ]

    out = pl.pallas_call(
        functools.partial(_mlp_mixer_kernel, eps=eps, n_graphs=Bb, n_vertex=V,
                          gelu_bf16=gelu_bf16),
        out_shape=jax.ShapeDtypeStruct((grid_b, Bb, O), x.dtype),
        grid_spec=pltpu.PrefetchScalarGridSpec(
            num_scalar_prefetch=0,
            grid=(grid_b,),
            in_specs=in_specs,
            out_specs=pl.BlockSpec((1, Bb, O), lambda b: (b, 0, 0)),
        ),
        compiler_params=pltpu.CompilerParams(
            dimension_semantics=("parallel",),
            vmem_limit_bytes=vmem_limit_bytes,
        ),
    )(*args)
    return out.reshape(Bp, O)[:B]


if __name__ == "__main__":
    # Demo shapes: C = O = 128 keeps every streamed block lane-dense, V = 8 and
    # B = 32 give Bb = 16 packed graphs per step (M = 128 MXU rows, 2 grid steps).
    B, V, C, O = 32, 8, 128, 128
    Vi = int(V * 0.5)     # vertex_factor = 0.5  (Conv1d FF inner dim)
    Hc = int(C * 4)       # channel_factor = 4   (Linear FF inner dim)

    keys = jax.random.split(jax.random.PRNGKey(0), 16)
    x = jax.random.normal(keys[0], (B, V, C), jnp.float32)

    def _w(k, shape, fan_in):
        return jax.random.normal(k, shape, jnp.float32) / jnp.sqrt(jnp.float32(fan_in))

    params = dict(
        gamma_v=1.0 + 0.1 * jax.random.normal(keys[1], (C,), jnp.float32),
        beta_v=0.05 * jax.random.normal(keys[2], (C,), jnp.float32),
        w1v=_w(keys[3], (Vi, V), V),
        b1v=0.01 * jax.random.normal(keys[4], (Vi,), jnp.float32),
        w2v=_w(keys[5], (V, Vi), Vi),
        b2v=0.01 * jax.random.normal(keys[6], (V,), jnp.float32),
        gamma_c=1.0 + 0.1 * jax.random.normal(keys[7], (C,), jnp.float32),
        beta_c=0.05 * jax.random.normal(keys[8], (C,), jnp.float32),
        w1c=_w(keys[9], (C, Hc), C),
        b1c=0.01 * jax.random.normal(keys[10], (Hc,), jnp.float32),
        w2c=_w(keys[11], (Hc, C), Hc),
        b2c=0.01 * jax.random.normal(keys[12], (C,), jnp.float32),
        gamma_f=1.0 + 0.1 * jax.random.normal(keys[13], (C,), jnp.float32),
        beta_f=0.05 * jax.random.normal(keys[14], (C,), jnp.float32),
        wh=_w(keys[15], (C, O), C),
    )

    out = mlp_mixer_forward(x, params)
    jax.block_until_ready(out)

    # ---- pure-JAX f32 reference (exact-erf GELU, f32 matmuls) ----
    def reference(x, p, eps=1e-5):
        def ln(v, g, b):
            m = jnp.mean(v, axis=-1, keepdims=True)
            var = jnp.mean(jnp.square(v - m), axis=-1, keepdims=True)
            return (v - m) / jnp.sqrt(var + eps) * g + b

        gelu = lambda t: jax.nn.gelu(t, approximate=False)
        # vertex mixing (Conv1d kernel_size=1 == matmul over the vertex axis)
        y = ln(x, p["gamma_v"], p["beta_v"])
        h = gelu(jnp.einsum("iv,bvc->bic", p["w1v"], y) + p["b1v"][None, :, None])
        x = x + jnp.einsum("vi,bic->bvc", p["w2v"], h) + p["b2v"][None, :, None]
        # channel mixing
        y = ln(x, p["gamma_c"], p["beta_c"])
        h = gelu(y @ p["w1c"] + p["b1c"])
        x = x + h @ p["w2c"] + p["b2c"]
        # final LayerNorm, mean-pool over vertices, linear head (no bias)
        y = ln(x, p["gamma_f"], p["beta_f"])
        return jnp.mean(y, axis=1) @ p["wh"]

    want = reference(x, params)
    assert out.shape == (B, O)
    # bf16 MXU operands + tanh GELU in the kernel vs f32/erf reference -> loose tolerance.
    max_err = float(jnp.max(jnp.abs(out - want)))
    assert jnp.allclose(out, want, atol=5e-2, rtol=5e-2), max_err
    print("KERNEL_OK")
</pallas_src>

<mosaic_0001>
module attributes {stable_mosaic.version = 11 : i64} {
  func.func @_mlp_mixer_kernel(%arg0: i32, %arg1: memref<1x128x128xf32, #tpu.memory_space<vmem>>, %arg2: memref<1x128xf32, #tpu.memory_space<vmem>>, %arg3: memref<1x128xf32, #tpu.memory_space<vmem>>, %arg4: memref<64x128xbf16, #tpu.memory_space<vmem>>, %arg5: memref<64x1xf32, #tpu.memory_space<vmem>>, %arg6: memref<128x64xbf16, #tpu.memory_space<vmem>>, %arg7: memref<128x1xf32, #tpu.memory_space<vmem>>, %arg8: memref<1x128xf32, #tpu.memory_space<vmem>>, %arg9: memref<1x128xf32, #tpu.memory_space<vmem>>, %arg10: memref<128x512xbf16, #tpu.memory_space<vmem>>, %arg11: memref<1x512xf32, #tpu.memory_space<vmem>>, %arg12: memref<512x128xbf16, #tpu.memory_space<vmem>>, %arg13: memref<1x128xf32, #tpu.memory_space<vmem>>, %arg14: memref<1x128xf32, #tpu.memory_space<vmem>>, %arg15: memref<1x128xf32, #tpu.memory_space<vmem>>, %arg16: memref<128x128xbf16, #tpu.memory_space<vmem>>, %arg17: memref<1x16x128xf32, #tpu.memory_space<vmem>>) attributes {dimension_semantics = [#tpu.dimension_semantics<parallel>], iteration_bounds = array<i64: 2>, scalar_prefetch = 0 : i64, scratch_operands = 0 : i64, tpu.core_type = #tpu.core_type<tc>, window_params = [{transform_indices = @transform_0, window_bounds = array<i64: 1, 128, 128>}, {pipeline_mode = #tpu.pipeline_mode<synchronous>, transform_indices = @transform_1, window_bounds = array<i64: 1, 128>}, {pipeline_mode = #tpu.pipeline_mode<synchronous>, transform_indices = @transform_2, window_bounds = array<i64: 1, 128>}, {pipeline_mode = #tpu.pipeline_mode<synchronous>, transform_indices = @transform_3, window_bounds = array<i64: 64, 128>}, {pipeline_mode = #tpu.pipeline_mode<synchronous>, transform_indices = @transform_4, window_bounds = array<i64: 64, 1>}, {pipeline_mode = #tpu.pipeline_mode<synchronous>, transform_indices = @transform_5, window_bounds = array<i64: 128, 64>}, {pipeline_mode = #tpu.pipeline_mode<synchronous>, transform_indices = @transform_6, window_bounds = array<i64: 128, 1>}, {pipeline_mode = #tpu.pipeline_mode<synchronous>, transform_indices = @transform_7, window_bounds = array<i64: 1, 128>}, {pipeline_mode = #tpu.pipeline_mode<synchronous>, transform_indices = @transform_8, window_bounds = array<i64: 1, 128>}, {pipeline_mode = #tpu.pipeline_mode<synchronous>, transform_indices = @transform_9, window_bounds = array<i64: 128, 512>}, {pipeline_mode = #tpu.pipeline_mode<synchronous>, transform_indices = @transform_10, window_bounds = array<i64: 1, 512>}, {pipeline_mode = #tpu.pipeline_mode<synchronous>, transform_indices = @transform_11, window_bounds = array<i64: 512, 128>}, {pipeline_mode = #tpu.pipeline_mode<synchronous>, transform_indices = @transform_12, window_bounds = array<i64: 1, 128>}, {pipeline_mode = #tpu.pipeline_mode<synchronous>, transform_indices = @transform_13, window_bounds = array<i64: 1, 128>}, {pipeline_mode = #tpu.pipeline_mode<synchronous>, transform_indices = @transform_14, window_bounds = array<i64: 1, 128>}, {pipeline_mode = #tpu.pipeline_mode<synchronous>, transform_indices = @transform_15, window_bounds = array<i64: 128, 128>}, {transform_indices = @transform_16, window_bounds = array<i64: 1, 16, 128>}]} {
    %c0 = arith.constant 0 : index
    %c0_0 = arith.constant 0 : index
    %c0_1 = arith.constant 0 : index
    %0 = vector.load %arg1[%c0, %c0_0, %c0_1] : memref<1x128x128xf32, #tpu.memory_space<vmem>>, vector<1x128x128xf32>
    %1 = vector.shape_cast %0 : vector<1x128x128xf32> to vector<128x128xf32>
    %c0_2 = arith.constant 0 : index
    %c0_3 = arith.constant 0 : index
    %2 = vector.load %arg2[%c0_2, %c0_3] : memref<1x128xf32, #tpu.memory_space<vmem>>, vector<1x128xf32>
    %c0_4 = arith.constant 0 : index
    %c0_5 = arith.constant 0 : index
    %3 = vector.load %arg3[%c0_4, %c0_5] : memref<1x128xf32, #tpu.memory_space<vmem>>, vector<1x128xf32>
    %cst = arith.constant dense<0.000000e+00> : vector<128xf32>
    %4 = vector.multi_reduction <add>, %1, %cst [1] : vector<128x128xf32> to vector<128xf32>
    %5 = vector.shape_cast %4 : vector<128xf32> to vector<128x1xf32>
    %cst_6 = arith.constant 1.280000e+02 : f32
    %6 = vector.broadcast %cst_6 : f32 to vector<128x1xf32>
    %7 = arith.divf %5, %6 : vector<128x1xf32>
    %8 = vector.broadcast %7 : vector<128x1xf32> to vector<128x128xf32>
    %9 = arith.subf %1, %8 : vector<128x128xf32>
    %10 = arith.mulf %9, %9 : vector<128x128xf32>
    %cst_7 = arith.constant dense<0.000000e+00> : vector<128xf32>
    %11 = vector.multi_reduction <add>, %10, %cst_7 [1] : vector<128x128xf32> to vector<128xf32>
    %12 = vector.shape_cast %11 : vector<128xf32> to vector<128x1xf32>
    %cst_8 = arith.constant 1.280000e+02 : f32
    %13 = vector.broadcast %cst_8 : f32 to vector<128x1xf32>
    %14 = arith.divf %12, %13 : vector<128x1xf32>
    %cst_9 = arith.constant 9.99999974E-6 : f32
    %15 = vector.broadcast %cst_9 : f32 to vector<128x1xf32>
    %16 = arith.addf %14, %15 : vector<128x1xf32>
    %17 = math.rsqrt %16 : vector<128x1xf32>
    %18 = vector.broadcast %17 : vector<128x1xf32> to vector<128x128xf32>
    %19 = arith.mulf %9, %18 : vector<128x128xf32>
    %20 = vector.broadcast %2 : vector<1x128xf32> to vector<128x128xf32>
    %21 = arith.mulf %19, %20 : vector<128x128xf32>
    %22 = vector.broadcast %3 : vector<1x128xf32> to vector<128x128xf32>
    %23 = arith.addf %21, %22 : vector<128x128xf32>
    %c0_10 = arith.constant 0 : index
    %c0_11 = arith.constant 0 : index
    %24 = vector.load %arg4[%c0_10, %c0_11] : memref<64x128xbf16, #tpu.memory_space<vmem>>, vector<64x128xbf16>
    %25 = arith.truncf %23 : vector<128x128xf32> to vector<128x128xbf16>
    %cst_12 = arith.constant dense<0.000000e+00> : vector<64x128xf32>
    %26 = tpu.matmul %24, %25, %cst_12 {dimension_numbers = #tpu.dot_dimension_numbers<[1], [0], [0], [1], [0, 0, 1, 1], [], []>} : vector<64x128xbf16>, vector<128x128xbf16>, vector<64x128xf32> -> vector<64x128xf32>
    %c0_13 = arith.constant 0 : index
    %c0_14 = arith.constant 0 : index
    %27 = vector.load %arg5[%c0_13, %c0_14] : memref<64x1xf32, #tpu.memory_space<vmem>>, vector<64x1xf32>
    %28 = vector.broadcast %27 : vector<64x1xf32> to vector<64x128xf32>
    %29 = arith.addf %26, %28 : vector<64x128xf32>
    %30 = arith.mulf %29, %29 : vector<64x128xf32>
    %31 = arith.mulf %29, %30 : vector<64x128xf32>
    %cst_15 = arith.constant 4.471500e-02 : f32
    %32 = vector.broadcast %cst_15 : f32 to vector<64x128xf32>
    %33 = arith.mulf %32, %31 : vector<64x128xf32>
    %34 = arith.addf %29, %33 : vector<64x128xf32>
    %cst_16 = arith.constant 0.797884583 : f32
    %35 = vector.broadcast %cst_16 : f32 to vector<64x128xf32>
    %36 = arith.mulf %35, %34 : vector<64x128xf32>
    %37 = math.tanh %36 : vector<64x128xf32>
    %cst_17 = arith.constant 1.000000e+00 : f32
    %38 = vector.broadcast %cst_17 : f32 to vector<64x128xf32>
    %39 = arith.addf %38, %37 : vector<64x128xf32>
    %cst_18 = arith.constant 5.000000e-01 : f32
    %40 = vector.broadcast %cst_18 : f32 to vector<64x128xf32>
    %41 = arith.mulf %40, %39 : vector<64x128xf32>
    %42 = arith.mulf %29, %41 : vector<64x128xf32>
    %c0_19 = arith.constant 0 : index
    %c0_20 = arith.constant 0 : index
    %43 = vector.load %arg6[%c0_19, %c0_20] : memref<128x64xbf16, #tpu.memory_space<vmem>>, vector<128x64xbf16>
    %44 = arith.truncf %42 : vector<64x128xf32> to vector<64x128xbf16>
    %cst_21 = arith.constant dense<0.000000e+00> : vector<128x128xf32>
    %45 = tpu.matmul %43, %44, %cst_21 {dimension_numbers = #tpu.dot_dimension_numbers<[1], [0], [0], [1], [0, 0, 1, 1], [], []>} : vector<128x64xbf16>, vector<64x128xbf16>, vector<128x128xf32> -> vector<128x128xf32>
    %c0_22 = arith.constant 0 : index
    %c0_23 = arith.constant 0 : index
    %46 = vector.load %arg7[%c0_22, %c0_23] : memref<128x1xf32, #tpu.memory_space<vmem>>, vector<128x1xf32>
    %47 = vector.broadcast %46 : vector<128x1xf32> to vector<128x128xf32>
    %48 = arith.addf %45, %47 : vector<128x128xf32>
    %49 = arith.addf %1, %48 : vector<128x128xf32>
    %c0_24 = arith.constant 0 : index
    %c0_25 = arith.constant 0 : index
    %50 = vector.load %arg8[%c0_24, %c0_25] : memref<1x128xf32, #tpu.memory_space<vmem>>, vector<1x128xf32>
    %c0_26 = arith.constant 0 : index
    %c0_27 = arith.constant 0 : index
    %51 = vector.load %arg9[%c0_26, %c0_27] : memref<1x128xf32, #tpu.memory_space<vmem>>, vector<1x128xf32>
    %cst_28 = arith.constant dense<0.000000e+00> : vector<128xf32>
    %52 = vector.multi_reduction <add>, %49, %cst_28 [1] : vector<128x128xf32> to vector<128xf32>
    %53 = vector.shape_cast %52 : vector<128xf32> to vector<128x1xf32>
    %cst_29 = arith.constant 1.280000e+02 : f32
    %54 = vector.broadcast %cst_29 : f32 to vector<128x1xf32>
    %55 = arith.divf %53, %54 : vector<128x1xf32>
    %56 = vector.broadcast %55 : vector<128x1xf32> to vector<128x128xf32>
    %57 = arith.subf %49, %56 : vector<128x128xf32>
    %58 = arith.mulf %57, %57 : vector<128x128xf32>
    %cst_30 = arith.constant dense<0.000000e+00> : vector<128xf32>
    %59 = vector.multi_reduction <add>, %58, %cst_30 [1] : vector<128x128xf32> to vector<128xf32>
    %60 = vector.shape_cast %59 : vector<128xf32> to vector<128x1xf32>
    %cst_31 = arith.constant 1.280000e+02 : f32
    %61 = vector.broadcast %cst_31 : f32 to vector<128x1xf32>
    %62 = arith.divf %60, %61 : vector<128x1xf32>
    %cst_32 = arith.constant 9.99999974E-6 : f32
    %63 = vector.broadcast %cst_32 : f32 to vector<128x1xf32>
    %64 = arith.addf %62, %63 : vector<128x1xf32>
    %65 = math.rsqrt %64 : vector<128x1xf32>
    %66 = vector.broadcast %65 : vector<128x1xf32> to vector<128x128xf32>
    %67 = arith.mulf %57, %66 : vector<128x128xf32>
    %68 = vector.broadcast %50 : vector<1x128xf32> to vector<128x128xf32>
    %69 = arith.mulf %67, %68 : vector<128x128xf32>
    %70 = vector.broadcast %51 : vector<1x128xf32> to vector<128x128xf32>
    %71 = arith.addf %69, %70 : vector<128x128xf32>
    %72 = arith.truncf %71 : vector<128x128xf32> to vector<128x128xbf16>
    %c0_33 = arith.constant 0 : index
    %c0_34 = arith.constant 0 : index
    %73 = vector.load %arg10[%c0_33, %c0_34] : memref<128x512xbf16, #tpu.memory_space<vmem>>, vector<128x512xbf16>
    %cst_35 = arith.constant dense<0.000000e+00> : vector<128x512xf32>
    %74 = tpu.matmul %72, %73, %cst_35 {dimension_numbers = #tpu.dot_dimension_numbers<[1], [0], [0], [1], [0, 0, 1, 1], [], []>} : vector<128x128xbf16>, vector<128x512xbf16>, vector<128x512xf32> -> vector<128x512xf32>
    %c0_36 = arith.constant 0 : index
    %c0_37 = arith.constant 0 : index
    %75 = vector.load %arg11[%c0_36, %c0_37] : memref<1x512xf32, #tpu.memory_space<vmem>>, vector<1x512xf32>
    %76 = vector.broadcast %75 : vector<1x512xf32> to vector<128x512xf32>
    %77 = arith.addf %74, %76 : vector<128x512xf32>
    %78 = arith.mulf %77, %77 : vector<128x512xf32>
    %79 = arith.mulf %77, %78 : vector<128x512xf32>
    %cst_38 = arith.constant 4.471500e-02 : f32
    %80 = vector.broadcast %cst_38 : f32 to vector<128x512xf32>
    %81 = arith.mulf %80, %79 : vector<128x512xf32>
    %82 = arith.addf %77, %81 : vector<128x512xf32>
    %cst_39 = arith.constant 0.797884583 : f32
    %83 = vector.broadcast %cst_39 : f32 to vector<128x512xf32>
    %84 = arith.mulf %83, %82 : vector<128x512xf32>
    %85 = math.tanh %84 : vector<128x512xf32>
    %cst_40 = arith.constant 1.000000e+00 : f32
    %86 = vector.broadcast %cst_40 : f32 to vector<128x512xf32>
    %87 = arith.addf %86, %85 : vector<128x512xf32>
    %cst_41 = arith.constant 5.000000e-01 : f32
    %88 = vector.broadcast %cst_41 : f32 to vector<128x512xf32>
    %89 = arith.mulf %88, %87 : vector<128x512xf32>
    %90 = arith.mulf %77, %89 : vector<128x512xf32>
    %91 = arith.truncf %90 : vector<128x512xf32> to vector<128x512xbf16>
    %c0_42 = arith.constant 0 : index
    %c0_43 = arith.constant 0 : index
    %92 = vector.load %arg12[%c0_42, %c0_43] : memref<512x128xbf16, #tpu.memory_space<vmem>>, vector<512x128xbf16>
    %cst_44 = arith.constant dense<0.000000e+00> : vector<128x128xf32>
    %93 = tpu.matmul %91, %92, %cst_44 {dimension_numbers = #tpu.dot_dimension_numbers<[1], [0], [0], [1], [0, 0, 1, 1], [], []>} : vector<128x512xbf16>, vector<512x128xbf16>, vector<128x128xf32> -> vector<128x128xf32>
    %c0_45 = arith.constant 0 : index
    %c0_46 = arith.constant 0 : index
    %94 = vector.load %arg13[%c0_45, %c0_46] : memref<1x128xf32, #tpu.memory_space<vmem>>, vector<1x128xf32>
    %95 = vector.broadcast %94 : vector<1x128xf32> to vector<128x128xf32>
    %96 = arith.addf %93, %95 : vector<128x128xf32>
    %97 = arith.addf %49, %96 : vector<128x128xf32>
    %c0_47 = arith.constant 0 : index
    %c0_48 = arith.constant 0 : index
    %98 = vector.load %arg14[%c0_47, %c0_48] : memref<1x128xf32, #tpu.memory_space<vmem>>, vector<1x128xf32>
    %c0_49 = arith.constant 0 : index
    %c0_50 = arith.constant 0 : index
    %99 = vector.load %arg15[%c0_49, %c0_50] : memref<1x128xf32, #tpu.memory_space<vmem>>, vector<1x128xf32>
    %cst_51 = arith.constant dense<0.000000e+00> : vector<128xf32>
    %100 = vector.multi_reduction <add>, %97, %cst_51 [1] : vector<128x128xf32> to vector<128xf32>
    %101 = vector.shape_cast %100 : vector<128xf32> to vector<128x1xf32>
    %cst_52 = arith.constant 1.280000e+02 : f32
    %102 = vector.broadcast %cst_52 : f32 to vector<128x1xf32>
    %103 = arith.divf %101, %102 : vector<128x1xf32>
    %104 = vector.broadcast %103 : vector<128x1xf32> to vector<128x128xf32>
    %105 = arith.subf %97, %104 : vector<128x128xf32>
    %106 = arith.mulf %105, %105 : vector<128x128xf32>
    %cst_53 = arith.constant dense<0.000000e+00> : vector<128xf32>
    %107 = vector.multi_reduction <add>, %106, %cst_53 [1] : vector<128x128xf32> to vector<128xf32>
    %108 = vector.shape_cast %107 : vector<128xf32> to vector<128x1xf32>
    %cst_54 = arith.constant 1.280000e+02 : f32
    %109 = vector.broadcast %cst_54 : f32 to vector<128x1xf32>
    %110 = arith.divf %108, %109 : vector<128x1xf32>
    %cst_55 = arith.constant 9.99999974E-6 : f32
    %111 = vector.broadcast %cst_55 : f32 to vector<128x1xf32>
    %112 = arith.addf %110, %111 : vector<128x1xf32>
    %113 = math.rsqrt %112 : vector<128x1xf32>
    %114 = vector.broadcast %113 : vector<128x1xf32> to vector<128x128xf32>
    %115 = arith.mulf %105, %114 : vector<128x128xf32>
    %116 = vector.broadcast %98 : vector<1x128xf32> to vector<128x128xf32>
    %117 = arith.mulf %115, %116 : vector<128x128xf32>
    %118 = vector.broadcast %99 : vector<1x128xf32> to vector<128x128xf32>
    %119 = arith.addf %117, %118 : vector<128x128xf32>
    %120 = vector.shape_cast %119 : vector<128x128xf32> to vector<16x8x128xf32>
    %cst_56 = arith.constant dense<0.000000e+00> : vector<16x128xf32>
    %121 = vector.multi_reduction <add>, %120, %cst_56 [1] : vector<16x8x128xf32> to vector<16x128xf32>
    %cst_57 = arith.constant 1.250000e-01 : f32
    %122 = vector.broadcast %cst_57 : f32 to vector<16x128xf32>
    %123 = arith.mulf %121, %122 : vector<16x128xf32>
    %124 = arith.truncf %123 : vector<16x128xf32> to vector<16x128xbf16>
    %c0_58 = arith.constant 0 : index
    %c0_59 = arith.constant 0 : index
    %125 = vector.load %arg16[%c0_58, %c0_59] : memref<128x128xbf16, #tpu.memory_space<vmem>>, vector<128x128xbf16>
    %cst_60 = arith.constant dense<0.000000e+00> : vector<16x128xf32>
    %126 = tpu.matmul %124, %125, %cst_60 {dimension_numbers = #tpu.dot_dimension_numbers<[1], [0], [0], [1], [0, 0, 1, 1], [], []>} : vector<16x128xbf16>, vector<128x128xbf16>, vector<16x128xf32> -> vector<16x128xf32>
    %c0_61 = arith.constant 0 : index
    %c0_62 = arith.constant 0 : index
    %c0_63 = arith.constant 0 : index
    %127 = vector.load %arg17[%c0_61, %c0_62, %c0_63] : memref<1x16x128xf32, #tpu.memory_space<vmem>>, vector<1x16x128xf32>
    %128 = vector.shape_cast %127 : vector<1x16x128xf32> to vector<16x128xf32>
    %129 = vector.shape_cast %126 : vector<16x128xf32> to vector<1x16x128xf32>
    tpu.vector_store %arg17[%c0_61, %c0_62, %c0_63], %129 {strides = array<i32>} : memref<1x16x128xf32, #tpu.memory_space<vmem>>, vector<1x16x128xf32>,
    return
  }
  func.func @transform_0(%arg0: i32) -> (i32, i32, i32) {
    %c0_i32 = arith.constant 0 : i32
    %c0_i32_0 = arith.constant 0 : i32
    %c0_i32_1 = arith.constant 0 : i32
    return %arg0, %c0_i32, %c0_i32_0 : i32, i32, i32
  }
  func.func @transform_1(%arg0: i32) -> (i32, i32) {
    %c0_i32 = arith.constant 0 : i32
    %c0_i32_0 = arith.constant 0 : i32
    %c0_i32_1 = arith.constant 0 : i32
    return %c0_i32, %c0_i32_0 : i32, i32
  }
  func.func @transform_2(%arg0: i32) -> (i32, i32) {
    %c0_i32 = arith.constant 0 : i32
    %c0_i32_0 = arith.constant 0 : i32
    %c0_i32_1 = arith.constant 0 : i32
    return %c0_i32, %c0_i32_0 : i32, i32
  }
  func.func @transform_3(%arg0: i32) -> (i32, i32) {
    %c0_i32 = arith.constant 0 : i32
    %c0_i32_0 = arith.constant 0 : i32
    %c0_i32_1 = arith.constant 0 : i32
    return %c0_i32, %c0_i32_0 : i32, i32
  }
  func.func @transform_4(%arg0: i32) -> (i32, i32) {
    %c0_i32 = arith.constant 0 : i32
    %c0_i32_0 = arith.constant 0 : i32
    %c0_i32_1 = arith.constant 0 : i32
    return %c0_i32, %c0_i32_0 : i32, i32
  }
  func.func @transform_5(%arg0: i32) -> (i32, i32) {
    %c0_i32 = arith.constant 0 : i32
    %c0_i32_0 = arith.constant 0 : i32
    %c0_i32_1 = arith.constant 0 : i32
    return %c0_i32, %c0_i32_0 : i32, i32
  }
  func.func @transform_6(%arg0: i32) -> (i32, i32) {
    %c0_i32 = arith.constant 0 : i32
    %c0_i32_0 = arith.constant 0 : i32
    %c0_i32_1 = arith.constant 0 : i32
    return %c0_i32, %c0_i32_0 : i32, i32
  }
  func.func @transform_7(%arg0: i32) -> (i32, i32) {
    %c0_i32 = arith.constant 0 : i32
    %c0_i32_0 = arith.constant 0 : i32
    %c0_i32_1 = arith.constant 0 : i32
    return %c0_i32, %c0_i32_0 : i32, i32
  }
  func.func @transform_8(%arg0: i32) -> (i32, i32) {
    %c0_i32 = arith.constant 0 : i32
    %c0_i32_0 = arith.constant 0 : i32
    %c0_i32_1 = arith.constant 0 : i32
    return %c0_i32, %c0_i32_0 : i32, i32
  }
  func.func @transform_9(%arg0: i32) -> (i32, i32) {
    %c0_i32 = arith.constant 0 : i32
    %c0_i32_0 = arith.constant 0 : i32
    %c0_i32_1 = arith.constant 0 : i32
    return %c0_i32, %c0_i32_0 : i32, i32
  }
  func.func @transform_10(%arg0: i32) -> (i32, i32) {
    %c0_i32 = arith.constant 0 : i32
    %c0_i32_0 = arith.constant 0 : i32
    %c0_i32_1 = arith.constant 0 : i32
    return %c0_i32, %c0_i32_0 : i32, i32
  }
  func.func @transform_11(%arg0: i32) -> (i32, i32) {
    %c0_i32 = arith.constant 0 : i32
    %c0_i32_0 = arith.constant 0 : i32
    %c0_i32_1 = arith.constant 0 : i32
    return %c0_i32, %c0_i32_0 : i32, i32
  }
  func.func @transform_12(%arg0: i32) -> (i32, i32) {
    %c0_i32 = arith.constant 0 : i32
    %c0_i32_0 = arith.constant 0 : i32
    %c0_i32_1 = arith.constant 0 : i32
    return %c0_i32, %c0_i32_0 : i32, i32
  }
  func.func @transform_13(%arg0: i32) -> (i32, i32) {
    %c0_i32 = arith.constant 0 : i32
    %c0_i32_0 = arith.constant 0 : i32
    %c0_i32_1 = arith.constant 0 : i32
    return %c0_i32, %c0_i32_0 : i32, i32
  }
  func.func @transform_14(%arg0: i32) -> (i32, i32) {
    %c0_i32 = arith.constant 0 : i32
    %c0_i32_0 = arith.constant 0 : i32
    %c0_i32_1 = arith.constant 0 : i32
    return %c0_i32, %c0_i32_0 : i32, i32
  }
  func.func @transform_15(%arg0: i32) -> (i32, i32) {
    %c0_i32 = arith.constant 0 : i32
    %c0_i32_0 = arith.constant 0 : i32
    %c0_i32_1 = arith.constant 0 : i32
    return %c0_i32, %c0_i32_0 : i32, i32
  }
  func.func @transform_16(%arg0: i32) -> (i32, i32, i32) {
    %c0_i32 = arith.constant 0 : i32
    %c0_i32_0 = arith.constant 0 : i32
    %c0_i32_1 = arith.constant 0 : i32
    return %arg0, %c0_i32, %c0_i32_0 : i32, i32, i32
  }
}

</mosaic_0001>

<llo_original>
// kernel: tpu_custom_call.1
$region0: #{tpu_custom_call.1}
  #allocation0 [shape = 'u32[]', space=smem, size = 0x4, offset = 0x4, fixed_abs, tag = 'smem constant byte address 0x4 - core index']
  #allocation1 [shape = 'u32[144,128]{1,0:T(1,128)}', space=vmem, size = 0x12000, scoped, tag = 'internal scratch']
  %s0 = inlined_call_operand.vmem [shape: f32[2,128,128], index: 0, kind: input, shape index: {}]
  %s1 = inlined_call_operand.vmem [shape: f32[1,128], index: 1, kind: input, shape index: {}]
  %s2 = inlined_call_operand.hbm [shape: f32[1,128], index: 2, kind: input, shape index: {}]
  %s3 = inlined_call_operand.hbm [shape: bf16[64,128], index: 3, kind: input, shape index: {}]
  %s4 = inlined_call_operand.vmem [shape: f32[64,1], index: 4, kind: input, shape index: {}]
  %s5 = inlined_call_operand.vmem [shape: bf16[128,64], index: 5, kind: input, shape index: {}]
  %s6 = inlined_call_operand.vmem [shape: f32[128,1], index: 6, kind: input, shape index: {}]
  %s7 = inlined_call_operand.vmem [shape: f32[1,128], index: 7, kind: input, shape index: {}]
  %s8 = inlined_call_operand.vmem [shape: f32[1,128], index: 8, kind: input, shape index: {}]
  %s9 = inlined_call_operand.hbm [shape: bf16[128,512], index: 9, kind: input, shape index: {}]
  %s10 = inlined_call_operand.vmem [shape: f32[1,512], index: 10, kind: input, shape index: {}]
  %s11 = inlined_call_operand.hbm [shape: bf16[512,128], index: 11, kind: input, shape index: {}]
  %s12 = inlined_call_operand.vmem [shape: f32[1,128], index: 12, kind: input, shape index: {}]
  %s13 = inlined_call_operand.vmem [shape: f32[1,128], index: 13, kind: input, shape index: {}]
  %s14 = inlined_call_operand.vmem [shape: f32[1,128], index: 14, kind: input, shape index: {}]
  %s15 = inlined_call_operand.hbm [shape: bf16[128,128], index: 15, kind: input, shape index: {}]
  %s16 = inlined_call_operand.hbm [shape: f32[2,16,128], index: 16, kind: output, shape index: {}]
  %s17 = sld [smem:[#allocation0]]
  $region117: #{tpu_custom_call.1} parent=0
    _
  %s19 = ssub.s32 1, %s17
  %s20 = scalar_select 0, %s19, %s17
  $region1: #{tpu_custom_call.1} parent=0
    #allocation2 [shape = 'u8[512]{0}', space=vmem, size = 0x400, scoped, tag = 'input window, operand 2, single buffered']
    #allocation3 [shape = 's32[2]{0}', space=sflag, size = 0x8, scoped, tag = 'scoped memory for tpu_custom_call.1']
    #allocation4 [shape = 's32[2]{0}', space=sflag, size = 0x8, scoped, tag = 'scoped memory for tpu_custom_call.1']
    #allocation5 [shape = 'u8[16384]{0}', space=vmem, size = 0x4000, scoped, tag = 'input window, operand 3, single buffered']
    #allocation6 [shape = 's32[1]{0}', space=sflag, size = 0x4, scoped, tag = 'scoped memory for tpu_custom_call.1']
    #allocation7 [shape = 'u8[131072]{0}', space=vmem, size = 0x20000, scoped, tag = 'input window, operand 9, single buffered']
    #allocation8 [shape = 'u8[131072]{0}', space=vmem, size = 0x20000, scoped, tag = 'input window, operand 11, single buffered']
    #allocation9 [shape = 's32[1]{0}', space=sflag, size = 0x4, scoped, tag = 'scoped memory for tpu_custom_call.1']
    #allocation10 [shape = 'u8[32768]{0}', space=vmem, size = 0x8000, scoped, tag = 'input window, operand 15, single buffered']
    #allocation11 [shape = 'u8[16384]{0}', space=vmem, size = 0x4000, scoped, tag = 'output window, operand 0']
    %21 = vsyncpa [#allocation3], 0
    %22 = vsyncpa [#allocation6], 0
    %23 = vsyncpa [#allocation9], 0
    %24 = vsyncpa [#allocation4], 0
    %s25 = scalar_lea.sflag [#allocation4], 1
    %26 = vsyncpa %s25, 0
    loop: start=0, step=1, limit=4
    $region2: #{tpu_custom_call.1} parent=1 // loop_pre_header
      _
    $region3: #{tpu_custom_call.1} parent=1 // loop_header
      %s28 = sphi 0, %s32
      %p29 = scmp.ge.s32.totalorder %s28, 4
      %s38 = sphi 0, %s40
      %s41 = sphi 0, %s38
      %s42 = sphi 0, %s41
      %s58 = sphi 0, %s42
      %s62 = sphi 0, %s62
      %s64 = sphi 0, %s62
      %s65 = sphi 0, %s64
      %s79 = sphi 0, %s65
      %s83 = sphi 0, %s83
      %s85 = sphi 0, %s83
      %s86 = sphi 0, %s85
      %s100 = sphi 0, %s86
      %s104 = sphi 0, %s104
      %s106 = sphi 0, %s104
      %s107 = sphi 0, %s106
      %s121 = sphi 0, %s107
      %s125 = sphi 0, %s125
      %s127 = sphi 0, %s125
      %s128 = sphi 0, %s127
      %s142 = sphi 0, %s128
      %s146 = sphi 0, %s146
      %s148 = sphi 0, %s146
      %s149 = sphi 0, %s148
      %s163 = sphi 0, %s149
      %s167 = sphi 0, %s167
      %s169 = sphi 0, %s167
      %s170 = sphi 0, %s169
      %s184 = sphi 0, %s170
      %s188 = sphi 0, %s188
      %s190 = sphi 0, %s188
      %s191 = sphi 0, %s190
      %s205 = sphi 0, %s191
      %s209 = sphi 0, %s209
      %s211 = sphi 0, %s209
      %s212 = sphi 0, %s211
      %s226 = sphi 0, %s212
      %s230 = sphi 0, %s230
      %s232 = sphi 0, %s230
      %s233 = sphi 0, %s232
      %s247 = sphi 0, %s233
      %s251 = sphi 0, %s251
      %s253 = sphi 0, %s251
      %s254 = sphi 0, %s253
      %s268 = sphi 0, %s254
      %s272 = sphi 0, %s272
      %s274 = sphi 0, %s272
      %s275 = sphi 0, %s274
      %s289 = sphi 0, %s275
      %s293 = sphi 0, %s293
      %s295 = sphi 0, %s293
      %s296 = sphi 0, %s295
      %s310 = sphi 0, %s296
      %s314 = sphi 0, %s314
      %s316 = sphi 0, %s314
      %s317 = sphi 0, %s316
      %s331 = sphi 0, %s317
      %s335 = sphi 0, %s335
      %s337 = sphi 0, %s335
      %s338 = sphi 0, %s337
      %s352 = sphi 0, %s338
      %s356 = sphi 0, %s356
      %s358 = sphi 0, %s356
      %s359 = sphi 0, %s358
      %s373 = sphi 0, %s359
      %s379 = sphi 0, %s381
      %s382 = sphi 0, %s379
      %s383 = sphi 0, %s382
      %s399 = sphi 0, %s383
    $region4: #{tpu_custom_call.1} parent=1 // loop_header_branch
      %31 = sbr.rel (%p29) target = $region8
    $region5: #{tpu_custom_call.1} parent=1 // loop_body
      %s33 = ssub.s32 %s28, 1
      %s34 = ssub.s32 %s28, 2
      %s35 = sadd.s32 %s28, 1
      %s36 = ssub.s32 %s28, %s35
      %p37 = scmp.eq.s32.totalorder %s36, 0
      %s39 = sadd.s32 %s38, 1
      %s40 = scalar_select %p37, %s38, %s39
      %p43 = pneg %p37
      %p44 = scmp.eq.s32.totalorder %s28, 1
      %p45 = por %p43, %p44
      %p46 = scmp.ne.s32.totalorder %s38, %s41
      %p47 = scmp.eq.s32.totalorder %s28, 0
      %p48 = por %p46, %p47
      %p49 = scmp.ne.s32.totalorder %s38, %s41
      %p50 = scmp.eq.s32.totalorder %s33, 1
      %p51 = por %p49, %p50
      %p52 = scmp.ne.s32.totalorder %s41, %s42
      %p53 = scmp.eq.s32.totalorder %s33, 0
      %p54 = por %p52, %p53
      %p55 = scmp.ne.s32.totalorder %s41, %s42
      %p56 = scmp.eq.s32.totalorder %s34, 1
      %p57 = por %p55, %p56
      %p59 = scmp.ne.s32.totalorder %s42, %s58
      %p60 = scmp.eq.s32.totalorder %s34, 0
      %p61 = por %p59, %p60
      %s63 = sadd.s32 %s62, 1
      %p66 = scmp.eq.s32.totalorder %s28, 1
      %p67 = scmp.ne.s32.totalorder %s62, %s64
      %p68 = scmp.eq.s32.totalorder %s28, 0
      %p69 = por %p67, %p68
      %p70 = scmp.ne.s32.totalorder %s62, %s64
      %p71 = scmp.eq.s32.totalorder %s33, 1
      %p72 = por %p70, %p71
      %p73 = scmp.ne.s32.totalorder %s64, %s65
      %p74 = scmp.eq.s32.totalorder %s33, 0
      %p75 = por %p73, %p74
      %p76 = scmp.ne.s32.totalorder %s64, %s65
      %p77 = scmp.eq.s32.totalorder %s34, 1
      %p78 = por %p76, %p77
      %p80 = scmp.ne.s32.totalorder %s65, %s79
      %p81 = scmp.eq.s32.totalorder %s34, 0
      %p82 = por %p80, %p81
      %s84 = sadd.s32 %s83, 1
      %p87 = scmp.eq.s32.totalorder %s28, 1
      %p88 = scmp.ne.s32.totalorder %s83, %s85
      %p89 = scmp.eq.s32.totalorder %s28, 0
      %p90 = por %p88, %p89
      %p91 = scmp.ne.s32.totalorder %s83, %s85
      %p92 = scmp.eq.s32.totalorder %s33, 1
      %p93 = por %p91, %p92
      %p94 = scmp.ne.s32.totalorder %s85, %s86
      %p95 = scmp.eq.s32.totalorder %s33, 0
      %p96 = por %p94, %p95
      %p97 = scmp.ne.s32.totalorder %s85, %s86
      %p98 = scmp.eq.s32.totalorder %s34, 1
      %p99 = por %p97, %p98
      %p101 = scmp.ne.s32.totalorder %s86, %s100
      %p102 = scmp.eq.s32.totalorder %s34, 0
      %p103 = por %p101, %p102
      %s105 = sadd.s32 %s104, 1
      %p108 = scmp.eq.s32.totalorder %s28, 1
      %p109 = scmp.ne.s32.totalorder %s104, %s106
      %p110 = scmp.eq.s32.totalorder %s28, 0
      %p111 = por %p109, %p110
      %p112 = scmp.ne.s32.totalorder %s104, %s106
      %p113 = scmp.eq.s32.totalorder %s33, 1
      %p114 = por %p112, %p113
      %p115 = scmp.ne.s32.totalorder %s106, %s107
      %p116 = scmp.eq.s32.totalorder %s33, 0
      %p117 = por %p115, %p116
      %p118 = scmp.ne.s32.totalorder %s106, %s107
      %p119 = scmp.eq.s32.totalorder %s34, 1
      %p120 = por %p118, %p119
      %p122 = scmp.ne.s32.totalorder %s107, %s121
      %p123 = scmp.eq.s32.totalorder %s34, 0
      %p124 = por %p122, %p123
      %s126 = sadd.s32 %s125, 1
      %p129 = scmp.eq.s32.totalorder %s28, 1
      %p130 = scmp.ne.s32.totalorder %s125, %s127
      %p131 = scmp.eq.s32.totalorder %s28, 0
      %p132 = por %p130, %p131
      %p133 = scmp.ne.s32.totalorder %s125, %s127
      %p134 = scmp.eq.s32.totalorder %s33, 1
      %p135 = por %p133, %p134
      %p136 = scmp.ne.s32.totalorder %s127, %s128
      %p137 = scmp.eq.s32.totalorder %s33, 0
      %p138 = por %p136, %p137
      %p139 = scmp.ne.s32.totalorder %s127, %s128
      %p140 = scmp.eq.s32.totalorder %s34, 1
      %p141 = por %p139, %p140
      %p143 = scmp.ne.s32.totalorder %s128, %s142
      %p144 = scmp.eq.s32.totalorder %s34, 0
      %p145 = por %p143, %p144
      %s147 = sadd.s32 %s146, 1
      %p150 = scmp.eq.s32.totalorder %s28, 1
      %p151 = scmp.ne.s32.totalorder %s146, %s148
      %p152 = scmp.eq.s32.totalorder %s28, 0
      %p153 = por %p151, %p152
      %p154 = scmp.ne.s32.totalorder %s146, %s148
      %p155 = scmp.eq.s32.totalorder %s33, 1
      %p156 = por %p154, %p155
      %p157 = scmp.ne.s32.totalorder %s148, %s149
      %p158 = scmp.eq.s32.totalorder %s33, 0
      %p159 = por %p157, %p158
      %p160 = scmp.ne.s32.totalorder %s148, %s149
      %p161 = scmp.eq.s32.totalorder %s34, 1
      %p162 = por %p160, %p161
      %p164 = scmp.ne.s32.totalorder %s149, %s163
      %p165 = scmp.eq.s32.totalorder %s34, 0
      %p166 = por %p164, %p165
      %s168 = sadd.s32 %s167, 1
      %p171 = scmp.eq.s32.totalorder %s28, 1
      %p172 = scmp.ne.s32.totalorder %s167, %s169
      %p173 = scmp.eq.s32.totalorder %s28, 0
      %p174 = por %p172, %p173
      %p175 = scmp.ne.s32.totalorder %s167, %s169
      %p176 = scmp.eq.s32.totalorder %s33, 1
      %p177 = por %p175, %p176
      %p178 = scmp.ne.s32.totalorder %s169, %s170
      %p179 = scmp.eq.s32.totalorder %s33, 0
      %p180 = por %p178, %p179
      %p181 = scmp.ne.s32.totalorder %s169, %s170
      %p182 = scmp.eq.s32.totalorder %s34, 1
      %p183 = por %p181, %p182
      %p185 = scmp.ne.s32.totalorder %s170, %s184
      %p186 = scmp.eq.s32.totalorder %s34, 0
      %p187 = por %p185, %p186
      %s189 = sadd.s32 %s188, 1
      %p192 = scmp.eq.s32.totalorder %s28, 1
      %p193 = scmp.ne.s32.totalorder %s188, %s190
      %p194 = scmp.eq.s32.totalorder %s28, 0
      %p195 = por %p193, %p194
      %p196 = scmp.ne.s32.totalorder %s188, %s190
      %p197 = scmp.eq.s32.totalorder %s33, 1
      %p198 = por %p196, %p197
      %p199 = scmp.ne.s32.totalorder %s190, %s191
      %p200 = scmp.eq.s32.totalorder %s33, 0
      %p201 = por %p199, %p200
      %p202 = scmp.ne.s32.totalorder %s190, %s191
      %p203 = scmp.eq.s32.totalorder %s34, 1
      %p204 = por %p202, %p203
      %p206 = scmp.ne.s32.totalorder %s191, %s205
      %p207 = scmp.eq.s32.totalorder %s34, 0
      %p208 = por %p206, %p207
      %s210 = sadd.s32 %s209, 1
      %p213 = scmp.eq.s32.totalorder %s28, 1
      %p214 = scmp.ne.s32.totalorder %s209, %s211
      %p215 = scmp.eq.s32.totalorder %s28, 0
      %p216 = por %p214, %p215
      %p217 = scmp.ne.s32.totalorder %s209, %s211
      %p218 = scmp.eq.s32.totalorder %s33, 1
      %p219 = por %p217, %p218
      %p220 = scmp.ne.s32.totalorder %s211, %s212
      %p221 = scmp.eq.s32.totalorder %s33, 0
      %p222 = por %p220, %p221
      %p223 = scmp.ne.s32.totalorder %s211, %s212
      %p224 = scmp.eq.s32.totalorder %s34, 1
      %p225 = por %p223, %p224
      %p227 = scmp.ne.s32.totalorder %s212, %s226
      %p228 = scmp.eq.s32.totalorder %s34, 0
      %p229 = por %p227, %p228
      %s231 = sadd.s32 %s230, 1
      %p234 = scmp.eq.s32.totalorder %s28, 1
      %p235 = scmp.ne.s32.totalorder %s230, %s232
      %p236 = scmp.eq.s32.totalorder %s28, 0
      %p237 = por %p235, %p236
      %p238 = scmp.ne.s32.totalorder %s230, %s232
      %p239 = scmp.eq.s32.totalorder %s33, 1
      %p240 = por %p238, %p239
      %p241 = scmp.ne.s32.totalorder %s232, %s233
      %p242 = scmp.eq.s32.totalorder %s33, 0
      %p243 = por %p241, %p242
      %p244 = scmp.ne.s32.totalorder %s232, %s233
      %p245 = scmp.eq.s32.totalorder %s34, 1
      %p246 = por %p244, %p245
      %p248 = scmp.ne.s32.totalorder %s233, %s247
      %p249 = scmp.eq.s32.totalorder %s34, 0
      %p250 = por %p248, %p249
      %s252 = sadd.s32 %s251, 1
      %p255 = scmp.eq.s32.totalorder %s28, 1
      %p256 = scmp.ne.s32.totalorder %s251, %s253
      %p257 = scmp.eq.s32.totalorder %s28, 0
      %p258 = por %p256, %p257
      %p259 = scmp.ne.s32.totalorder %s251, %s253
      %p260 = scmp.eq.s32.totalorder %s33, 1
      %p261 = por %p259, %p260
      %p262 = scmp.ne.s32.totalorder %s253, %s254
      %p263 = scmp.eq.s32.totalorder %s33, 0
      %p264 = por %p262, %p263
      %p265 = scmp.ne.s32.totalorder %s253, %s254
      %p266 = scmp.eq.s32.totalorder %s34, 1
      %p267 = por %p265, %p266
      %p269 = scmp.ne.s32.totalorder %s254, %s268
      %p270 = scmp.eq.s32.totalorder %s34, 0
      %p271 = por %p269, %p270
      %s273 = sadd.s32 %s272, 1
      %p276 = scmp.eq.s32.totalorder %s28, 1
      %p277 = scmp.ne.s32.totalorder %s272, %s274
      %p278 = scmp.eq.s32.totalorder %s28, 0
      %p279 = por %p277, %p278
      %p280 = scmp.ne.s32.totalorder %s272, %s274
      %p281 = scmp.eq.s32.totalorder %s33, 1
      %p282 = por %p280, %p281
      %p283 = scmp.ne.s32.totalorder %s274, %s275
      %p284 = scmp.eq.s32.totalorder %s33, 0
      %p285 = por %p283, %p284
      %p286 = scmp.ne.s32.totalorder %s274, %s275
      %p287 = scmp.eq.s32.totalorder %s34, 1
      %p288 = por %p286, %p287
      %p290 = scmp.ne.s32.totalorder %s275, %s289
      %p291 = scmp.eq.s32.totalorder %s34, 0
      %p292 = por %p290, %p291
      %s294 = sadd.s32 %s293, 1
      %p297 = scmp.eq.s32.totalorder %s28, 1
      %p298 = scmp.ne.s32.totalorder %s293, %s295
      %p299 = scmp.eq.s32.totalorder %s28, 0
      %p300 = por %p298, %p299
      %p301 = scmp.ne.s32.totalorder %s293, %s295
      %p302 = scmp.eq.s32.totalorder %s33, 1
      %p303 = por %p301, %p302
      %p304 = scmp.ne.s32.totalorder %s295, %s296
      %p305 = scmp.eq.s32.totalorder %s33, 0
      %p306 = por %p304, %p305
      %p307 = scmp.ne.s32.totalorder %s295, %s296
      %p308 = scmp.eq.s32.totalorder %s34, 1
      %p309 = por %p307, %p308
      %p311 = scmp.ne.s32.totalorder %s296, %s310
      %p312 = scmp.eq.s32.totalorder %s34, 0
      %p313 = por %p311, %p312
      %s315 = sadd.s32 %s314, 1
      %p318 = scmp.eq.s32.totalorder %s28, 1
      %p319 = scmp.ne.s32.totalorder %s314, %s316
      %p320 = scmp.eq.s32.totalorder %s28, 0
      %p321 = por %p319, %p320
      %p322 = scmp.ne.s32.totalorder %s314, %s316
      %p323 = scmp.eq.s32.totalorder %s33, 1
      %p324 = por %p322, %p323
      %p325 = scmp.ne.s32.totalorder %s316, %s317
      %p326 = scmp.eq.s32.totalorder %s33, 0
      %p327 = por %p325, %p326
      %p328 = scmp.ne.s32.totalorder %s316, %s317
      %p329 = scmp.eq.s32.totalorder %s34, 1
      %p330 = por %p328, %p329
      %p332 = scmp.ne.s32.totalorder %s317, %s331
      %p333 = scmp.eq.s32.totalorder %s34, 0
      %p334 = por %p332, %p333
      %s336 = sadd.s32 %s335, 1
      %p339 = scmp.eq.s32.totalorder %s28, 1
      %p340 = scmp.ne.s32.totalorder %s335, %s337
      %p341 = scmp.eq.s32.totalorder %s28, 0
      %p342 = por %p340, %p341
      %p343 = scmp.ne.s32.totalorder %s335, %s337
      %p344 = scmp.eq.s32.totalorder %s33, 1
      %p345 = por %p343, %p344
      %p346 = scmp.ne.s32.totalorder %s337, %s338
      %p347 = scmp.eq.s32.totalorder %s33, 0
      %p348 = por %p346, %p347
      %p349 = scmp.ne.s32.totalorder %s337, %s338
      %p350 = scmp.eq.s32.totalorder %s34, 1
      %p351 = por %p349, %p350
      %p353 = scmp.ne.s32.totalorder %s338, %s352
      %p354 = scmp.eq.s32.totalorder %s34, 0
      %p355 = por %p353, %p354
      %s357 = sadd.s32 %s356, 1
      %p360 = scmp.eq.s32.totalorder %s28, 1
      %p361 = scmp.ne.s32.totalorder %s356, %s358
      %p362 = scmp.eq.s32.totalorder %s28, 0
      %p363 = por %p361, %p362
      %p364 = scmp.ne.s32.totalorder %s356, %s358
      %p365 = scmp.eq.s32.totalorder %s33, 1
      %p366 = por %p364, %p365
      %p367 = scmp.ne.s32.totalorder %s358, %s359
      %p368 = scmp.eq.s32.totalorder %s33, 0
      %p369 = por %p367, %p368
      %p370 = scmp.ne.s32.totalorder %s358, %s359
      %p371 = scmp.eq.s32.totalorder %s34, 1
      %p372 = por %p370, %p371
      %p374 = scmp.ne.s32.totalorder %s359, %s373
      %p375 = scmp.eq.s32.totalorder %s34, 0
      %p376 = por %p374, %p375
      %s377 = ssub.s32 %s28, %s35
      %p378 = scmp.eq.s32.totalorder %s377, 0
      %s380 = sadd.s32 %s379, 1
      %s381 = scalar_select %p378, %s379, %s380
      %p384 = pneg %p378
      %p385 = scmp.eq.s32.totalorder %s28, 1
      %p386 = por %p384, %p385
      %p387 = scmp.ne.s32.totalorder %s379, %s382
      %p388 = scmp.eq.s32.totalorder %s28, 0
      %p389 = por %p387, %p388
      %p390 = scmp.ne.s32.totalorder %s379, %s382
      %p391 = scmp.eq.s32.totalorder %s33, 1
      %p392 = por %p390, %p391
      %p393 = scmp.ne.s32.totalorder %s382, %s383
      %p394 = scmp.eq.s32.totalorder %s33, 0
      %p395 = por %p393, %p394
      %p396 = scmp.ne.s32.totalorder %s382, %s383
      %p397 = scmp.eq.s32.totalorder %s34, 1
      %p398 = por %p396, %p397
      %p400 = scmp.ne.s32.totalorder %s383, %s399
      %p401 = scmp.eq.s32.totalorder %s34, 0
      %p402 = por %p400, %p401
      %p403 = scmp.le.s32.totalorder 1, %s28
      %p404 = scmp.lt.s32.totalorder %s28, 3
      %p405 = pnand %p403, %p404
      %p406 = pneg %p405
      // Predicated region
      $region9: #{tpu_custom_call.1} parent=5 // pred_check
        _
      $region10: #{tpu_custom_call.1} parent=5 // pred_check_branch
        %408 = sbr.rel (%p405) target = $region12
      $region11: #{tpu_custom_call.1} parent=5 // pred_region
        %s409 = ssub.s32 %s28, 1
        // Predicated region
        $region13: #{tpu_custom_call.1} parent=11 // pred_check
          %p410 = pneg %p75
        $region14: #{tpu_custom_call.1} parent=11 // pred_check_branch
          %412 = sbr.rel (%p410) target = $region16
        $region15: #{tpu_custom_call.1} parent=11 // pred_region
          _
        $region16: #{tpu_custom_call.1} parent=11 // pred_fallthru
          _
        // Predicated region
        $region17: #{tpu_custom_call.1} parent=11 // pred_check
          %p413 = pneg %p96
        $region18: #{tpu_custom_call.1} parent=11 // pred_check_branch
          %415 = sbr.rel (%p413) target = $region20
        $region19: #{tpu_custom_call.1} parent=11 // pred_region
          %s417 = ssub.s32 16, 16
          %418 = vsyncadd [#allocation3], %s417
          %s420 = sshll.u32 [#allocation2], 4
          %s421 = int_to_ptr.vmem [resolvable:$true] %s420
          %423 = dma.hbm_to_vmem [thread:$0]  %s2, 16, %s421, [#allocation3]
        $region20: #{tpu_custom_call.1} parent=11 // pred_fallthru
          _
        // Predicated region
        $region21: #{tpu_custom_call.1} parent=11 // pred_check
          %p424 = pneg %p117
        $region22: #{tpu_custom_call.1} parent=11 // pred_check_branch
          %426 = sbr.rel (%p424) target = $region24
        $region23: #{tpu_custom_call.1} parent=11 // pred_region
          %s428 = ssub.s32 512, 512
          %429 = vsyncadd [#allocation6], %s428
          %s430 = sshll.u32 [#allocation5], 4
          %s431 = int_to_ptr.vmem [resolvable:$true] %s430
          %436 = dma.hbm_to_vmem [thread:$0]  %s3, 512, %s431, [#allocation6], 64, 64, 4
        $region24: #{tpu_custom_call.1} parent=11 // pred_fallthru
          _
        // Predicated region
        $region25: #{tpu_custom_call.1} parent=11 // pred_check
          %p437 = pneg %p138
        $region26: #{tpu_custom_call.1} parent=11 // pred_check_branch
          %439 = sbr.rel (%p437) target = $region28
        $region27: #{tpu_custom_call.1} parent=11 // pred_region
          _
        $region28: #{tpu_custom_call.1} parent=11 // pred_fallthru
          _
        // Predicated region
        $region29: #{tpu_custom_call.1} parent=11 // pred_check
          %p440 = pneg %p159
        $region30: #{tpu_custom_call.1} parent=11 // pred_check_branch
          %442 = sbr.rel (%p440) target = $region32
        $region31: #{tpu_custom_call.1} parent=11 // pred_region
          _
        $region32: #{tpu_custom_call.1} parent=11 // pred_fallthru
          _
        // Predicated region
        $region33: #{tpu_custom_call.1} parent=11 // pred_check
          %p443 = pneg %p180
        $region34: #{tpu_custom_call.1} parent=11 // pred_check_branch
          %445 = sbr.rel (%p443) target = $region36
        $region35: #{tpu_custom_call.1} parent=11 // pred_region
          _
        $region36: #{tpu_custom_call.1} parent=11 // pred_fallthru
          _
        // Predicated region
        $region37: #{tpu_custom_call.1} parent=11 // pred_check
          %p446 = pneg %p201
        $region38: #{tpu_custom_call.1} parent=11 // pred_check_branch
          %448 = sbr.rel (%p446) target = $region40
        $region39: #{tpu_custom_call.1} parent=11 // pred_region
          _
        $region40: #{tpu_custom_call.1} parent=11 // pred_fallthru
          _
        // Predicated region
        $region41: #{tpu_custom_call.1} parent=11 // pred_check
          %p449 = pneg %p222
        $region42: #{tpu_custom_call.1} parent=11 // pred_check_branch
          %451 = sbr.rel (%p449) target = $region44
        $region43: #{tpu_custom_call.1} parent=11 // pred_region
          _
        $region44: #{tpu_custom_call.1} parent=11 // pred_fallthru
          _
        // Predicated region
        $region45: #{tpu_custom_call.1} parent=11 // pred_check
          %p452 = pneg %p243
        $region46: #{tpu_custom_call.1} parent=11 // pred_check_branch
          %454 = sbr.rel (%p452) target = $region48
        $region47: #{tpu_custom_call.1} parent=11 // pred_region
          %s456 = ssub.s32 4096, 4096
          %457 = vsyncadd [#allocation6], %s456
          %s458 = sshll.u32 [#allocation7], 4
          %s459 = int_to_ptr.vmem [resolvable:$true] %s458
          %464 = dma.hbm_to_vmem [thread:$0]  %s9, 4096, %s459, [#allocation6], 256, 256, 16
        $region48: #{tpu_custom_call.1} parent=11 // pred_fallthru
          _
        // Predicated region
        $region49: #{tpu_custom_call.1} parent=11 // pred_check
          %p465 = pneg %p264
        $region50: #{tpu_custom_call.1} parent=11 // pred_check_branch
          %467 = sbr.rel (%p465) target = $region52
        $region51: #{tpu_custom_call.1} parent=11 // pred_region
          _
        $region52: #{tpu_custom_call.1} parent=11 // pred_fallthru
          _
        // Predicated region
        $region53: #{tpu_custom_call.1} parent=11 // pred_check
          %p468 = pneg %p285
        $region54: #{tpu_custom_call.1} parent=11 // pred_check_branch
          %470 = sbr.rel (%p468) target = $region56
        $region55: #{tpu_custom_call.1} parent=11 // pred_region
          %s472 = ssub.s32 4096, 4096
          %473 = vsyncadd [#allocation9], %s472
          %s474 = sshll.u32 [#allocation8], 4
          %s475 = int_to_ptr.vmem [resolvable:$true] %s474
          %480 = dma.hbm_to_vmem [thread:$0]  %s11, 4096, %s475, [#allocation9], 64, 64, 4
        $region56: #{tpu_custom_call.1} parent=11 // pred_fallthru
          _
        // Predicated region
        $region57: #{tpu_custom_call.1} parent=11 // pred_check
          %p481 = pneg %p306
        $region58: #{tpu_custom_call.1} parent=11 // pred_check_branch
          %483 = sbr.rel (%p481) target = $region60
        $region59: #{tpu_custom_call.1} parent=11 // pred_region
          _
        $region60: #{tpu_custom_call.1} parent=11 // pred_fallthru
          _
        // Predicated region
        $region61: #{tpu_custom_call.1} parent=11 // pred_check
          %p484 = pneg %p327
        $region62: #{tpu_custom_call.1} parent=11 // pred_check_branch
          %486 = sbr.rel (%p484) target = $region64
        $region63: #{tpu_custom_call.1} parent=11 // pred_region
          _
        $region64: #{tpu_custom_call.1} parent=11 // pred_fallthru
          _
        // Predicated region
        $region65: #{tpu_custom_call.1} parent=11 // pred_check
          %p487 = pneg %p348
        $region66: #{tpu_custom_call.1} parent=11 // pred_check_branch
          %489 = sbr.rel (%p487) target = $region68
        $region67: #{tpu_custom_call.1} parent=11 // pred_region
          _
        $region68: #{tpu_custom_call.1} parent=11 // pred_fallthru
          _
        // Predicated region
        $region69: #{tpu_custom_call.1} parent=11 // pred_check
          %p490 = pneg %p369
        $region70: #{tpu_custom_call.1} parent=11 // pred_check_branch
          %492 = sbr.rel (%p490) target = $region72
        $region71: #{tpu_custom_call.1} parent=11 // pred_region
          %s494 = ssub.s32 1024, 1024
          %495 = vsyncadd [#allocation9], %s494
          %s496 = sshll.u32 [#allocation10], 4
          %s497 = int_to_ptr.vmem [resolvable:$true] %s496
          %502 = dma.hbm_to_vmem [thread:$0]  %s15, 1024, %s497, [#allocation9], 64, 64, 4
        $region72: #{tpu_custom_call.1} parent=11 // pred_fallthru
          _
      $region12: #{tpu_custom_call.1} parent=5 // pred_fallthru
        _
      %p503 = scmp.lt.s32.totalorder %s28, 2
      // Predicated region
      $region73: #{tpu_custom_call.1} parent=5 // pred_check
        %p504 = pneg %p503
      $region74: #{tpu_custom_call.1} parent=5 // pred_check_branch
        %506 = sbr.rel (%p504) target = $region76
      $region75: #{tpu_custom_call.1} parent=5 // pred_region
        // Predicated region
        $region77: #{tpu_custom_call.1} parent=75 // pred_check
          %p507 = pneg %p48
        $region78: #{tpu_custom_call.1} parent=75 // pred_check_branch
          %509 = sbr.rel (%p507) target = $region80
        $region79: #{tpu_custom_call.1} parent=75 // pred_region
          %p510 = scmp.lt.s32.totalorder %s28, 1
          %s511 = scalar_select %p510, %s28, 1
          %s512 = smul.addr %s511, 16
          %s513 = smul.addr %s512, 8
          %s514 = scalar_lea.vmem %s0, %s513
        $region80: #{tpu_custom_call.1} parent=75 // pred_fallthru
          _
      $region76: #{tpu_custom_call.1} parent=5 // pred_fallthru
        _
      %p515 = scmp.le.s32.totalorder 1, %s28
      %p516 = scmp.lt.s32.totalorder %s28, 3
      %p517 = pnand %p515, %p516
      %p518 = pneg %p517
      // Predicated region
      $region81: #{tpu_custom_call.1} parent=5 // pred_check
        _
      $region82: #{tpu_custom_call.1} parent=5 // pred_check_branch
        %520 = sbr.rel (%p517) target = $region84
      $region83: #{tpu_custom_call.1} parent=5 // pred_region
        %s521 = ssub.s32 %s28, 1
        // Predicated region
        $region85: #{tpu_custom_call.1} parent=83 // pred_check
          %p522 = pneg %p96
        $region86: #{tpu_custom_call.1} parent=83 // pred_check_branch
          %524 = sbr.rel (%p522) target = $region88
        $region87: #{tpu_custom_call.1} parent=83 // pred_region
          %525 = dma.done [#allocation3], 16
        $region88: #{tpu_custom_call.1} parent=83 // pred_fallthru
          _
        // Predicated region
        $region89: #{tpu_custom_call.1} parent=83 // pred_check
          %p526 = pneg %p117
        $region90: #{tpu_custom_call.1} parent=83 // pred_check_branch
          %528 = sbr.rel (%p526) target = $region92
        $region91: #{tpu_custom_call.1} parent=83 // pred_region
          %529 = dma.done [#allocation6], 512
        $region92: #{tpu_custom_call.1} parent=83 // pred_fallthru
          _
        // Predicated region
        $region93: #{tpu_custom_call.1} parent=83 // pred_check
          %p530 = pneg %p243
        $region94: #{tpu_custom_call.1} parent=83 // pred_check_branch
          %532 = sbr.rel (%p530) target = $region96
        $region95: #{tpu_custom_call.1} parent=83 // pred_region
          %533 = dma.done [#allocation6], 4096
        $region96: #{tpu_custom_call.1} parent=83 // pred_fallthru
          _
        // Predicated region
        $region97: #{tpu_custom_call.1} parent=83 // pred_check
          %p534 = pneg %p285
        $region98: #{tpu_custom_call.1} parent=83 // pred_check_branch
          %536 = sbr.rel (%p534) target = $region100
        $region99: #{tpu_custom_call.1} parent=83 // pred_region
          %537 = dma.done [#allocation9], 4096
        $region100: #{tpu_custom_call.1} parent=83 // pred_fallthru
          _
        // Predicated region
        $region101: #{tpu_custom_call.1} parent=83 // pred_check
          %p538 = pneg %p369
        $region102: #{tpu_custom_call.1} parent=83 // pred_check_branch
          %540 = sbr.rel (%p538) target = $region104
        $region103: #{tpu_custom_call.1} parent=83 // pred_region
          %541 = dma.done [#allocation9], 1024
        $region104: #{tpu_custom_call.1} parent=83 // pred_fallthru
          _
        %p542 = scmp.lt.s32.totalorder %s33, 1
        %s543 = scalar_select %p542, %s33, 1
        %s544 = smul.addr %s543, 16
        %s545 = smul.addr %s544, 8
        %s546 = scalar_lea.vmem %s0, %s545
        %p547 = pneg %p54
        %p548 = pneg %p51
        %p549 = pneg %p75
        %p550 = pneg %p72
        %p551 = pneg %p96
        %p552 = pneg %p93
        %p553 = pneg %p117
        %p554 = pneg %p114
        %p555 = pneg %p138
        %p556 = pneg %p135
        %p557 = pneg %p159
        %p558 = pneg %p156
        %p559 = pneg %p180
        %p560 = pneg %p177
        %p561 = pneg %p201
        %p562 = pneg %p198
        %p563 = pneg %p222
        %p564 = pneg %p219
        %p565 = pneg %p243
        %p566 = pneg %p240
        %p567 = pneg %p264
        %p568 = pneg %p261
        %p569 = pneg %p285
        %p570 = pneg %p282
        %p571 = pneg %p306
        %p572 = pneg %p303
        %p573 = pneg %p327
        %p574 = pneg %p324
        %p575 = pneg %p348
        %p576 = pneg %p345
        %p577 = pneg %p369
        %p578 = pneg %p366
        %p579 = pneg %p395
        %p580 = pneg %p392
        %s581 = sand.u32 %s382, 1
        %s582 = scalar_lea.sflag [#allocation4], %s581
        %s583 = sand.u32 %s382, 1
        %s584 = smul.addr %s583, 16
        %s585 = scalar_lea.vmem [#allocation11], %s584
        %p586 = scmp.lt.s32.totalorder %s33, 1
        %s587 = scalar_select %p586, %s33, 1
        %s588 = smul.addr %s587, 16
        %s589 = smul.addr %s588, 8
        %s590 = scalar_lea.vmem %s0, %s589
        %v592 = vld [vmem:[%s590] sm:$0xff]
        %v593 = vld [vmem:[%s590 + $0x8] sm:$0xff]
        %v594 = vld [vmem:[%s590 + $0x10] sm:$0xff]
        %v595 = vld [vmem:[%s590 + $0x18] sm:$0xff]
        %v596 = vld [vmem:[%s590 + $0x20] sm:$0xff]
        %v597 = vld [vmem:[%s590 + $0x28] sm:$0xff]
        %v598 = vld [vmem:[%s590 + $0x30] sm:$0xff]
        %v599 = vld [vmem:[%s590 + $0x38] sm:$0xff]
        %v600 = vld [vmem:[%s590 + $0x40] sm:$0xff]
        %v601 = vld [vmem:[%s590 + $0x48] sm:$0xff]
        %v602 = vld [vmem:[%s590 + $0x50] sm:$0xff]
        %v603 = vld [vmem:[%s590 + $0x58] sm:$0xff]
        %v604 = vld [vmem:[%s590 + $0x60] sm:$0xff]
        %v605 = vld [vmem:[%s590 + $0x68] sm:$0xff]
        %v606 = vld [vmem:[%s590 + $0x70] sm:$0xff]
        %v607 = vld [vmem:[%s590 + $0x78] sm:$0xff]
        %v608 = vld [vmem:[%s1] sm:$0x1]
        %v609 = vld [vmem:[#allocation2] sm:$0x1]
        %610 = vadd.xlane.f32.xlu0 %v592
        %v611 = vpop.xlane.xlu0 %610
        %612 = vadd.xlane.f32.xlu0 %v593
        %v613 = vpop.xlane.xlu0 %612
        %614 = vadd.xlane.f32.xlu0 %v594
        %v615 = vpop.xlane.xlu0 %614
        %616 = vadd.xlane.f32.xlu0 %v595
        %v617 = vpop.xlane.xlu0 %616
        %618 = vadd.xlane.f32.xlu0 %v596
        %v619 = vpop.xlane.xlu0 %618
        %620 = vadd.xlane.f32.xlu0 %v597
        %v621 = vpop.xlane.xlu0 %620
        %622 = vadd.xlane.f32.xlu0 %v598
        %v623 = vpop.xlane.xlu0 %622
        %624 = vadd.xlane.f32.xlu0 %v599
        %v625 = vpop.xlane.xlu0 %624
        %626 = vadd.xlane.f32.xlu0 %v600
        %v627 = vpop.xlane.xlu0 %626
        %628 = vadd.xlane.f32.xlu0 %v601
        %v629 = vpop.xlane.xlu0 %628
        %630 = vadd.xlane.f32.xlu0 %v602
        %v631 = vpop.xlane.xlu0 %630
        %632 = vadd.xlane.f32.xlu0 %v603
        %v633 = vpop.xlane.xlu0 %632
        %634 = vadd.xlane.f32.xlu0 %v604
        %v635 = vpop.xlane.xlu0 %634
        %636 = vadd.xlane.f32.xlu0 %v605
        %v637 = vpop.xlane.xlu0 %636
        %638 = vadd.xlane.f32.xlu0 %v606
        %v639 = vpop.xlane.xlu0 %638
        %640 = vadd.xlane.f32.xlu0 %v607
        %v641 = vpop.xlane.xlu0 %640
        %v642 = vrcp.pop 128.0
        %v643 = vmul.f32 %v611, %v642
        %v644 = vmul.f32 %v613, %v642
        %v645 = vmul.f32 %v615, %v642
        %v646 = vmul.f32 %v617, %v642
        %v647 = vmul.f32 %v619, %v642
        %v648 = vmul.f32 %v621, %v642
        %v649 = vmul.f32 %v623, %v642
        %v650 = vmul.f32 %v625, %v642
        %v651 = vmul.f32 %v627, %v642
        %v652 = vmul.f32 %v629, %v642
        %v653 = vmul.f32 %v631, %v642
        %v654 = vmul.f32 %v633, %v642
        %v655 = vmul.f32 %v635, %v642
        %v656 = vmul.f32 %v637, %v642
        %v657 = vmul.f32 %v639, %v642
        %v658 = vmul.f32 %v641, %v642
        %v659 = vsub.f32 %v592, %v643
        %v660 = vsub.f32 %v593, %v644
        %v661 = vsub.f32 %v594, %v645
        %v662 = vsub.f32 %v595, %v646
        %v663 = vsub.f32 %v596, %v647
        %v664 = vsub.f32 %v597, %v648
        %v665 = vsub.f32 %v598, %v649
        %v666 = vsub.f32 %v599, %v650
        %v667 = vsub.f32 %v600, %v651
        %v668 = vsub.f32 %v601, %v652
        %v669 = vsub.f32 %v602, %v653
        %v670 = vsub.f32 %v603, %v654
        %v671 = vsub.f32 %v604, %v655
        %v672 = vsub.f32 %v605, %v656
        %v673 = vsub.f32 %v606, %v657
        %v674 = vsub.f32 %v607, %v658
        %v675 = vmul.f32 %v659, %v659
        %v676 = vmul.f32 %v660, %v660
        %v677 = vmul.f32 %v661, %v661
        %v678 = vmul.f32 %v662, %v662
        %v679 = vmul.f32 %v663, %v663
        %v680 = vmul.f32 %v664, %v664
        %v681 = vmul.f32 %v665, %v665
        %v682 = vmul.f32 %v666, %v666
        %v683 = vmul.f32 %v667, %v667
        %v684 = vmul.f32 %v668, %v668
        %v685 = vmul.f32 %v669, %v669
        %v686 = vmul.f32 %v670, %v670
        %v687 = vmul.f32 %v671, %v671
        %v688 = vmul.f32 %v672, %v672
        %v689 = vmul.f32 %v673, %v673
        %v690 = vmul.f32 %v674, %v674
        %691 = vadd.xlane.f32.xlu0 %v675
        %v692 = vpop.xlane.xlu0 %691
        %693 = vadd.xlane.f32.xlu0 %v676
        %v694 = vpop.xlane.xlu0 %693
        %695 = vadd.xlane.f32.xlu0 %v677
        %v696 = vpop.xlane.xlu0 %695
        %697 = vadd.xlane.f32.xlu0 %v678
        %v698 = vpop.xlane.xlu0 %697
        %699 = vadd.xlane.f32.xlu0 %v679
        %v700 = vpop.xlane.xlu0 %699
        %701 = vadd.xlane.f32.xlu0 %v680
        %v702 = vpop.xlane.xlu0 %701
        %703 = vadd.xlane.f32.xlu0 %v681
        %v704 = vpop.xlane.xlu0 %703
        %705 = vadd.xlane.f32.xlu0 %v682
        %v706 = vpop.xlane.xlu0 %705
        %707 = vadd.xlane.f32.xlu0 %v683
        %v708 = vpop.xlane.xlu0 %707
        %709 = vadd.xlane.f32.xlu0 %v684
        %v710 = vpop.xlane.xlu0 %709
        %711 = vadd.xlane.f32.xlu0 %v685
        %v712 = vpop.xlane.xlu0 %711
        %713 = vadd.xlane.f32.xlu0 %v686
        %v714 = vpop.xlane.xlu0 %713
        %715 = vadd.xlane.f32.xlu0 %v687
        %v716 = vpop.xlane.xlu0 %715
        %717 = vadd.xlane.f32.xlu0 %v688
        %v718 = vpop.xlane.xlu0 %717
        %719 = vadd.xlane.f32.xlu0 %v689
        %v720 = vpop.xlane.xlu0 %719
        %721 = vadd.xlane.f32.xlu0 %v690
        %v722 = vpop.xlane.xlu0 %721
        %v723 = vmul.f32 %v692, %v642
        %v724 = vmul.f32 %v694, %v642
        %v725 = vmul.f32 %v696, %v642
        %v726 = vmul.f32 %v698, %v642
        %v727 = vmul.f32 %v700, %v642
        %v728 = vmul.f32 %v702, %v642
        %v729 = vmul.f32 %v704, %v642
        %v730 = vmul.f32 %v706, %v642
        %v731 = vmul.f32 %v708, %v642
        %v732 = vmul.f32 %v710, %v642
        %v733 = vmul.f32 %v712, %v642
        %v734 = vmul.f32 %v714, %v642
        %v735 = vmul.f32 %v716, %v642
        %v736 = vmul.f32 %v718, %v642
        %v737 = vmul.f32 %v720, %v642
        %v738 = vmul.f32 %v722, %v642
        %v739 = vadd.f32 %v723, 1e-05
        %v740 = vadd.f32 %v724, 1e-05
        %v741 = vadd.f32 %v725, 1e-05
        %v742 = vadd.f32 %v726, 1e-05
        %v743 = vadd.f32 %v727, 1e-05
        %v744 = vadd.f32 %v728, 1e-05
        %v745 = vadd.f32 %v729, 1e-05
        %v746 = vadd.f32 %v730, 1e-05
        %v747 = vadd.f32 %v731, 1e-05
        %v748 = vadd.f32 %v732, 1e-05
        %v749 = vadd.f32 %v733, 1e-05
        %v750 = vadd.f32 %v734, 1e-05
        %v751 = vadd.f32 %v735, 1e-05
        %v752 = vadd.f32 %v736, 1e-05
        %v753 = vadd.f32 %v737, 1e-05
        %v754 = vadd.f32 %v738, 1e-05
        %v755 = vrsqrt.pop %v739
        %v756 = vrsqrt.pop %v740
        %v757 = vrsqrt.pop %v741
        %v758 = vrsqrt.pop %v742
        %v759 = vrsqrt.pop %v743
        %v760 = vrsqrt.pop %v744
        %v761 = vrsqrt.pop %v745
        %v762 = vrsqrt.pop %v746
        %v763 = vrsqrt.pop %v747
        %v764 = vrsqrt.pop %v748
        %v765 = vrsqrt.pop %v749
        %v766 = vrsqrt.pop %v750
        %v767 = vrsqrt.pop %v751
        %v768 = vrsqrt.pop %v752
        %v769 = vrsqrt.pop %v753
        %v770 = vrsqrt.pop %v754
        %v771 = vmul.f32 %v659, %v755
        %v772 = vmul.f32 %v660, %v756
        %v773 = vmul.f32 %v661, %v757
        %v774 = vmul.f32 %v662, %v758
        %v775 = vmul.f32 %v663, %v759
        %v776 = vmul.f32 %v664, %v760
        %v777 = vmul.f32 %v665, %v761
        %v778 = vmul.f32 %v666, %v762
        %v779 = vmul.f32 %v667, %v763
        %v780 = vmul.f32 %v668, %v764
        %v781 = vmul.f32 %v669, %v765
        %v782 = vmul.f32 %v670, %v766
        %v783 = vmul.f32 %v671, %v767
        %v784 = vmul.f32 %v672, %v768
        %v785 = vmul.f32 %v673, %v769
        %v786 = vmul.f32 %v674, %v770
        %v788 = vlaneseq
        %v789 = vshrl.u32 %v788, 7
        %v790 = vsub.s32 0, %v789
        %v791 = vrot.slane %v608, %v790
        %v793 = vmul.f32 %v771, %v791
        %v794 = vmul.f32 %v772, %v791
        %v795 = vmul.f32 %v773, %v791
        %v796 = vmul.f32 %v774, %v791
        %v797 = vmul.f32 %v775, %v791
        %v798 = vmul.f32 %v776, %v791
        %v799 = vmul.f32 %v777, %v791
        %v800 = vmul.f32 %v778, %v791
        %v801 = vmul.f32 %v779, %v791
        %v802 = vmul.f32 %v780, %v791
        %v803 = vmul.f32 %v781, %v791
        %v804 = vmul.f32 %v782, %v791
        %v805 = vmul.f32 %v783, %v791
        %v806 = vmul.f32 %v784, %v791
        %v807 = vmul.f32 %v785, %v791
        %v808 = vmul.f32 %v786, %v791
        %v810 = vlaneseq
        %v811 = vshrl.u32 %v810, 7
        %v812 = vsub.s32 0, %v811
        %v813 = vrot.slane %v609, %v812
        %v815 = vadd.f32 %v793, %v813
        %v816 = vadd.f32 %v794, %v813
        %v817 = vadd.f32 %v795, %v813
        %v818 = vadd.f32 %v796, %v813
        %v819 = vadd.f32 %v797, %v813
        %v820 = vadd.f32 %v798, %v813
        %v821 = vadd.f32 %v799, %v813
        %v822 = vadd.f32 %v800, %v813
        %v823 = vadd.f32 %v801, %v813
        %v824 = vadd.f32 %v802, %v813
        %v825 = vadd.f32 %v803, %v813
        %v826 = vadd.f32 %v804, %v813
        %v827 = vadd.f32 %v805, %v813
        %v828 = vadd.f32 %v806, %v813
        %v829 = vadd.f32 %v807, %v813
        %v830 = vadd.f32 %v808, %v813
        %v831 = vld [vmem:[#allocation5] sm:$0xf]
        %v832 = vld [vmem:[#allocation5 + $0x4] sm:$0xf]
        %v833 = vld [vmem:[#allocation5 + $0x8] sm:$0xf]
        %v834 = vld [vmem:[#allocation5 + $0xc] sm:$0xf]
        %v835 = vld [vmem:[#allocation5 + $0x10] sm:$0xf]
        %v836 = vld [vmem:[#allocation5 + $0x14] sm:$0xf]
        %v837 = vld [vmem:[#allocation5 + $0x18] sm:$0xf]
        %v838 = vld [vmem:[#allocation5 + $0x1c] sm:$0xf]
        %v839 = vpack.c.bf16 %v816, %v815
        %v840 = vpack.c.bf16 %v818, %v817
        %v841 = vpack.c.bf16 %v820, %v819
        %v842 = vpack.c.bf16 %v822, %v821
        %v843 = vpack.c.bf16 %v824, %v823
        %v844 = vpack.c.bf16 %v826, %v825
        %v845 = vpack.c.bf16 %v828, %v827
        %v846 = vpack.c.bf16 %v830, %v829
        %v847 = vld [vmem:[%s4] sm:$0xff]
        %v848 = vld [vmem:[%s4 + $0x8] sm:$0xff]
        %v849 = vld [vmem:[%s4 + $0x10] sm:$0xff]
        %v850 = vld [vmem:[%s4 + $0x18] sm:$0xff]
        %v851 = vld [vmem:[%s4 + $0x20] sm:$0xff]
        %v852 = vld [vmem:[%s4 + $0x28] sm:$0xff]
        %v853 = vld [vmem:[%s4 + $0x30] sm:$0xff]
        %v854 = vld [vmem:[%s4 + $0x38] sm:$0xff]
        %856 = vset.pattern.permute.xlu0 0
        %857 = vperm.xlu0 %856, %v847
        %v858 = vpop.permute.xlu0 %857
        %861 = vset.pattern.permute.xlu0 0
        %862 = vperm.xlu0 %861, %v848
        %v863 = vpop.permute.xlu0 %862
        %866 = vset.pattern.permute.xlu0 0
        %867 = vperm.xlu0 %866, %v849
        %v868 = vpop.permute.xlu0 %867
        %871 = vset.pattern.permute.xlu0 0
        %872 = vperm.xlu0 %871, %v850
        %v873 = vpop.permute.xlu0 %872
        %876 = vset.pattern.permute.xlu0 0
        %877 = vperm.xlu0 %876, %v851
        %v878 = vpop.permute.xlu0 %877
        %881 = vset.pattern.permute.xlu0 0
        %882 = vperm.xlu0 %881, %v852
        %v883 = vpop.permute.xlu0 %882
        %886 = vset.pattern.permute.xlu0 0
        %887 = vperm.xlu0 %886, %v853
        %v888 = vpop.permute.xlu0 %887
        %891 = vset.pattern.permute.xlu0 0
        %892 = vperm.xlu0 %891, %v854
        %v893 = vpop.permute.xlu0 %892
        %v903 = vunpack.c.l.b16 %v831
        %v904 = vunpack.c.l.b16 %v832
        %v905 = vunpack.c.l.b16 %v833
        %v906 = vunpack.c.l.b16 %v834
        %v907 = vunpack.c.l.b16 %v835
        %v908 = vunpack.c.l.b16 %v836
        %v909 = vunpack.c.l.b16 %v837
        %v910 = vunpack.c.l.b16 %v838
        %v911 = vpack.c.b16 %v904, %v903
        %v912 = vpack.c.b16 %v906, %v905
        %v913 = vpack.c.b16 %v908, %v907
        %v914 = vpack.c.b16 %v910, %v909
        %919 = vmatprep.subr.bf16.mxu0 0
        %920 = vmatpush1.bf16.msra.mxu0 %v846
        %921 = vmatprep.subr.bf16.mxu0 0
        %922 = vmatpush1.bf16.msra.mxu0 %v845
        %923 = vmatprep.subr.bf16.mxu0 0
        %924 = vmatpush1.bf16.msra.mxu0 %v844
        %925 = vmatprep.subr.bf16.mxu0 0
        %926 = vmatpush1.bf16.msra.mxu0 %v843
        %927 = vmatprep.subr.bf16.mxu0 0
        %928 = vmatpush1.bf16.msra.mxu0 %v842
        %929 = vmatprep.subr.bf16.mxu0 0
        %930 = vmatpush1.bf16.msra.mxu0 %v841
        %931 = vmatprep.subr.bf16.mxu0 0
        %932 = vmatpush1.bf16.msra.mxu0 %v840
        %933 = vmatprep.subr.bf16.mxu0 0
        %934 = vmatpush1.bf16.msra.mxu0 %v839
        %935 = vmatprep.subr.bf16.mxu0 0
        %936 = vmatpush2.bf16.msra.mxu0 0
        %937 = vmatprep.subr.bf16.mxu0 0
        %938 = vmatpush2.bf16.msra.mxu0 0
        %939 = vmatprep.subr.bf16.mxu0 0
        %940 = vmatpush2.bf16.msra.mxu0 0
        %941 = vmatprep.subr.bf16.mxu0 0
        %942 = vmatpush2.bf16.msra.mxu0 0
        %943 = vmatprep.subr.bf16.mxu0 0
        %944 = vmatpush2.bf16.msra.mxu0 0
        %945 = vmatprep.subr.bf16.mxu0 0
        %946 = vmatpush2.bf16.msra.mxu0 0
        %947 = vmatprep.subr.bf16.mxu0 0
        %948 = vmatpush2.bf16.msra.mxu0 0
        %949 = vmatprep.subr.bf16.mxu0 0
        %950 = vmatpush2.bf16.msra.mxu0 0
        %951 = vmatprep.mubr.bf16.mxu0 0
        %952 = vmatmul.mubr.bf16.gmra.mxu0 %v911
        %v953 = vpop.f32.mrf.mxu0
        %v954 = vadd.f32 %v858, %v953
        %v955 = vpop.f32.mrf.mxu0
        %v956 = vpop.f32.mrf.mxu0
        %v957 = vadd.f32 %v863, %v956
        %v958 = vpop.f32.mrf.mxu0
        %959 = vmatprep.mubr.bf16.mxu0 0
        %960 = vmatmul.mubr.bf16.gmra.mxu0 %v912
        %v961 = vpop.f32.mrf.mxu0
        %v962 = vadd.f32 %v868, %v961
        %v963 = vpop.f32.mrf.mxu0
        %v964 = vpop.f32.mrf.mxu0
        %v965 = vadd.f32 %v873, %v964
        %v966 = vpop.f32.mrf.mxu0
        %967 = vmatprep.mubr.bf16.mxu0 0
        %968 = vmatmul.mubr.bf16.gmra.mxu0 %v913
        %v969 = vpop.f32.mrf.mxu0
        %v970 = vadd.f32 %v878, %v969
        %v971 = vpop.f32.mrf.mxu0
        %v972 = vpop.f32.mrf.mxu0
        %v973 = vadd.f32 %v883, %v972
        %v974 = vpop.f32.mrf.mxu0
        %975 = vmatprep.mubr.bf16.mxu0 0
        %976 = vmatmul.mubr.bf16.gmra.mxu0 %v914
        %v977 = vpop.f32.mrf.mxu0
        %v978 = vadd.f32 %v888, %v977
        %v979 = vpop.f32.mrf.mxu0
        %v980 = vpop.f32.mrf.mxu0
        %v981 = vadd.f32 %v893, %v980
        %v982 = vpop.f32.mrf.mxu0
        %983 = vdwg.mxu0
        %v984 = vmul.f32 %v954, %v954
        %v985 = vmul.f32 %v957, %v957
        %v986 = vmul.f32 %v962, %v962
        %v987 = vmul.f32 %v965, %v965
        %v988 = vmul.f32 %v970, %v970
        %v989 = vmul.f32 %v973, %v973
        %v990 = vmul.f32 %v978, %v978
        %v991 = vmul.f32 %v981, %v981
        %v992 = vmul.f32 %v954, %v984
        %v993 = vmul.f32 %v957, %v985
        %v994 = vmul.f32 %v962, %v986
        %v995 = vmul.f32 %v965, %v987
        %v996 = vmul.f32 %v970, %v988
        %v997 = vmul.f32 %v973, %v989
        %v998 = vmul.f32 %v978, %v990
        %v999 = vmul.f32 %v981, %v991
        %v1000 = vmul.f32 %v992, 0.044715
        %v1001 = vmul.f32 %v993, 0.044715
        %v1002 = vmul.f32 %v994, 0.044715
        %v1003 = vmul.f32 %v995, 0.044715
        %v1004 = vmul.f32 %v996, 0.044715
        %v1005 = vmul.f32 %v997, 0.044715
        %v1006 = vmul.f32 %v998, 0.044715
        %v1007 = vmul.f32 %v999, 0.044715
        %v1008 = vadd.f32 %v954, %v1000
        %v1009 = vadd.f32 %v957, %v1001
        %v1010 = vadd.f32 %v962, %v1002
        %v1011 = vadd.f32 %v965, %v1003
        %v1012 = vadd.f32 %v970, %v1004
        %v1013 = vadd.f32 %v973, %v1005
        %v1014 = vadd.f32 %v978, %v1006
        %v1015 = vadd.f32 %v981, %v1007
        %v1016 = vmul.f32 %v1008, 0.7978846
        %v1017 = vmul.f32 %v1009, 0.7978846
        %v1018 = vmul.f32 %v1010, 0.7978846
        %v1019 = vmul.f32 %v1011, 0.7978846
        %v1020 = vmul.f32 %v1012, 0.7978846
        %v1021 = vmul.f32 %v1013, 0.7978846
        %v1022 = vmul.f32 %v1014, 0.7978846
        %v1023 = vmul.f32 %v1015, 0.7978846
        %v1024 = vtanh.pop %v1016
        %v1025 = vtanh.pop %v1017
        %v1026 = vtanh.pop %v1018
        %v1027 = vtanh.pop %v1019
        %v1028 = vtanh.pop %v1020
        %v1029 = vtanh.pop %v1021
        %v1030 = vtanh.pop %v1022
        %v1031 = vtanh.pop %v1023
        %v1032 = vadd.f32 %v1024, 1.0
        %v1033 = vadd.f32 %v1025, 1.0
        %v1034 = vadd.f32 %v1026, 1.0
        %v1035 = vadd.f32 %v1027, 1.0
        %v1036 = vadd.f32 %v1028, 1.0
        %v1037 = vadd.f32 %v1029, 1.0
        %v1038 = vadd.f32 %v1030, 1.0
        %v1039 = vadd.f32 %v1031, 1.0
        %v1040 = vmul.f32 %v1032, 0.5
        %v1041 = vmul.f32 %v1033, 0.5
        %v1042 = vmul.f32 %v1034, 0.5
        %v1043 = vmul.f32 %v1035, 0.5
        %v1044 = vmul.f32 %v1036, 0.5
        %v1045 = vmul.f32 %v1037, 0.5
        %v1046 = vmul.f32 %v1038, 0.5
        %v1047 = vmul.f32 %v1039, 0.5
        %v1048 = vmul.f32 %v954, %v1040
        %v1049 = vmul.f32 %v957, %v1041
        %v1050 = vmul.f32 %v962, %v1042
        %v1051 = vmul.f32 %v965, %v1043
        %v1052 = vmul.f32 %v970, %v1044
        %v1053 = vmul.f32 %v973, %v1045
        %v1054 = vmul.f32 %v978, %v1046
        %v1055 = vmul.f32 %v981, %v1047
        %v1056 = vld [vmem:[%s5] sm:$0xf]
        %v1057 = vld [vmem:[%s5 + $0x4] sm:$0xf]
        %v1058 = vld [vmem:[%s5 + $0x8] sm:$0xf]
        %v1059 = vld [vmem:[%s5 + $0xc] sm:$0xf]
        %v1060 = vld [vmem:[%s5 + $0x10] sm:$0xf]
        %v1061 = vld [vmem:[%s5 + $0x14] sm:$0xf]
        %v1062 = vld [vmem:[%s5 + $0x18] sm:$0xf]
        %v1063 = vld [vmem:[%s5 + $0x1c] sm:$0xf]
        %v1064 = vld [vmem:[%s5 + $0x20] sm:$0xf]
        %v1065 = vld [vmem:[%s5 + $0x24] sm:$0xf]
        %v1066 = vld [vmem:[%s5 + $0x28] sm:$0xf]
        %v1067 = vld [vmem:[%s5 + $0x2c] sm:$0xf]
        %v1068 = vld [vmem:[%s5 + $0x30] sm:$0xf]
        %v1069 = vld [vmem:[%s5 + $0x34] sm:$0xf]
        %v1070 = vld [vmem:[%s5 + $0x38] sm:$0xf]
        %v1071 = vld [vmem:[%s5 + $0x3c] sm:$0xf]
        %v1072 = vpack.c.bf16 %v1049, %v1048
        %v1073 = vpack.c.bf16 %v1051, %v1050
        %v1074 = vpack.c.bf16 %v1053, %v1052
        %v1075 = vpack.c.bf16 %v1055, %v1054
        %v1076 = vld [vmem:[%s6] sm:$0xff]
        %v1077 = vld [vmem:[%s6 + $0x8] sm:$0xff]
        %v1078 = vld [vmem:[%s6 + $0x10] sm:$0xff]
        %v1079 = vld [vmem:[%s6 + $0x18] sm:$0xff]
        %v1080 = vld [vmem:[%s6 + $0x20] sm:$0xff]
        %v1081 = vld [vmem:[%s6 + $0x28] sm:$0xff]
        %v1082 = vld [vmem:[%s6 + $0x30] sm:$0xff]
        %v1083 = vld [vmem:[%s6 + $0x38] sm:$0xff]
        %v1084 = vld [vmem:[%s6 + $0x40] sm:$0xff]
        %v1085 = vld [vmem:[%s6 + $0x48] sm:$0xff]
        %v1086 = vld [vmem:[%s6 + $0x50] sm:$0xff]
        %v1087 = vld [vmem:[%s6 + $0x58] sm:$0xff]
        %v1088 = vld [vmem:[%s6 + $0x60] sm:$0xff]
        %v1089 = vld [vmem:[%s6 + $0x68] sm:$0xff]
        %v1090 = vld [vmem:[%s6 + $0x70] sm:$0xff]
        %v1091 = vld [vmem:[%s6 + $0x78] sm:$0xff]
        %1093 = vset.pattern.permute.xlu0 0
        %1094 = vperm.xlu0 %1093, %v1076
        %v1095 = vpop.permute.xlu0 %1094
        %1098 = vset.pattern.permute.xlu0 0
        %1099 = vperm.xlu0 %1098, %v1077
        %v1100 = vpop.permute.xlu0 %1099
        %1103 = vset.pattern.permute.xlu0 0
        %1104 = vperm.xlu0 %1103, %v1078
        %v1105 = vpop.permute.xlu0 %1104
        %1108 = vset.pattern.permute.xlu0 0
        %1109 = vperm.xlu0 %1108, %v1079
        %v1110 = vpop.permute.xlu0 %1109
        %1113 = vset.pattern.permute.xlu0 0
        %1114 = vperm.xlu0 %1113, %v1080
        %v1115 = vpop.permute.xlu0 %1114
        %1118 = vset.pattern.permute.xlu0 0
        %1119 = vperm.xlu0 %1118, %v1081
        %v1120 = vpop.permute.xlu0 %1119
        %1123 = vset.pattern.permute.xlu0 0
        %1124 = vperm.xlu0 %1123, %v1082
        %v1125 = vpop.permute.xlu0 %1124
        %1128 = vset.pattern.permute.xlu0 0
        %1129 = vperm.xlu0 %1128, %v1083
        %v1130 = vpop.permute.xlu0 %1129
        %1133 = vset.pattern.permute.xlu0 0
        %1134 = vperm.xlu0 %1133, %v1084
        %v1135 = vpop.permute.xlu0 %1134
        %1138 = vset.pattern.permute.xlu0 0
        %1139 = vperm.xlu0 %1138, %v1085
        %v1140 = vpop.permute.xlu0 %1139
        %1143 = vset.pattern.permute.xlu0 0
        %1144 = vperm.xlu0 %1143, %v1086
        %v1145 = vpop.permute.xlu0 %1144
        %1148 = vset.pattern.permute.xlu0 0
        %1149 = vperm.xlu0 %1148, %v1087
        %v1150 = vpop.permute.xlu0 %1149
        %1153 = vset.pattern.permute.xlu0 0
        %1154 = vperm.xlu0 %1153, %v1088
        %v1155 = vpop.permute.xlu0 %1154
        %1158 = vset.pattern.permute.xlu0 0
        %1159 = vperm.xlu0 %1158, %v1089
        %v1160 = vpop.permute.xlu0 %1159
        %1163 = vset.pattern.permute.xlu0 0
        %1164 = vperm.xlu0 %1163, %v1090
        %v1165 = vpop.permute.xlu0 %1164
        %1168 = vset.pattern.permute.xlu0 0
        %1169 = vperm.xlu0 %1168, %v1091
        %v1170 = vpop.permute.xlu0 %1169
        %v1188 = vunpack.c.l.b16 %v1056
        %v1189 = vunpack.c.l.b16 %v1057
        %v1190 = vunpack.c.l.b16 %v1058
        %v1191 = vunpack.c.l.b16 %v1059
        %v1192 = vunpack.c.l.b16 %v1060
        %v1193 = vunpack.c.l.b16 %v1061
        %v1194 = vunpack.c.l.b16 %v1062
        %v1195 = vunpack.c.l.b16 %v1063
        %v1196 = vunpack.c.l.b16 %v1064
        %v1197 = vunpack.c.l.b16 %v1065
        %v1198 = vunpack.c.l.b16 %v1066
        %v1199 = vunpack.c.l.b16 %v1067
        %v1200 = vunpack.c.l.b16 %v1068
        %v1201 = vunpack.c.l.b16 %v1069
        %v1202 = vunpack.c.l.b16 %v1070
        %v1203 = vunpack.c.l.b16 %v1071
        %v1204 = vpack.c.b16 %v1189, %v1188
        %v1205 = vpack.c.b16 %v1191, %v1190
        %v1206 = vpack.c.b16 %v1193, %v1192
        %v1207 = vpack.c.b16 %v1195, %v1194
        %v1208 = vpack.c.b16 %v1197, %v1196
        %v1209 = vpack.c.b16 %v1199, %v1198
        %v1210 = vpack.c.b16 %v1201, %v1200
        %v1211 = vpack.c.b16 %v1203, %v1202
        %vm1212 = vcmask 523264
        %v1214 = vsel %vm1212, %v1204, 0
        %v1217 = vsel %vm1212, %v1205, 0
        %v1220 = vsel %vm1212, %v1206, 0
        %v1223 = vsel %vm1212, %v1207, 0
        %v1226 = vsel %vm1212, %v1208, 0
        %v1229 = vsel %vm1212, %v1209, 0
        %v1232 = vsel %vm1212, %v1210, 0
        %v1235 = vsel %vm1212, %v1211, 0
        %1237 = vmatprep.subr.bf16.mxu0 0
        %1238 = vmatpush1.bf16.msra.mxu0 0
        %1239 = vmatprep.subr.bf16.mxu0 0
        %1240 = vmatpush1.bf16.msra.mxu0 0
        %1241 = vmatprep.subr.bf16.mxu0 0
        %1242 = vmatpush1.bf16.msra.mxu0 0
        %1243 = vmatprep.subr.bf16.mxu0 0
        %1244 = vmatpush1.bf16.msra.mxu0 0
        %1245 = vmatprep.subr.bf16.mxu0 0
        %1246 = vmatpush1.bf16.msra.mxu0 %v1075
        %1247 = vmatprep.subr.bf16.mxu0 0
        %1248 = vmatpush1.bf16.msra.mxu0 %v1074
        %1249 = vmatprep.subr.bf16.mxu0 0
        %1250 = vmatpush1.bf16.msra.mxu0 %v1073
        %1251 = vmatprep.subr.bf16.mxu0 0
        %1252 = vmatpush1.bf16.msra.mxu0 %v1072
        %1253 = vmatprep.subr.bf16.mxu0 0
        %1254 = vmatpush2.bf16.msra.mxu0 0
        %1255 = vmatprep.subr.bf16.mxu0 0
        %1256 = vmatpush2.bf16.msra.mxu0 0
        %1257 = vmatprep.subr.bf16.mxu0 0
        %1258 = vmatpush2.bf16.msra.mxu0 0
        %1259 = vmatprep.subr.bf16.mxu0 0
        %1260 = vmatpush2.bf16.msra.mxu0 0
        %1261 = vmatprep.subr.bf16.mxu0 0
        %1262 = vmatpush2.bf16.msra.mxu0 0
        %1263 = vmatprep.subr.bf16.mxu0 0
        %1264 = vmatpush2.bf16.msra.mxu0 0
        %1265 = vmatprep.subr.bf16.mxu0 0
        %1266 = vmatpush2.bf16.msra.mxu0 0
        %1267 = vmatprep.subr.bf16.mxu0 0
        %1268 = vmatpush2.bf16.msra.mxu0 0
        %1269 = vmatprep.mubr.bf16.mxu0 0
        %1270 = vmatmul.mubr.bf16.gmra.mxu0 %v1214
        %v1271 = vpop.f32.mrf.mxu0
        %v1272 = vadd.f32 %v1095, %v1271
        %v1273 = vpop.f32.mrf.mxu0
        %v1274 = vpop.f32.mrf.mxu0
        %v1275 = vadd.f32 %v1100, %v1274
        %v1276 = vpop.f32.mrf.mxu0
        %1277 = vmatprep.mubr.bf16.mxu0 0
        %1278 = vmatmul.mubr.bf16.gmra.mxu0 %v1217
        %v1279 = vpop.f32.mrf.mxu0
        %v1280 = vadd.f32 %v1105, %v1279
        %v1281 = vpop.f32.mrf.mxu0
        %v1282 = vpop.f32.mrf.mxu0
        %v1283 = vadd.f32 %v1110, %v1282
        %v1284 = vpop.f32.mrf.mxu0
        %1285 = vmatprep.mubr.bf16.mxu0 0
        %1286 = vmatmul.mubr.bf16.gmra.mxu0 %v1220
        %v1287 = vpop.f32.mrf.mxu0
        %v1288 = vadd.f32 %v1115, %v1287
        %v1289 = vpop.f32.mrf.mxu0
        %v1290 = vpop.f32.mrf.mxu0
        %v1291 = vadd.f32 %v1120, %v1290
        %v1292 = vpop.f32.mrf.mxu0
        %1293 = vmatprep.mubr.bf16.mxu0 0
        %1294 = vmatmul.mubr.bf16.gmra.mxu0 %v1223
        %v1295 = vpop.f32.mrf.mxu0
        %v1296 = vadd.f32 %v1125, %v1295
        %v1297 = vpop.f32.mrf.mxu0
        %v1298 = vpop.f32.mrf.mxu0
        %v1299 = vadd.f32 %v1130, %v1298
        %v1300 = vpop.f32.mrf.mxu0
        %1301 = vmatprep.mubr.bf16.mxu0 0
        %1302 = vmatmul.mubr.bf16.gmra.mxu0 %v1226
        %v1303 = vpop.f32.mrf.mxu0
        %v1304 = vadd.f32 %v1135, %v1303
        %v1305 = vpop.f32.mrf.mxu0
        %v1306 = vpop.f32.mrf.mxu0
        %v1307 = vadd.f32 %v1140, %v1306
        %v1308 = vpop.f32.mrf.mxu0
        %1309 = vmatprep.mubr.bf16.mxu0 0
        %1310 = vmatmul.mubr.bf16.gmra.mxu0 %v1229
        %v1311 = vpop.f32.mrf.mxu0
        %v1312 = vadd.f32 %v1145, %v1311
        %v1313 = vpop.f32.mrf.mxu0
        %v1314 = vpop.f32.mrf.mxu0
        %v1315 = vadd.f32 %v1150, %v1314
        %v1316 = vpop.f32.mrf.mxu0
        %1317 = vmatprep.mubr.bf16.mxu0 0
        %1318 = vmatmul.mubr.bf16.gmra.mxu0 %v1232
        %v1319 = vpop.f32.mrf.mxu0
        %v1320 = vadd.f32 %v1155, %v1319
        %v1321 = vpop.f32.mrf.mxu0
        %v1322 = vpop.f32.mrf.mxu0
        %v1323 = vadd.f32 %v1160, %v1322
        %v1324 = vpop.f32.mrf.mxu0
        %1325 = vmatprep.mubr.bf16.mxu0 0
        %1326 = vmatmul.mubr.bf16.gmra.mxu0 %v1235
        %v1327 = vpop.f32.mrf.mxu0
        %v1328 = vadd.f32 %v1165, %v1327
        %v1329 = vpop.f32.mrf.mxu0
        %v1330 = vpop.f32.mrf.mxu0
        %v1331 = vadd.f32 %v1170, %v1330
        %v1332 = vpop.f32.mrf.mxu0
        %1333 = vdwg.mxu0
        %v1334 = vadd.f32 %v592, %v1272
        %v1335 = vadd.f32 %v593, %v1275
        %v1336 = vadd.f32 %v594, %v1280
        %v1337 = vadd.f32 %v595, %v1283
        %v1338 = vadd.f32 %v596, %v1288
        %v1339 = vadd.f32 %v597, %v1291
        %v1340 = vadd.f32 %v598, %v1296
        %v1341 = vadd.f32 %v599, %v1299
        %v1342 = vadd.f32 %v600, %v1304
        %v1343 = vadd.f32 %v601, %v1307
        %v1344 = vadd.f32 %v602, %v1312
        %v1345 = vadd.f32 %v603, %v1315
        %v1346 = vadd.f32 %v604, %v1320
        %v1347 = vadd.f32 %v605, %v1323
        %v1348 = vadd.f32 %v606, %v1328
        %v1349 = vadd.f32 %v607, %v1331
        %v1350 = vld [vmem:[%s7] sm:$0x1]
        %v1351 = vld [vmem:[%s8] sm:$0x1]
        %1352 = vadd.xlane.f32.xlu0 %v1334
        %v1353 = vpop.xlane.xlu0 %1352
        %1354 = vadd.xlane.f32.xlu0 %v1335
        %v1355 = vpop.xlane.xlu0 %1354
        %1356 = vadd.xlane.f32.xlu0 %v1336
        %v1357 = vpop.xlane.xlu0 %1356
        %1358 = vadd.xlane.f32.xlu0 %v1337
        %v1359 = vpop.xlane.xlu0 %1358
        %1360 = vadd.xlane.f32.xlu0 %v1338
        %v1361 = vpop.xlane.xlu0 %1360
        %1362 = vadd.xlane.f32.xlu0 %v1339
        %v1363 = vpop.xlane.xlu0 %1362
        %1364 = vadd.xlane.f32.xlu0 %v1340
        %v1365 = vpop.xlane.xlu0 %1364
        %1366 = vadd.xlane.f32.xlu0 %v1341
        %v1367 = vpop.xlane.xlu0 %1366
        %1368 = vadd.xlane.f32.xlu0 %v1342
        %v1369 = vpop.xlane.xlu0 %1368
        %1370 = vadd.xlane.f32.xlu0 %v1343
        %v1371 = vpop.xlane.xlu0 %1370
        %1372 = vadd.xlane.f32.xlu0 %v1344
        %v1373 = vpop.xlane.xlu0 %1372
        %1374 = vadd.xlane.f32.xlu0 %v1345
        %v1375 = vpop.xlane.xlu0 %1374
        %1376 = vadd.xlane.f32.xlu0 %v1346
        %v1377 = vpop.xlane.xlu0 %1376
        %1378 = vadd.xlane.f32.xlu0 %v1347
        %v1379 = vpop.xlane.xlu0 %1378
        %1380 = vadd.xlane.f32.xlu0 %v1348
        %v1381 = vpop.xlane.xlu0 %1380
        %1382 = vadd.xlane.f32.xlu0 %v1349
        %v1383 = vpop.xlane.xlu0 %1382
        %v1384 = vmul.f32 %v1353, %v642
        %v1385 = vmul.f32 %v1355, %v642
        %v1386 = vmul.f32 %v1357, %v642
        %v1387 = vmul.f32 %v1359, %v642
        %v1388 = vmul.f32 %v1361, %v642
        %v1389 = vmul.f32 %v1363, %v642
        %v1390 = vmul.f32 %v1365, %v642
        %v1391 = vmul.f32 %v1367, %v642
        %v1392 = vmul.f32 %v1369, %v642
        %v1393 = vmul.f32 %v1371, %v642
        %v1394 = vmul.f32 %v1373, %v642
        %v1395 = vmul.f32 %v1375, %v642
        %v1396 = vmul.f32 %v1377, %v642
        %v1397 = vmul.f32 %v1379, %v642
        %v1398 = vmul.f32 %v1381, %v642
        %v1399 = vmul.f32 %v1383, %v642
        %v1400 = vsub.f32 %v1334, %v1384
        %v1401 = vsub.f32 %v1335, %v1385
        %v1402 = vsub.f32 %v1336, %v1386
        %v1403 = vsub.f32 %v1337, %v1387
        %v1404 = vsub.f32 %v1338, %v1388
        %v1405 = vsub.f32 %v1339, %v1389
        %v1406 = vsub.f32 %v1340, %v1390
        %v1407 = vsub.f32 %v1341, %v1391
        %v1408 = vsub.f32 %v1342, %v1392
        %v1409 = vsub.f32 %v1343, %v1393
        %v1410 = vsub.f32 %v1344, %v1394
        %v1411 = vsub.f32 %v1345, %v1395
        %v1412 = vsub.f32 %v1346, %v1396
        %v1413 = vsub.f32 %v1347, %v1397
        %v1414 = vsub.f32 %v1348, %v1398
        %v1415 = vsub.f32 %v1349, %v1399
        %v1416 = vmul.f32 %v1400, %v1400
        %v1417 = vmul.f32 %v1401, %v1401
        %v1418 = vmul.f32 %v1402, %v1402
        %v1419 = vmul.f32 %v1403, %v1403
        %v1420 = vmul.f32 %v1404, %v1404
        %v1421 = vmul.f32 %v1405, %v1405
        %v1422 = vmul.f32 %v1406, %v1406
        %v1423 = vmul.f32 %v1407, %v1407
        %v1424 = vmul.f32 %v1408, %v1408
        %v1425 = vmul.f32 %v1409, %v1409
        %v1426 = vmul.f32 %v1410, %v1410
        %v1427 = vmul.f32 %v1411, %v1411
        %v1428 = vmul.f32 %v1412, %v1412
        %v1429 = vmul.f32 %v1413, %v1413
        %v1430 = vmul.f32 %v1414, %v1414
        %v1431 = vmul.f32 %v1415, %v1415
        %1432 = vadd.xlane.f32.xlu0 %v1416
        %v1433 = vpop.xlane.xlu0 %1432
        %1434 = vadd.xlane.f32.xlu0 %v1417
        %v1435 = vpop.xlane.xlu0 %1434
        %1436 = vadd.xlane.f32.xlu0 %v1418
        %v1437 = vpop.xlane.xlu0 %1436
        %1438 = vadd.xlane.f32.xlu0 %v1419
        %v1439 = vpop.xlane.xlu0 %1438
        %1440 = vadd.xlane.f32.xlu0 %v1420
        %v1441 = vpop.xlane.xlu0 %1440
        %1442 = vadd.xlane.f32.xlu0 %v1421
        %v1443 = vpop.xlane.xlu0 %1442
        %1444 = vadd.xlane.f32.xlu0 %v1422
        %v1445 = vpop.xlane.xlu0 %1444
        %1446 = vadd.xlane.f32.xlu0 %v1423
        %v1447 = vpop.xlane.xlu0 %1446
        %1448 = vadd.xlane.f32.xlu0 %v1424
        %v1449 = vpop.xlane.xlu0 %1448
        %1450 = vadd.xlane.f32.xlu0 %v1425
        %v1451 = vpop.xlane.xlu0 %1450
        %1452 = vadd.xlane.f32.xlu0 %v1426
        %v1453 = vpop.xlane.xlu0 %1452
        %1454 = vadd.xlane.f32.xlu0 %v1427
        %v1455 = vpop.xlane.xlu0 %1454
        %1456 = vadd.xlane.f32.xlu0 %v1428
        %v1457 = vpop.xlane.xlu0 %1456
        %1458 = vadd.xlane.f32.xlu0 %v1429
        %v1459 = vpop.xlane.xlu0 %1458
        %1460 = vadd.xlane.f32.xlu0 %v1430
        %v1461 = vpop.xlane.xlu0 %1460
        %1462 = vadd.xlane.f32.xlu0 %v1431
        %v1463 = vpop.xlane.xlu0 %1462
        %v1464 = vmul.f32 %v1433, %v642
        %v1465 = vmul.f32 %v1435, %v642
        %v1466 = vmul.f32 %v1437, %v642
        %v1467 = vmul.f32 %v1439, %v642
        %v1468 = vmul.f32 %v1441, %v642
        %v1469 = vmul.f32 %v1443, %v642
        %v1470 = vmul.f32 %v1445, %v642
        %v1471 = vmul.f32 %v1447, %v642
        %v1472 = vmul.f32 %v1449, %v642
        %v1473 = vmul.f32 %v1451, %v642
        %v1474 = vmul.f32 %v1453, %v642
        %v1475 = vmul.f32 %v1455, %v642
        %v1476 = vmul.f32 %v1457, %v642
        %v1477 = vmul.f32 %v1459, %v642
        %v1478 = vmul.f32 %v1461, %v642
        %v1479 = vmul.f32 %v1463, %v642
        %v1480 = vadd.f32 %v1464, 1e-05
        %v1481 = vadd.f32 %v1465, 1e-05
        %v1482 = vadd.f32 %v1466, 1e-05
        %v1483 = vadd.f32 %v1467, 1e-05
        %v1484 = vadd.f32 %v1468, 1e-05
        %v1485 = vadd.f32 %v1469, 1e-05
        %v1486 = vadd.f32 %v1470, 1e-05
        %v1487 = vadd.f32 %v1471, 1e-05
        %v1488 = vadd.f32 %v1472, 1e-05
        %v1489 = vadd.f32 %v1473, 1e-05
        %v1490 = vadd.f32 %v1474, 1e-05
        %v1491 = vadd.f32 %v1475, 1e-05
        %v1492 = vadd.f32 %v1476, 1e-05
        %v1493 = vadd.f32 %v1477, 1e-05
        %v1494 = vadd.f32 %v1478, 1e-05
        %v1495 = vadd.f32 %v1479, 1e-05
        %v1496 = vrsqrt.pop %v1480
        %v1497 = vrsqrt.pop %v1481
        %v1498 = vrsqrt.pop %v1482
        %v1499 = vrsqrt.pop %v1483
        %v1500 = vrsqrt.pop %v1484
        %v1501 = vrsqrt.pop %v1485
        %v1502 = vrsqrt.pop %v1486
        %v1503 = vrsqrt.pop %v1487
        %v1504 = vrsqrt.pop %v1488
        %v1505 = vrsqrt.pop %v1489
        %v1506 = vrsqrt.pop %v1490
        %v1507 = vrsqrt.pop %v1491
        %v1508 = vrsqrt.pop %v1492
        %v1509 = vrsqrt.pop %v1493
        %v1510 = vrsqrt.pop %v1494
        %v1511 = vrsqrt.pop %v1495
        %v1512 = vmul.f32 %v1400, %v1496
        %v1513 = vmul.f32 %v1401, %v1497
        %v1514 = vmul.f32 %v1402, %v1498
        %v1515 = vmul.f32 %v1403, %v1499
        %v1516 = vmul.f32 %v1404, %v1500
        %v1517 = vmul.f32 %v1405, %v1501
        %v1518 = vmul.f32 %v1406, %v1502
        %v1519 = vmul.f32 %v1407, %v1503
        %v1520 = vmul.f32 %v1408, %v1504
        %v1521 = vmul.f32 %v1409, %v1505
        %v1522 = vmul.f32 %v1410, %v1506
        %v1523 = vmul.f32 %v1411, %v1507
        %v1524 = vmul.f32 %v1412, %v1508
        %v1525 = vmul.f32 %v1413, %v1509
        %v1526 = vmul.f32 %v1414, %v1510
        %v1527 = vmul.f32 %v1415, %v1511
        %v1529 = vlaneseq
        %v1530 = vshrl.u32 %v1529, 7
        %v1531 = vsub.s32 0, %v1530
        %v1532 = vrot.slane %v1350, %v1531
        %v1534 = vmul.f32 %v1512, %v1532
        %v1535 = vmul.f32 %v1513, %v1532
        %v1536 = vmul.f32 %v1514, %v1532
        %v1537 = vmul.f32 %v1515, %v1532
        %v1538 = vmul.f32 %v1516, %v1532
        %v1539 = vmul.f32 %v1517, %v1532
        %v1540 = vmul.f32 %v1518, %v1532
        %v1541 = vmul.f32 %v1519, %v1532
        %v1542 = vmul.f32 %v1520, %v1532
        %v1543 = vmul.f32 %v1521, %v1532
        %v1544 = vmul.f32 %v1522, %v1532
        %v1545 = vmul.f32 %v1523, %v1532
        %v1546 = vmul.f32 %v1524, %v1532
        %v1547 = vmul.f32 %v1525, %v1532
        %v1548 = vmul.f32 %v1526, %v1532
        %v1549 = vmul.f32 %v1527, %v1532
        %v1551 = vlaneseq
        %v1552 = vshrl.u32 %v1551, 7
        %v1553 = vsub.s32 0, %v1552
        %v1554 = vrot.slane %v1351, %v1553
        %v1556 = vadd.f32 %v1534, %v1554
        %v1557 = vadd.f32 %v1535, %v1554
        %v1558 = vadd.f32 %v1536, %v1554
        %v1559 = vadd.f32 %v1537, %v1554
        %v1560 = vadd.f32 %v1538, %v1554
        %v1561 = vadd.f32 %v1539, %v1554
        %v1562 = vadd.f32 %v1540, %v1554
        %v1563 = vadd.f32 %v1541, %v1554
        %v1564 = vadd.f32 %v1542, %v1554
        %v1565 = vadd.f32 %v1543, %v1554
        %v1566 = vadd.f32 %v1544, %v1554
        %v1567 = vadd.f32 %v1545, %v1554
        %v1568 = vadd.f32 %v1546, %v1554
        %v1569 = vadd.f32 %v1547, %v1554
        %v1570 = vadd.f32 %v1548, %v1554
        %v1571 = vadd.f32 %v1549, %v1554
        %v1572 = vpack.c.bf16 %v1557, %v1556
        %v1573 = vpack.c.bf16 %v1559, %v1558
        %v1574 = vpack.c.bf16 %v1561, %v1560
        %v1575 = vpack.c.bf16 %v1563, %v1562
        %v1576 = vpack.c.bf16 %v1565, %v1564
        %v1577 = vpack.c.bf16 %v1567, %v1566
        %v1578 = vpack.c.bf16 %v1569, %v1568
        %v1579 = vpack.c.bf16 %v1571, %v1570
        %v1580 = vld [vmem:[#allocation7] sm:$0xff]
        %v1581 = vld [vmem:[#allocation7 + $0x8] sm:$0xff]
        %v1582 = vld [vmem:[#allocation7 + $0x10] sm:$0xff]
        %v1583 = vld [vmem:[#allocation7 + $0x18] sm:$0xff]
        %v1584 = vld [vmem:[#allocation7 + $0x20] sm:$0xff]
        %v1585 = vld [vmem:[#allocation7 + $0x28] sm:$0xff]
        %v1586 = vld [vmem:[#allocation7 + $0x30] sm:$0xff]
        %v1587 = vld [vmem:[#allocation7 + $0x38] sm:$0xff]
        %v1588 = vld [vmem:[#allocation7 + $0x40] sm:$0xff]
        %v1589 = vld [vmem:[#allocation7 + $0x48] sm:$0xff]
        %v1590 = vld [vmem:[#allocation7 + $0x50] sm:$0xff]
        %v1591 = vld [vmem:[#allocation7 + $0x58] sm:$0xff]
        %v1592 = vld [vmem:[#allocation7 + $0x60] sm:$0xff]
        %v1593 = vld [vmem:[#allocation7 + $0x68] sm:$0xff]
        %v1594 = vld [vmem:[#allocation7 + $0x70] sm:$0xff]
        %v1595 = vld [vmem:[#allocation7 + $0x78] sm:$0xff]
        %v1596 = vld [vmem:[#allocation7 + $0x80] sm:$0xff]
        %v1597 = vld [vmem:[#allocation7 + $0x88] sm:$0xff]
        %v1598 = vld [vmem:[#allocation7 + $0x90] sm:$0xff]
        %v1599 = vld [vmem:[#allocation7 + $0x98] sm:$0xff]
        %v1600 = vld [vmem:[#allocation7 + $0xa0] sm:$0xff]
        %v1601 = vld [vmem:[#allocation7 + $0xa8] sm:$0xff]
        %v1602 = vld [vmem:[#allocation7 + $0xb0] sm:$0xff]
        %v1603 = vld [vmem:[#allocation7 + $0xb8] sm:$0xff]
        %v1604 = vld [vmem:[#allocation7 + $0xc0] sm:$0xff]
        %v1605 = vld [vmem:[#allocation7 + $0xc8] sm:$0xff]
        %v1606 = vld [vmem:[#allocation7 + $0xd0] sm:$0xff]
        %v1607 = vld [vmem:[#allocation7 + $0xd8] sm:$0xff]
        %v1608 = vld [vmem:[#allocation7 + $0xe0] sm:$0xff]
        %v1609 = vld [vmem:[#allocation7 + $0xe8] sm:$0xff]
        %v1610 = vld [vmem:[#allocation7 + $0xf0] sm:$0xff]
        %v1611 = vld [vmem:[#allocation7 + $0xf8] sm:$0xff]
        %v1612 = vld [vmem:[%s10] sm:$0xf]
        %v1614 = vlaneseq
        %v1615 = vshrl.u32 %v1614, 7
        %v1616 = vsub.s32 0, %v1615
        %v1617 = vrot.slane %v1612, %v1616
        %v1618 = vlaneseq
        %v1619 = vshrl.u32 %v1618, 7
        %v1620 = vsub.s32 1, %v1619
        %v1621 = vrot.slane %v1612, %v1620
        %v1622 = vlaneseq
        %v1623 = vshrl.u32 %v1622, 7
        %v1624 = vsub.s32 2, %v1623
        %v1625 = vrot.slane %v1612, %v1624
        %v1626 = vlaneseq
        %v1627 = vshrl.u32 %v1626, 7
        %v1628 = vsub.s32 3, %v1627
        %v1629 = vrot.slane %v1612, %v1628
        %v1666 = vunpack.c.l.b16 %v1580
        %v1667 = vunpack.c.h.b16 %v1580
        %v1668 = vunpack.c.l.b16 %v1581
        %v1669 = vunpack.c.h.b16 %v1581
        %v1670 = vunpack.c.l.b16 %v1582
        %v1671 = vunpack.c.h.b16 %v1582
        %v1672 = vunpack.c.l.b16 %v1583
        %v1673 = vunpack.c.h.b16 %v1583
        %v1674 = vunpack.c.l.b16 %v1584
        %v1675 = vunpack.c.h.b16 %v1584
        %v1676 = vunpack.c.l.b16 %v1585
        %v1677 = vunpack.c.h.b16 %v1585
        %v1678 = vunpack.c.l.b16 %v1586
        %v1679 = vunpack.c.h.b16 %v1586
        %v1680 = vunpack.c.l.b16 %v1587
        %v1681 = vunpack.c.h.b16 %v1587
        %v1682 = vunpack.c.l.b16 %v1588
        %v1683 = vunpack.c.h.b16 %v1588
        %v1684 = vunpack.c.l.b16 %v1589
        %v1685 = vunpack.c.h.b16 %v1589
        %v1686 = vunpack.c.l.b16 %v1590
        %v1687 = vunpack.c.h.b16 %v1590
        %v1688 = vunpack.c.l.b16 %v1591
        %v1689 = vunpack.c.h.b16 %v1591
        %v1690 = vunpack.c.l.b16 %v1592
        %v1691 = vunpack.c.h.b16 %v1592
        %v1692 = vunpack.c.l.b16 %v1593
        %v1693 = vunpack.c.h.b16 %v1593
        %v1694 = vunpack.c.l.b16 %v1594
        %v1695 = vunpack.c.h.b16 %v1594
        %v1696 = vunpack.c.l.b16 %v1595
        %v1697 = vunpack.c.h.b16 %v1595
        %v1698 = vunpack.c.l.b16 %v1596
        %v1699 = vunpack.c.h.b16 %v1596
        %v1700 = vunpack.c.l.b16 %v1597
        %v1701 = vunpack.c.h.b16 %v1597
        %v1702 = vunpack.c.l.b16 %v1598
        %v1703 = vunpack.c.h.b16 %v1598
        %v1704 = vunpack.c.l.b16 %v1599
        %v1705 = vunpack.c.h.b16 %v1599
        %v1706 = vunpack.c.l.b16 %v1600
        %v1707 = vunpack.c.h.b16 %v1600
        %v1708 = vunpack.c.l.b16 %v1601
        %v1709 = vunpack.c.h.b16 %v1601
        %v1710 = vunpack.c.l.b16 %v1602
        %v1711 = vunpack.c.h.b16 %v1602
        %v1712 = vunpack.c.l.b16 %v1603
        %v1713 = vunpack.c.h.b16 %v1603
        %v1714 = vunpack.c.l.b16 %v1604
        %v1715 = vunpack.c.h.b16 %v1604
        %v1716 = vunpack.c.l.b16 %v1605
        %v1717 = vunpack.c.h.b16 %v1605
        %v1718 = vunpack.c.l.b16 %v1606
        %v1719 = vunpack.c.h.b16 %v1606
        %v1720 = vunpack.c.l.b16 %v1607
        %v1721 = vunpack.c.h.b16 %v1607
        %v1722 = vunpack.c.l.b16 %v1608
        %v1723 = vunpack.c.h.b16 %v1608
        %v1724 = vunpack.c.l.b16 %v1609
        %v1725 = vunpack.c.h.b16 %v1609
        %v1726 = vunpack.c.l.b16 %v1610
        %v1727 = vunpack.c.h.b16 %v1610
        %v1728 = vunpack.c.l.b16 %v1611
        %v1729 = vunpack.c.h.b16 %v1611
        %v1730 = vpack.c.b16 %v1670, %v1666
        %v1731 = vpack.c.b16 %v1671, %v1667
        %v1732 = vpack.c.b16 %v1672, %v1668
        %v1733 = vpack.c.b16 %v1673, %v1669
        %v1734 = vpack.c.b16 %v1678, %v1674
        %v1735 = vpack.c.b16 %v1679, %v1675
        %v1736 = vpack.c.b16 %v1680, %v1676
        %v1737 = vpack.c.b16 %v1681, %v1677
        %v1738 = vpack.c.b16 %v1686, %v1682
        %v1739 = vpack.c.b16 %v1687, %v1683
        %v1740 = vpack.c.b16 %v1688, %v1684
        %v1741 = vpack.c.b16 %v1689, %v1685
        %v1742 = vpack.c.b16 %v1694, %v1690
        %v1743 = vpack.c.b16 %v1695, %v1691
        %v1744 = vpack.c.b16 %v1696, %v1692
        %v1745 = vpack.c.b16 %v1697, %v1693
        %v1746 = vpack.c.b16 %v1702, %v1698
        %v1747 = vpack.c.b16 %v1703, %v1699
        %v1748 = vpack.c.b16 %v1704, %v1700
        %v1749 = vpack.c.b16 %v1705, %v1701
        %v1750 = vpack.c.b16 %v1710, %v1706
        %v1751 = vpack.c.b16 %v1711, %v1707
        %v1752 = vpack.c.b16 %v1712, %v1708
        %v1753 = vpack.c.b16 %v1713, %v1709
        %v1754 = vpack.c.b16 %v1718, %v1714
        %v1755 = vpack.c.b16 %v1719, %v1715
        %v1756 = vpack.c.b16 %v1720, %v1716
        %v1757 = vpack.c.b16 %v1721, %v1717
        %v1758 = vpack.c.b16 %v1726, %v1722
        %v1759 = vpack.c.b16 %v1727, %v1723
        %v1760 = vpack.c.b16 %v1728, %v1724
        %v1761 = vpack.c.b16 %v1729, %v1725
        %1794 = vmatprep.subr.bf16.mxu0 %v1759
        %1795 = vmatpush1.bf16.msra.mxu0 %v1758
        %1796 = vmatprep.subr.bf16.mxu0 %v1755
        %1797 = vmatpush1.bf16.msra.mxu0 %v1754
        %1798 = vmatprep.subr.bf16.mxu0 %v1751
        %1799 = vmatpush1.bf16.msra.mxu0 %v1750
        %1800 = vmatprep.subr.bf16.mxu0 %v1747
        %1801 = vmatpush1.bf16.msra.mxu0 %v1746
        %1802 = vmatprep.subr.bf16.mxu0 %v1743
        %1803 = vmatpush1.bf16.msra.mxu0 %v1742
        %1804 = vmatprep.subr.bf16.mxu0 %v1739
        %1805 = vmatpush1.bf16.msra.mxu0 %v1738
        %1806 = vmatprep.subr.bf16.mxu0 %v1735
        %1807 = vmatpush1.bf16.msra.mxu0 %v1734
        %1808 = vmatprep.subr.bf16.mxu0 %v1731
        %1809 = vmatpush1.bf16.msra.mxu0 %v1730
        %1810 = vmatprep.subr.bf16.mxu0 0
        %1811 = vmatpush2.bf16.msra.mxu0 0
        %1812 = vmatprep.subr.bf16.mxu0 0
        %1813 = vmatpush2.bf16.msra.mxu0 0
        %1814 = vmatprep.subr.bf16.mxu0 0
        %1815 = vmatpush2.bf16.msra.mxu0 0
        %1816 = vmatprep.subr.bf16.mxu0 0
        %1817 = vmatpush2.bf16.msra.mxu0 0
        %1818 = vmatprep.subr.bf16.mxu0 0
        %1819 = vmatpush2.bf16.msra.mxu0 0
        %1820 = vmatprep.subr.bf16.mxu0 0
        %1821 = vmatpush2.bf16.msra.mxu0 0
        %1822 = vmatprep.subr.bf16.mxu0 0
        %1823 = vmatpush2.bf16.msra.mxu0 0
        %1824 = vmatprep.subr.bf16.mxu0 0
        %1825 = vmatpush2.bf16.msra.mxu0 0
        %1826 = vmatprep.mubr.bf16.mxu0 0
        %1827 = vmatmul.mubr.bf16.gmra.mxu0 %v1572
        %v1828 = vpop.f32.mrf.mxu0
        %v1829 = vadd.f32 %v1617, %v1828
        %v1830 = vpop.f32.mrf.mxu0
        %v1831 = vadd.f32 %v1621, %v1830
        %v1832 = vpop.f32.mrf.mxu0
        %v1833 = vadd.f32 %v1617, %v1832
        %v1834 = vpop.f32.mrf.mxu0
        %v1835 = vadd.f32 %v1621, %v1834
        %1836 = vmatprep.mubr.bf16.mxu0 0
        %1837 = vmatmul.mubr.bf16.gmra.mxu0 %v1573
        %v1838 = vpop.f32.mrf.mxu0
        %v1839 = vadd.f32 %v1617, %v1838
        %v1840 = vpop.f32.mrf.mxu0
        %v1841 = vadd.f32 %v1621, %v1840
        %v1842 = vpop.f32.mrf.mxu0
        %v1843 = vadd.f32 %v1617, %v1842
        %v1844 = vpop.f32.mrf.mxu0
        %v1845 = vadd.f32 %v1621, %v1844
        %1846 = vmatprep.mubr.bf16.mxu0 0
        %1847 = vmatmul.mubr.bf16.gmra.mxu0 %v1574
        %v1848 = vpop.f32.mrf.mxu0
        %v1849 = vadd.f32 %v1617, %v1848
        %v1850 = vpop.f32.mrf.mxu0
        %v1851 = vadd.f32 %v1621, %v1850
        %v1852 = vpop.f32.mrf.mxu0
        %v1853 = vadd.f32 %v1617, %v1852
        %v1854 = vpop.f32.mrf.mxu0
        %v1855 = vadd.f32 %v1621, %v1854
        %1856 = vmatprep.mubr.bf16.mxu0 0
        %1857 = vmatmul.mubr.bf16.gmra.mxu0 %v1575
        %v1858 = vpop.f32.mrf.mxu0
        %v1859 = vadd.f32 %v1617, %v1858
        %v1860 = vpop.f32.mrf.mxu0
        %v1861 = vadd.f32 %v1621, %v1860
        %v1862 = vpop.f32.mrf.mxu0
        %v1863 = vadd.f32 %v1617, %v1862
        %v1864 = vpop.f32.mrf.mxu0
        %v1865 = vadd.f32 %v1621, %v1864
        %1866 = vmatprep.mubr.bf16.mxu0 0
        %1867 = vmatmul.mubr.bf16.gmra.mxu0 %v1576
        %v1868 = vpop.f32.mrf.mxu0
        %v1869 = vadd.f32 %v1617, %v1868
        %v1870 = vpop.f32.mrf.mxu0
        %v1871 = vadd.f32 %v1621, %v1870
        %v1872 = vpop.f32.mrf.mxu0
        %v1873 = vadd.f32 %v1617, %v1872
        %v1874 = vpop.f32.mrf.mxu0
        %v1875 = vadd.f32 %v1621, %v1874
        %1876 = vmatprep.mubr.bf16.mxu0 0
        %1877 = vmatmul.mubr.bf16.gmra.mxu0 %v1577
        %v1878 = vpop.f32.mrf.mxu0
        %v1879 = vadd.f32 %v1617, %v1878
        %v1880 = vpop.f32.mrf.mxu0
        %v1881 = vadd.f32 %v1621, %v1880
        %v1882 = vpop.f32.mrf.mxu0
        %v1883 = vadd.f32 %v1617, %v1882
        %v1884 = vpop.f32.mrf.mxu0
        %v1885 = vadd.f32 %v1621, %v1884
        %1886 = vmatprep.mubr.bf16.mxu0 0
        %1887 = vmatmul.mubr.bf16.gmra.mxu0 %v1578
        %v1888 = vpop.f32.mrf.mxu0
        %v1889 = vadd.f32 %v1617, %v1888
        %v1890 = vpop.f32.mrf.mxu0
        %v1891 = vadd.f32 %v1621, %v1890
        %v1892 = vpop.f32.mrf.mxu0
        %v1893 = vadd.f32 %v1617, %v1892
        %v1894 = vpop.f32.mrf.mxu0
        %v1895 = vadd.f32 %v1621, %v1894
        %1896 = vmatprep.mubr.bf16.mxu0 0
        %1897 = vmatmul.mubr.bf16.gmra.mxu0 %v1579
        %v1898 = vpop.f32.mrf.mxu0
        %v1899 = vadd.f32 %v1617, %v1898
        %v1900 = vpop.f32.mrf.mxu0
        %v1901 = vadd.f32 %v1621, %v1900
        %v1902 = vpop.f32.mrf.mxu0
        %v1903 = vadd.f32 %v1617, %v1902
        %v1904 = vpop.f32.mrf.mxu0
        %v1905 = vadd.f32 %v1621, %v1904
        %1906 = vdwg.mxu0
        %1907 = vmatprep.subr.bf16.mxu0 %v1761
        %1908 = vmatpush1.bf16.msra.mxu0 %v1760
        %1909 = vmatprep.subr.bf16.mxu0 %v1757
        %1910 = vmatpush1.bf16.msra.mxu0 %v1756
        %1911 = vmatprep.subr.bf16.mxu0 %v1753
        %1912 = vmatpush1.bf16.msra.mxu0 %v1752
        %1913 = vmatprep.subr.bf16.mxu0 %v1749
        %1914 = vmatpush1.bf16.msra.mxu0 %v1748
        %1915 = vmatprep.subr.bf16.mxu0 %v1745
        %1916 = vmatpush1.bf16.msra.mxu0 %v1744
        %1917 = vmatprep.subr.bf16.mxu0 %v1741
        %1918 = vmatpush1.bf16.msra.mxu0 %v1740
        %1919 = vmatprep.subr.bf16.mxu0 %v1737
        %1920 = vmatpush1.bf16.msra.mxu0 %v1736
        %1921 = vmatprep.subr.bf16.mxu0 %v1733
        %1922 = vmatpush1.bf16.msra.mxu0 %v1732
        %1923 = vmatprep.subr.bf16.mxu0 0
        %1924 = vmatpush2.bf16.msra.mxu0 0
        %1925 = vmatprep.subr.bf16.mxu0 0
        %1926 = vmatpush2.bf16.msra.mxu0 0
        %1927 = vmatprep.subr.bf16.mxu0 0
        %1928 = vmatpush2.bf16.msra.mxu0 0
        %1929 = vmatprep.subr.bf16.mxu0 0
        %1930 = vmatpush2.bf16.msra.mxu0 0
        %1931 = vmatprep.subr.bf16.mxu0 0
        %1932 = vmatpush2.bf16.msra.mxu0 0
        %1933 = vmatprep.subr.bf16.mxu0 0
        %1934 = vmatpush2.bf16.msra.mxu0 0
        %1935 = vmatprep.subr.bf16.mxu0 0
        %1936 = vmatpush2.bf16.msra.mxu0 0
        %1937 = vmatprep.subr.bf16.mxu0 0
        %1938 = vmatpush2.bf16.msra.mxu0 0
        %1939 = vmatprep.mubr.bf16.mxu0 0
        %1940 = vmatmul.mubr.bf16.gmra.mxu0 %v1572
        %v1941 = vpop.f32.mrf.mxu0
        %v1942 = vadd.f32 %v1625, %v1941
        %v1943 = vpop.f32.mrf.mxu0
        %v1944 = vadd.f32 %v1629, %v1943
        %v1945 = vpop.f32.mrf.mxu0
        %v1946 = vadd.f32 %v1625, %v1945
        %v1947 = vpop.f32.mrf.mxu0
        %v1948 = vadd.f32 %v1629, %v1947
        %1949 = vmatprep.mubr.bf16.mxu0 0
        %1950 = vmatmul.mubr.bf16.gmra.mxu0 %v1573
        %v1951 = vpop.f32.mrf.mxu0
        %v1952 = vadd.f32 %v1625, %v1951
        %v1953 = vpop.f32.mrf.mxu0
        %v1954 = vadd.f32 %v1629, %v1953
        %v1955 = vpop.f32.mrf.mxu0
        %v1956 = vadd.f32 %v1625, %v1955
        %v1957 = vpop.f32.mrf.mxu0
        %v1958 = vadd.f32 %v1629, %v1957
        %1959 = vmatprep.mubr.bf16.mxu0 0
        %1960 = vmatmul.mubr.bf16.gmra.mxu0 %v1574
        %v1961 = vpop.f32.mrf.mxu0
        %v1962 = vadd.f32 %v1625, %v1961
        %v1963 = vpop.f32.mrf.mxu0
        %v1964 = vadd.f32 %v1629, %v1963
        %v1965 = vpop.f32.mrf.mxu0
        %v1966 = vadd.f32 %v1625, %v1965
        %v1967 = vpop.f32.mrf.mxu0
        %v1968 = vadd.f32 %v1629, %v1967
        %1969 = vmatprep.mubr.bf16.mxu0 0
        %1970 = vmatmul.mubr.bf16.gmra.mxu0 %v1575
        %v1971 = vpop.f32.mrf.mxu0
        %v1972 = vadd.f32 %v1625, %v1971
        %v1973 = vpop.f32.mrf.mxu0
        %v1974 = vadd.f32 %v1629, %v1973
        %v1975 = vpop.f32.mrf.mxu0
        %v1976 = vadd.f32 %v1625, %v1975
        %v1977 = vpop.f32.mrf.mxu0
        %v1978 = vadd.f32 %v1629, %v1977
        %1979 = vmatprep.mubr.bf16.mxu0 0
        %1980 = vmatmul.mubr.bf16.gmra.mxu0 %v1576
        %v1981 = vpop.f32.mrf.mxu0
        %v1982 = vadd.f32 %v1625, %v1981
        %v1983 = vpop.f32.mrf.mxu0
        %v1984 = vadd.f32 %v1629, %v1983
        %v1985 = vpop.f32.mrf.mxu0
        %v1986 = vadd.f32 %v1625, %v1985
        %v1987 = vpop.f32.mrf.mxu0
        %v1988 = vadd.f32 %v1629, %v1987
        %1989 = vmatprep.mubr.bf16.mxu0 0
        %1990 = vmatmul.mubr.bf16.gmra.mxu0 %v1577
        %v1991 = vpop.f32.mrf.mxu0
        %v1992 = vadd.f32 %v1625, %v1991
        %v1993 = vpop.f32.mrf.mxu0
        %v1994 = vadd.f32 %v1629, %v1993
        %v1995 = vpop.f32.mrf.mxu0
        %v1996 = vadd.f32 %v1625, %v1995
        %v1997 = vpop.f32.mrf.mxu0
        %v1998 = vadd.f32 %v1629, %v1997
        %1999 = vmatprep.mubr.bf16.mxu0 0
        %2000 = vmatmul.mubr.bf16.gmra.mxu0 %v1578
        %v2001 = vpop.f32.mrf.mxu0
        %v2002 = vadd.f32 %v1625, %v2001
        %v2003 = vpop.f32.mrf.mxu0
        %v2004 = vadd.f32 %v1629, %v2003
        %v2005 = vpop.f32.mrf.mxu0
        %v2006 = vadd.f32 %v1625, %v2005
        %v2007 = vpop.f32.mrf.mxu0
        %v2008 = vadd.f32 %v1629, %v2007
        %2009 = vmatprep.mubr.bf16.mxu0 0
        %2010 = vmatmul.mubr.bf16.gmra.mxu0 %v1579
        %v2011 = vpop.f32.mrf.mxu0
        %v2012 = vadd.f32 %v1625, %v2011
        %v2013 = vpop.f32.mrf.mxu0
        %v2014 = vadd.f32 %v1629, %v2013
        %v2015 = vpop.f32.mrf.mxu0
        %v2016 = vadd.f32 %v1625, %v2015
        %v2017 = vpop.f32.mrf.mxu0
        %v2018 = vadd.f32 %v1629, %v2017
        %2019 = vdwg.mxu0
        %v2020 = vmul.f32 %v1829, %v1829
        %v2021 = vmul.f32 %v1831, %v1831
        %v2022 = vmul.f32 %v1942, %v1942
        %v2023 = vmul.f32 %v1944, %v1944
        %v2024 = vmul.f32 %v1833, %v1833
        %v2025 = vmul.f32 %v1835, %v1835
        %v2026 = vmul.f32 %v1946, %v1946
        %v2027 = vmul.f32 %v1948, %v1948
        %v2028 = vmul.f32 %v1839, %v1839
        %v2029 = vmul.f32 %v1841, %v1841
        %v2030 = vmul.f32 %v1952, %v1952
        %v2031 = vmul.f32 %v1954, %v1954
        %v2032 = vmul.f32 %v1843, %v1843
        %v2033 = vmul.f32 %v1845, %v1845
        %v2034 = vmul.f32 %v1956, %v1956
        %v2035 = vmul.f32 %v1958, %v1958
        %v2036 = vmul.f32 %v1849, %v1849
        %v2037 = vmul.f32 %v1851, %v1851
        %v2038 = vmul.f32 %v1962, %v1962
        %v2039 = vmul.f32 %v1964, %v1964
        %v2040 = vmul.f32 %v1853, %v1853
        %v2041 = vmul.f32 %v1855, %v1855
        %v2042 = vmul.f32 %v1966, %v1966
        %v2043 = vmul.f32 %v1968, %v1968
        %v2044 = vmul.f32 %v1859, %v1859
        %v2045 = vmul.f32 %v1861, %v1861
        %v2046 = vmul.f32 %v1972, %v1972
        %v2047 = vmul.f32 %v1974, %v1974
        %v2048 = vmul.f32 %v1863, %v1863
        %v2049 = vmul.f32 %v1865, %v1865
        %v2050 = vmul.f32 %v1976, %v1976
        %v2051 = vmul.f32 %v1978, %v1978
        %v2052 = vmul.f32 %v1869, %v1869
        %v2053 = vmul.f32 %v1871, %v1871
        %v2054 = vmul.f32 %v1982, %v1982
        %v2055 = vmul.f32 %v1984, %v1984
        %v2056 = vmul.f32 %v1873, %v1873
        %v2057 = vmul.f32 %v1875, %v1875
        %v2058 = vmul.f32 %v1986, %v1986
        %v2059 = vmul.f32 %v1988, %v1988
        %v2060 = vmul.f32 %v1879, %v1879
        %v2061 = vmul.f32 %v1881, %v1881
        %v2062 = vmul.f32 %v1992, %v1992
        %v2063 = vmul.f32 %v1994, %v1994
        %v2064 = vmul.f32 %v1883, %v1883
        %v2065 = vmul.f32 %v1885, %v1885
        %v2066 = vmul.f32 %v1996, %v1996
        %v2067 = vmul.f32 %v1998, %v1998
        %v2068 = vmul.f32 %v1889, %v1889
        %v2069 = vmul.f32 %v1891, %v1891
        %v2070 = vmul.f32 %v2002, %v2002
        %v2071 = vmul.f32 %v2004, %v2004
        %v2072 = vmul.f32 %v1893, %v1893
        %v2073 = vmul.f32 %v1895, %v1895
        %v2074 = vmul.f32 %v2006, %v2006
        %v2075 = vmul.f32 %v2008, %v2008
        %v2076 = vmul.f32 %v1899, %v1899
        %v2077 = vmul.f32 %v1901, %v1901
        %v2078 = vmul.f32 %v2012, %v2012
        %v2079 = vmul.f32 %v2014, %v2014
        %v2080 = vmul.f32 %v1903, %v1903
        %v2081 = vmul.f32 %v1905, %v1905
        %v2082 = vmul.f32 %v2016, %v2016
        %v2083 = vmul.f32 %v2018, %v2018
        %v2084 = vmul.f32 %v1829, %v2020
        %v2085 = vmul.f32 %v1831, %v2021
        %v2086 = vmul.f32 %v1942, %v2022
        %v2087 = vmul.f32 %v1944, %v2023
        %v2088 = vmul.f32 %v1833, %v2024
        %v2089 = vmul.f32 %v1835, %v2025
        %v2090 = vmul.f32 %v1946, %v2026
        %v2091 = vmul.f32 %v1948, %v2027
        %v2092 = vmul.f32 %v1839, %v2028
        %v2093 = vmul.f32 %v1841, %v2029
        %v2094 = vmul.f32 %v1952, %v2030
        %v2095 = vmul.f32 %v1954, %v2031
        %v2096 = vmul.f32 %v1843, %v2032
        %v2097 = vmul.f32 %v1845, %v2033
        %v2098 = vmul.f32 %v1956, %v2034
        %v2099 = vmul.f32 %v1958, %v2035
        %v2100 = vmul.f32 %v1849, %v2036
        %v2101 = vmul.f32 %v1851, %v2037
        %v2102 = vmul.f32 %v1962, %v2038
        %v2103 = vmul.f32 %v1964, %v2039
        %v2104 = vmul.f32 %v1853, %v2040
        %v2105 = vmul.f32 %v1855, %v2041
        %v2106 = vmul.f32 %v1966, %v2042
        %v2107 = vmul.f32 %v1968, %v2043
        %v2108 = vmul.f32 %v1859, %v2044
        %v2109 = vmul.f32 %v1861, %v2045
        %v2110 = vmul.f32 %v1972, %v2046
        %v2111 = vmul.f32 %v1974, %v2047
        %v2112 = vmul.f32 %v1863, %v2048
        %v2113 = vmul.f32 %v1865, %v2049
        %v2114 = vmul.f32 %v1976, %v2050
        %v2115 = vmul.f32 %v1978, %v2051
        %v2116 = vmul.f32 %v1869, %v2052
        %v2117 = vmul.f32 %v1871, %v2053
        %v2118 = vmul.f32 %v1982, %v2054
        %v2119 = vmul.f32 %v1984, %v2055
        %v2120 = vmul.f32 %v1873, %v2056
        %v2121 = vmul.f32 %v1875, %v2057
        %v2122 = vmul.f32 %v1986, %v2058
        %v2123 = vmul.f32 %v1988, %v2059
        %v2124 = vmul.f32 %v1879, %v2060
        %v2125 = vmul.f32 %v1881, %v2061
        %v2126 = vmul.f32 %v1992, %v2062
        %v2127 = vmul.f32 %v1994, %v2063
        %v2128 = vmul.f32 %v1883, %v2064
        %v2129 = vmul.f32 %v1885, %v2065
        %v2130 = vmul.f32 %v1996, %v2066
        %v2131 = vmul.f32 %v1998, %v2067
        %v2132 = vmul.f32 %v1889, %v2068
        %v2133 = vmul.f32 %v1891, %v2069
        %v2134 = vmul.f32 %v2002, %v2070
        %v2135 = vmul.f32 %v2004, %v2071
        %v2136 = vmul.f32 %v1893, %v2072
        %v2137 = vmul.f32 %v1895, %v2073
        %v2138 = vmul.f32 %v2006, %v2074
        %v2139 = vmul.f32 %v2008, %v2075
        %v2140 = vmul.f32 %v1899, %v2076
        %v2141 = vmul.f32 %v1901, %v2077
        %v2142 = vmul.f32 %v2012, %v2078
        %v2143 = vmul.f32 %v2014, %v2079
        %v2144 = vmul.f32 %v1903, %v2080
        %v2145 = vmul.f32 %v1905, %v2081
        %v2146 = vmul.f32 %v2016, %v2082
        %v2147 = vmul.f32 %v2018, %v2083
        %v2148 = vmul.f32 %v2084, 0.044715
        %v2149 = vmul.f32 %v2085, 0.044715
        %v2150 = vmul.f32 %v2086, 0.044715
        %v2151 = vmul.f32 %v2087, 0.044715
        %v2152 = vmul.f32 %v2088, 0.044715
        %v2153 = vmul.f32 %v2089, 0.044715
        %v2154 = vmul.f32 %v2090, 0.044715
        %v2155 = vmul.f32 %v2091, 0.044715
        %v2156 = vmul.f32 %v2092, 0.044715
        %v2157 = vmul.f32 %v2093, 0.044715
        %v2158 = vmul.f32 %v2094, 0.044715
        %v2159 = vmul.f32 %v2095, 0.044715
        %v2160 = vmul.f32 %v2096, 0.044715
        %v2161 = vmul.f32 %v2097, 0.044715
        %v2162 = vmul.f32 %v2098, 0.044715
        %v2163 = vmul.f32 %v2099, 0.044715
        %v2164 = vmul.f32 %v2100, 0.044715
        %v2165 = vmul.f32 %v2101, 0.044715
        %v2166 = vmul.f32 %v2102, 0.044715
        %v2167 = vmul.f32 %v2103, 0.044715
        %v2168 = vmul.f32 %v2104, 0.044715
        %v2169 = vmul.f32 %v2105, 0.044715
        %v2170 = vmul.f32 %v2106, 0.044715
        %v2171 = vmul.f32 %v2107, 0.044715
        %v2172 = vmul.f32 %v2108, 0.044715
        %v2173 = vmul.f32 %v2109, 0.044715
        %v2174 = vmul.f32 %v2110, 0.044715
        %v2175 = vmul.f32 %v2111, 0.044715
        %v2176 = vmul.f32 %v2112, 0.044715
        %v2177 = vmul.f32 %v2113, 0.044715
        %v2178 = vmul.f32 %v2114, 0.044715
        %v2179 = vmul.f32 %v2115, 0.044715
        %v2180 = vmul.f32 %v2116, 0.044715
        %v2181 = vmul.f32 %v2117, 0.044715
        %v2182 = vmul.f32 %v2118, 0.044715
        %v2183 = vmul.f32 %v2119, 0.044715
        %v2184 = vmul.f32 %v2120, 0.044715
        %v2185 = vmul.f32 %v2121, 0.044715
        %v2186 = vmul.f32 %v2122, 0.044715
        %v2187 = vmul.f32 %v2123, 0.044715
        %v2188 = vmul.f32 %v2124, 0.044715
        %v2189 = vmul.f32 %v2125, 0.044715
        %v2190 = vmul.f32 %v2126, 0.044715
        %v2191 = vmul.f32 %v2127, 0.044715
        %v2192 = vmul.f32 %v2128, 0.044715
        %v2193 = vmul.f32 %v2129, 0.044715
        %v2194 = vmul.f32 %v2130, 0.044715
        %v2195 = vmul.f32 %v2131, 0.044715
        %v2196 = vmul.f32 %v2132, 0.044715
        %v2197 = vmul.f32 %v2133, 0.044715
        %v2198 = vmul.f32 %v2134, 0.044715
        %v2199 = vmul.f32 %v2135, 0.044715
        %v2200 = vmul.f32 %v2136, 0.044715
        %v2201 = vmul.f32 %v2137, 0.044715
        %v2202 = vmul.f32 %v2138, 0.044715
        %v2203 = vmul.f32 %v2139, 0.044715
        %v2204 = vmul.f32 %v2140, 0.044715
        %v2205 = vmul.f32 %v2141, 0.044715
        %v2206 = vmul.f32 %v2142, 0.044715
        %v2207 = vmul.f32 %v2143, 0.044715
        %v2208 = vmul.f32 %v2144, 0.044715
        %v2209 = vmul.f32 %v2145, 0.044715
        %v2210 = vmul.f32 %v2146, 0.044715
        %v2211 = vmul.f32 %v2147, 0.044715
        %v2212 = vadd.f32 %v1829, %v2148
        %v2213 = vadd.f32 %v1831, %v2149
        %v2214 = vadd.f32 %v1942, %v2150
        %v2215 = vadd.f32 %v1944, %v2151
        %v2216 = vadd.f32 %v1833, %v2152
        %v2217 = vadd.f32 %v1835, %v2153
        %v2218 = vadd.f32 %v1946, %v2154
        %v2219 = vadd.f32 %v1948, %v2155
        %v2220 = vadd.f32 %v1839, %v2156
        %v2221 = vadd.f32 %v1841, %v2157
        %v2222 = vadd.f32 %v1952, %v2158
        %v2223 = vadd.f32 %v1954, %v2159
        %v2224 = vadd.f32 %v1843, %v2160
        %v2225 = vadd.f32 %v1845, %v2161
        %v2226 = vadd.f32 %v1956, %v2162
        %v2227 = vadd.f32 %v1958, %v2163
        %v2228 = vadd.f32 %v1849, %v2164
        %v2229 = vadd.f32 %v1851, %v2165
        %v2230 = vadd.f32 %v1962, %v2166
        %v2231 = vadd.f32 %v1964, %v2167
        %v2232 = vadd.f32 %v1853, %v2168
        %v2233 = vadd.f32 %v1855, %v2169
        %v2234 = vadd.f32 %v1966, %v2170
        %v2235 = vadd.f32 %v1968, %v2171
        %v2236 = vadd.f32 %v1859, %v2172
        %v2237 = vadd.f32 %v1861, %v2173
        %v2238 = vadd.f32 %v1972, %v2174
        %v2239 = vadd.f32 %v1974, %v2175
        %v2240 = vadd.f32 %v1863, %v2176
        %v2241 = vadd.f32 %v1865, %v2177
        %v2242 = vadd.f32 %v1976, %v2178
        %v2243 = vadd.f32 %v1978, %v2179
        %v2244 = vadd.f32 %v1869, %v2180
        %v2245 = vadd.f32 %v1871, %v2181
        %v2246 = vadd.f32 %v1982, %v2182
        %v2247 = vadd.f32 %v1984, %v2183
        %v2248 = vadd.f32 %v1873, %v2184
        %v2249 = vadd.f32 %v1875, %v2185
        %v2250 = vadd.f32 %v1986, %v2186
        %v2251 = vadd.f32 %v1988, %v2187
        %v2252 = vadd.f32 %v1879, %v2188
        %v2253 = vadd.f32 %v1881, %v2189
        %v2254 = vadd.f32 %v1992, %v2190
        %v2255 = vadd.f32 %v1994, %v2191
        %v2256 = vadd.f32 %v1883, %v2192
        %v2257 = vadd.f32 %v1885, %v2193
        %v2258 = vadd.f32 %v1996, %v2194
        %v2259 = vadd.f32 %v1998, %v2195
        %v2260 = vadd.f32 %v1889, %v2196
        %v2261 = vadd.f32 %v1891, %v2197
        %v2262 = vadd.f32 %v2002, %v2198
        %v2263 = vadd.f32 %v2004, %v2199
        %v2264 = vadd.f32 %v1893, %v2200
        %v2265 = vadd.f32 %v1895, %v2201
        %v2266 = vadd.f32 %v2006, %v2202
        %v2267 = vadd.f32 %v2008, %v2203
        %v2268 = vadd.f32 %v1899, %v2204
        %v2269 = vadd.f32 %v1901, %v2205
        %v2270 = vadd.f32 %v2012, %v2206
        %v2271 = vadd.f32 %v2014, %v2207
        %v2272 = vadd.f32 %v1903, %v2208
        %v2273 = vadd.f32 %v1905, %v2209
        %v2274 = vadd.f32 %v2016, %v2210
        %v2275 = vadd.f32 %v2018, %v2211
        %v2276 = vmul.f32 %v2212, 0.7978846
        %v2277 = vmul.f32 %v2213, 0.7978846
        %v2278 = vmul.f32 %v2214, 0.7978846
        %v2279 = vmul.f32 %v2215, 0.7978846
        %v2280 = vmul.f32 %v2216, 0.7978846
        %v2281 = vmul.f32 %v2217, 0.7978846
        %v2282 = vmul.f32 %v2218, 0.7978846
        %v2283 = vmul.f32 %v2219, 0.7978846
        %v2284 = vmul.f32 %v2220, 0.7978846
        %v2285 = vmul.f32 %v2221, 0.7978846
        %v2286 = vmul.f32 %v2222, 0.7978846
        %v2287 = vmul.f32 %v2223, 0.7978846
        %v2288 = vmul.f32 %v2224, 0.7978846
        %v2289 = vmul.f32 %v2225, 0.7978846
        %v2290 = vmul.f32 %v2226, 0.7978846
        %v2291 = vmul.f32 %v2227, 0.7978846
        %v2292 = vmul.f32 %v2228, 0.7978846
        %v2293 = vmul.f32 %v2229, 0.7978846
        %v2294 = vmul.f32 %v2230, 0.7978846
        %v2295 = vmul.f32 %v2231, 0.7978846
        %v2296 = vmul.f32 %v2232, 0.7978846
        %v2297 = vmul.f32 %v2233, 0.7978846
        %v2298 = vmul.f32 %v2234, 0.7978846
        %v2299 = vmul.f32 %v2235, 0.7978846
        %v2300 = vmul.f32 %v2236, 0.7978846
        %v2301 = vmul.f32 %v2237, 0.7978846
        %v2302 = vmul.f32 %v2238, 0.7978846
        %v2303 = vmul.f32 %v2239, 0.7978846
        %v2304 = vmul.f32 %v2240, 0.7978846
        %v2305 = vmul.f32 %v2241, 0.7978846
        %v2306 = vmul.f32 %v2242, 0.7978846
        %v2307 = vmul.f32 %v2243, 0.7978846
        %v2308 = vmul.f32 %v2244, 0.7978846
        %v2309 = vmul.f32 %v2245, 0.7978846
        %v2310 = vmul.f32 %v2246, 0.7978846
        %v2311 = vmul.f32 %v2247, 0.7978846
        %v2312 = vmul.f32 %v2248, 0.7978846
        %v2313 = vmul.f32 %v2249, 0.7978846
        %v2314 = vmul.f32 %v2250, 0.7978846
        %v2315 = vmul.f32 %v2251, 0.7978846
        %v2316 = vmul.f32 %v2252, 0.7978846
        %v2317 = vmul.f32 %v2253, 0.7978846
        %v2318 = vmul.f32 %v2254, 0.7978846
        %v2319 = vmul.f32 %v2255, 0.7978846
        %v2320 = vmul.f32 %v2256, 0.7978846
        %v2321 = vmul.f32 %v2257, 0.7978846
        %v2322 = vmul.f32 %v2258, 0.7978846
        %v2323 = vmul.f32 %v2259, 0.7978846
        %v2324 = vmul.f32 %v2260, 0.7978846
        %v2325 = vmul.f32 %v2261, 0.7978846
        %v2326 = vmul.f32 %v2262, 0.7978846
        %v2327 = vmul.f32 %v2263, 0.7978846
        %v2328 = vmul.f32 %v2264, 0.7978846
        %v2329 = vmul.f32 %v2265, 0.7978846
        %v2330 = vmul.f32 %v2266, 0.7978846
        %v2331 = vmul.f32 %v2267, 0.7978846
        %v2332 = vmul.f32 %v2268, 0.7978846
        %v2333 = vmul.f32 %v2269, 0.7978846
        %v2334 = vmul.f32 %v2270, 0.7978846
        %v2335 = vmul.f32 %v2271, 0.7978846
        %v2336 = vmul.f32 %v2272, 0.7978846
        %v2337 = vmul.f32 %v2273, 0.7978846
        %v2338 = vmul.f32 %v2274, 0.7978846
        %v2339 = vmul.f32 %v2275, 0.7978846
        %v2340 = vtanh.pop %v2276
        %v2341 = vtanh.pop %v2277
        %v2342 = vtanh.pop %v2278
        %v2343 = vtanh.pop %v2279
        %v2344 = vtanh.pop %v2280
        %v2345 = vtanh.pop %v2281
        %v2346 = vtanh.pop %v2282
        %v2347 = vtanh.pop %v2283
        %v2348 = vtanh.pop %v2284
        %v2349 = vtanh.pop %v2285
        %v2350 = vtanh.pop %v2286
        %v2351 = vtanh.pop %v2287
        %v2352 = vtanh.pop %v2288
        %v2353 = vtanh.pop %v2289
        %v2354 = vtanh.pop %v2290
        %v2355 = vtanh.pop %v2291
        %v2356 = vtanh.pop %v2292
        %v2357 = vtanh.pop %v2293
        %v2358 = vtanh.pop %v2294
        %v2359 = vtanh.pop %v2295
        %v2360 = vtanh.pop %v2296
        %v2361 = vtanh.pop %v2297
        %v2362 = vtanh.pop %v2298
        %v2363 = vtanh.pop %v2299
        %v2364 = vtanh.pop %v2300
        %v2365 = vtanh.pop %v2301
        %v2366 = vtanh.pop %v2302
        %v2367 = vtanh.pop %v2303
        %v2368 = vtanh.pop %v2304
        %v2369 = vtanh.pop %v2305
        %v2370 = vtanh.pop %v2306
        %v2371 = vtanh.pop %v2307
        %v2372 = vtanh.pop %v2308
        %v2373 = vtanh.pop %v2309
        %v2374 = vtanh.pop %v2310
        %v2375 = vtanh.pop %v2311
        %v2376 = vtanh.pop %v2312
        %v2377 = vtanh.pop %v2313
        %v2378 = vtanh.pop %v2314
        %v2379 = vtanh.pop %v2315
        %v2380 = vtanh.pop %v2316
        %v2381 = vtanh.pop %v2317
        %v2382 = vtanh.pop %v2318
        %v2383 = vtanh.pop %v2319
        %v2384 = vtanh.pop %v2320
        %v2385 = vtanh.pop %v2321
        %v2386 = vtanh.pop %v2322
        %v2387 = vtanh.pop %v2323
        %v2388 = vtanh.pop %v2324
        %v2389 = vtanh.pop %v2325
        %v2390 = vtanh.pop %v2326
        %v2391 = vtanh.pop %v2327
        %v2392 = vtanh.pop %v2328
        %v2393 = vtanh.pop %v2329
        %v2394 = vtanh.pop %v2330
        %v2395 = vtanh.pop %v2331
        %v2396 = vtanh.pop %v2332
        %v2397 = vtanh.pop %v2333
        %v2398 = vtanh.pop %v2334
        %v2399 = vtanh.pop %v2335
        %v2400 = vtanh.pop %v2336
        %v2401 = vtanh.pop %v2337
        %v2402 = vtanh.pop %v2338
        %v2403 = vtanh.pop %v2339
        %v2404 = vadd.f32 %v2340, 1.0
        %v2405 = vadd.f32 %v2341, 1.0
        %v2406 = vadd.f32 %v2342, 1.0
        %v2407 = vadd.f32 %v2343, 1.0
        %v2408 = vadd.f32 %v2344, 1.0
        %v2409 = vadd.f32 %v2345, 1.0
        %v2410 = vadd.f32 %v2346, 1.0
        %v2411 = vadd.f32 %v2347, 1.0
        %v2412 = vadd.f32 %v2348, 1.0
        %v2413 = vadd.f32 %v2349, 1.0
        %v2414 = vadd.f32 %v2350, 1.0
        %v2415 = vadd.f32 %v2351, 1.0
        %v2416 = vadd.f32 %v2352, 1.0
        %v2417 = vadd.f32 %v2353, 1.0
        %v2418 = vadd.f32 %v2354, 1.0
        %v2419 = vadd.f32 %v2355, 1.0
        %v2420 = vadd.f32 %v2356, 1.0
        %v2421 = vadd.f32 %v2357, 1.0
        %v2422 = vadd.f32 %v2358, 1.0
        %v2423 = vadd.f32 %v2359, 1.0
        %v2424 = vadd.f32 %v2360, 1.0
        %v2425 = vadd.f32 %v2361, 1.0
        %v2426 = vadd.f32 %v2362, 1.0
        %v2427 = vadd.f32 %v2363, 1.0
        %v2428 = vadd.f32 %v2364, 1.0
        %v2429 = vadd.f32 %v2365, 1.0
        %v2430 = vadd.f32 %v2366, 1.0
        %v2431 = vadd.f32 %v2367, 1.0
        %v2432 = vadd.f32 %v2368, 1.0
        %v2433 = vadd.f32 %v2369, 1.0
        %v2434 = vadd.f32 %v2370, 1.0
        %v2435 = vadd.f32 %v2371, 1.0
        %v2436 = vadd.f32 %v2372, 1.0
        %v2437 = vadd.f32 %v2373, 1.0
        %v2438 = vadd.f32 %v2374, 1.0
        %v2439 = vadd.f32 %v2375, 1.0
        %v2440 = vadd.f32 %v2376, 1.0
        %v2441 = vadd.f32 %v2377, 1.0
        %v2442 = vadd.f32 %v2378, 1.0
        %v2443 = vadd.f32 %v2379, 1.0
        %v2444 = vadd.f32 %v2380, 1.0
        %v2445 = vadd.f32 %v2381, 1.0
        %v2446 = vadd.f32 %v2382, 1.0
        %v2447 = vadd.f32 %v2383, 1.0
        %v2448 = vadd.f32 %v2384, 1.0
        %v2449 = vadd.f32 %v2385, 1.0
        %v2450 = vadd.f32 %v2386, 1.0
        %v2451 = vadd.f32 %v2387, 1.0
        %v2452 = vadd.f32 %v2388, 1.0
        %v2453 = vadd.f32 %v2389, 1.0
        %v2454 = vadd.f32 %v2390, 1.0
        %v2455 = vadd.f32 %v2391, 1.0
        %v2456 = vadd.f32 %v2392, 1.0
        %v2457 = vadd.f32 %v2393, 1.0
        %v2458 = vadd.f32 %v2394, 1.0
        %v2459 = vadd.f32 %v2395, 1.0
        %v2460 = vadd.f32 %v2396, 1.0
        %v2461 = vadd.f32 %v2397, 1.0
        %v2462 = vadd.f32 %v2398, 1.0
        %v2463 = vadd.f32 %v2399, 1.0
        %v2464 = vadd.f32 %v2400, 1.0
        %v2465 = vadd.f32 %v2401, 1.0
        %v2466 = vadd.f32 %v2402, 1.0
        %v2467 = vadd.f32 %v2403, 1.0
        %v2468 = vmul.f32 %v2404, 0.5
        %v2469 = vmul.f32 %v2405, 0.5
        %v2470 = vmul.f32 %v2406, 0.5
        %v2471 = vmul.f32 %v2407, 0.5
        %v2472 = vmul.f32 %v2408, 0.5
        %v2473 = vmul.f32 %v2409, 0.5
        %v2474 = vmul.f32 %v2410, 0.5
        %v2475 = vmul.f32 %v2411, 0.5
        %v2476 = vmul.f32 %v2412, 0.5
        %v2477 = vmul.f32 %v2413, 0.5
        %v2478 = vmul.f32 %v2414, 0.5
        %v2479 = vmul.f32 %v2415, 0.5
        %v2480 = vmul.f32 %v2416, 0.5
        %v2481 = vmul.f32 %v2417, 0.5
        %v2482 = vmul.f32 %v2418, 0.5
        %v2483 = vmul.f32 %v2419, 0.5
        %v2484 = vmul.f32 %v2420, 0.5
        %v2485 = vmul.f32 %v2421, 0.5
        %v2486 = vmul.f32 %v2422, 0.5
        %v2487 = vmul.f32 %v2423, 0.5
        %v2488 = vmul.f32 %v2424, 0.5
        %v2489 = vmul.f32 %v2425, 0.5
        %v2490 = vmul.f32 %v2426, 0.5
        %v2491 = vmul.f32 %v2427, 0.5
        %v2492 = vmul.f32 %v2428, 0.5
        %v2493 = vmul.f32 %v2429, 0.5
        %v2494 = vmul.f32 %v2430, 0.5
        %v2495 = vmul.f32 %v2431, 0.5
        %v2496 = vmul.f32 %v2432, 0.5
        %v2497 = vmul.f32 %v2433, 0.5
        %v2498 = vmul.f32 %v2434, 0.5
        %v2499 = vmul.f32 %v2435, 0.5
        %v2500 = vmul.f32 %v2436, 0.5
        %v2501 = vmul.f32 %v2437, 0.5
        %v2502 = vmul.f32 %v2438, 0.5
        %v2503 = vmul.f32 %v2439, 0.5
        %v2504 = vmul.f32 %v2440, 0.5
        %v2505 = vmul.f32 %v2441, 0.5
        %v2506 = vmul.f32 %v2442, 0.5
        %v2507 = vmul.f32 %v2443, 0.5
        %v2508 = vmul.f32 %v2444, 0.5
        %v2509 = vmul.f32 %v2445, 0.5
        %v2510 = vmul.f32 %v2446, 0.5
        %v2511 = vmul.f32 %v2447, 0.5
        %v2512 = vmul.f32 %v2448, 0.5
        %v2513 = vmul.f32 %v2449, 0.5
        %v2514 = vmul.f32 %v2450, 0.5
        %v2515 = vmul.f32 %v2451, 0.5
        %v2516 = vmul.f32 %v2452, 0.5
        %v2517 = vmul.f32 %v2453, 0.5
        %v2518 = vmul.f32 %v2454, 0.5
        %v2519 = vmul.f32 %v2455, 0.5
        %v2520 = vmul.f32 %v2456, 0.5
        %v2521 = vmul.f32 %v2457, 0.5
        %v2522 = vmul.f32 %v2458, 0.5
        %v2523 = vmul.f32 %v2459, 0.5
        %v2524 = vmul.f32 %v2460, 0.5
        %v2525 = vmul.f32 %v2461, 0.5
        %v2526 = vmul.f32 %v2462, 0.5
        %v2527 = vmul.f32 %v2463, 0.5
        %v2528 = vmul.f32 %v2464, 0.5
        %v2529 = vmul.f32 %v2465, 0.5
        %v2530 = vmul.f32 %v2466, 0.5
        %v2531 = vmul.f32 %v2467, 0.5
        %v2532 = vmul.f32 %v1829, %v2468
        %v2533 = vmul.f32 %v1831, %v2469
        %v2534 = vmul.f32 %v1942, %v2470
        %v2535 = vmul.f32 %v1944, %v2471
        %v2536 = vmul.f32 %v1833, %v2472
        %v2537 = vmul.f32 %v1835, %v2473
        %v2538 = vmul.f32 %v1946, %v2474
        %v2539 = vmul.f32 %v1948, %v2475
        %v2540 = vmul.f32 %v1839, %v2476
        %v2541 = vmul.f32 %v1841, %v2477
        %v2542 = vmul.f32 %v1952, %v2478
        %v2543 = vmul.f32 %v1954, %v2479
        %v2544 = vmul.f32 %v1843, %v2480
        %v2545 = vmul.f32 %v1845, %v2481
        %v2546 = vmul.f32 %v1956, %v2482
        %v2547 = vmul.f32 %v1958, %v2483
        %v2548 = vmul.f32 %v1849, %v2484
        %v2549 = vmul.f32 %v1851, %v2485
        %v2550 = vmul.f32 %v1962, %v2486
        %v2551 = vmul.f32 %v1964, %v2487
        %v2552 = vmul.f32 %v1853, %v2488
        %v2553 = vmul.f32 %v1855, %v2489
        %v2554 = vmul.f32 %v1966, %v2490
        %v2555 = vmul.f32 %v1968, %v2491
        %v2556 = vmul.f32 %v1859, %v2492
        %v2557 = vmul.f32 %v1861, %v2493
        %v2558 = vmul.f32 %v1972, %v2494
        %v2559 = vmul.f32 %v1974, %v2495
        %v2560 = vmul.f32 %v1863, %v2496
        %v2561 = vmul.f32 %v1865, %v2497
        %v2562 = vmul.f32 %v1976, %v2498
        %v2563 = vmul.f32 %v1978, %v2499
        %v2564 = vmul.f32 %v1869, %v2500
        %v2565 = vmul.f32 %v1871, %v2501
        %v2566 = vmul.f32 %v1982, %v2502
        %v2567 = vmul.f32 %v1984, %v2503
        %v2568 = vmul.f32 %v1873, %v2504
        %v2569 = vmul.f32 %v1875, %v2505
        %v2570 = vmul.f32 %v1986, %v2506
        %v2571 = vmul.f32 %v1988, %v2507
        %v2572 = vmul.f32 %v1879, %v2508
        %v2573 = vmul.f32 %v1881, %v2509
        %v2574 = vmul.f32 %v1992, %v2510
        %v2575 = vmul.f32 %v1994, %v2511
        %v2576 = vmul.f32 %v1883, %v2512
        %v2577 = vmul.f32 %v1885, %v2513
        %v2578 = vmul.f32 %v1996, %v2514
        %v2579 = vmul.f32 %v1998, %v2515
        %v2580 = vmul.f32 %v1889, %v2516
        %v2581 = vmul.f32 %v1891, %v2517
        %v2582 = vmul.f32 %v2002, %v2518
        %v2583 = vmul.f32 %v2004, %v2519
        %v2584 = vmul.f32 %v1893, %v2520
        %v2585 = vmul.f32 %v1895, %v2521
        %v2586 = vmul.f32 %v2006, %v2522
        %v2587 = vmul.f32 %v2008, %v2523
        %v2588 = vmul.f32 %v1899, %v2524
        %v2589 = vmul.f32 %v1901, %v2525
        %v2590 = vmul.f32 %v2012, %v2526
        %v2591 = vmul.f32 %v2014, %v2527
        %v2592 = vmul.f32 %v1903, %v2528
        %v2593 = vmul.f32 %v1905, %v2529
        %v2594 = vmul.f32 %v2016, %v2530
        %v2595 = vmul.f32 %v2018, %v2531
        %v2596 = vpack.c.bf16 %v2536, %v2532
        %v2597 = vpack.c.bf16 %v2537, %v2533
        %v2598 = vpack.c.bf16 %v2538, %v2534
        %v2599 = vpack.c.bf16 %v2539, %v2535
        %v2600 = vpack.c.bf16 %v2544, %v2540
        %v2601 = vpack.c.bf16 %v2545, %v2541
        %v2602 = vpack.c.bf16 %v2546, %v2542
        %v2603 = vpack.c.bf16 %v2547, %v2543
        %v2604 = vpack.c.bf16 %v2552, %v2548
        %v2605 = vpack.c.bf16 %v2553, %v2549
        %v2606 = vpack.c.bf16 %v2554, %v2550
        %v2607 = vpack.c.bf16 %v2555, %v2551
        %v2608 = vpack.c.bf16 %v2560, %v2556
        %v2609 = vpack.c.bf16 %v2561, %v2557
        %v2610 = vpack.c.bf16 %v2562, %v2558
        %v2611 = vpack.c.bf16 %v2563, %v2559
        %v2612 = vpack.c.bf16 %v2568, %v2564
        %v2613 = vpack.c.bf16 %v2569, %v2565
        %v2614 = vpack.c.bf16 %v2570, %v2566
        %v2615 = vpack.c.bf16 %v2571, %v2567
        %v2616 = vpack.c.bf16 %v2576, %v2572
        %v2617 = vpack.c.bf16 %v2577, %v2573
        %v2618 = vpack.c.bf16 %v2578, %v2574
        %v2619 = vpack.c.bf16 %v2579, %v2575
        %v2620 = vpack.c.bf16 %v2584, %v2580
        %v2621 = vpack.c.bf16 %v2585, %v2581
        %v2622 = vpack.c.bf16 %v2586, %v2582
        %v2623 = vpack.c.bf16 %v2587, %v2583
        %v2624 = vpack.c.bf16 %v2592, %v2588
        %v2625 = vpack.c.bf16 %v2593, %v2589
        %v2626 = vpack.c.bf16 %v2594, %v2590
        %v2627 = vpack.c.bf16 %v2595, %v2591
        %v2628 = vld [vmem:[#allocation8] sm:$0xf]
        %v2629 = vld [vmem:[#allocation8 + $0x4] sm:$0xf]
        %v2630 = vld [vmem:[#allocation8 + $0x8] sm:$0xf]
        %v2631 = vld [vmem:[#allocation8 + $0xc] sm:$0xf]
        %v2632 = vld [vmem:[#allocation8 + $0x10] sm:$0xf]
        %v2633 = vld [vmem:[#allocation8 + $0x14] sm:$0xf]
        %v2634 = vld [vmem:[#allocation8 + $0x18] sm:$0xf]
        %v2635 = vld [vmem:[#allocation8 + $0x1c] sm:$0xf]
        %v2636 = vld [vmem:[#allocation8 + $0x20] sm:$0xf]
        %v2637 = vld [vmem:[#allocation8 + $0x24] sm:$0xf]
        %v2638 = vld [vmem:[#allocation8 + $0x28] sm:$0xf]
        %v2639 = vld [vmem:[#allocation8 + $0x2c] sm:$0xf]
        %v2640 = vld [vmem:[#allocation8 + $0x30] sm:$0xf]
        %v2641 = vld [vmem:[#allocation8 + $0x34] sm:$0xf]
        %v2642 = vld [vmem:[#allocation8 + $0x38] sm:$0xf]
        %v2643 = vld [vmem:[#allocation8 + $0x3c] sm:$0xf]
        %v2644 = vld [vmem:[#allocation8 + $0x40] sm:$0xf]
        %v2645 = vld [vmem:[#allocation8 + $0x44] sm:$0xf]
        %v2646 = vld [vmem:[#allocation8 + $0x48] sm:$0xf]
        %v2647 = vld [vmem:[#allocation8 + $0x4c] sm:$0xf]
        %v2648 = vld [vmem:[#allocation8 + $0x50] sm:$0xf]
        %v2649 = vld [vmem:[#allocation8 + $0x54] sm:$0xf]
        %v2650 = vld [vmem:[#allocation8 + $0x58] sm:$0xf]
        %v2651 = vld [vmem:[#allocation8 + $0x5c] sm:$0xf]
        %v2652 = vld [vmem:[#allocation8 + $0x60] sm:$0xf]
        %v2653 = vld [vmem:[#allocation8 + $0x64] sm:$0xf]
        %v2654 = vld [vmem:[#allocation8 + $0x68] sm:$0xf]
        %v2655 = vld [vmem:[#allocation8 + $0x6c] sm:$0xf]
        %v2656 = vld [vmem:[#allocation8 + $0x70] sm:$0xf]
        %v2657 = vld [vmem:[#allocation8 + $0x74] sm:$0xf]
        %v2658 = vld [vmem:[#allocation8 + $0x78] sm:$0xf]
        %v2659 = vld [vmem:[#allocation8 + $0x7c] sm:$0xf]
        %v2660 = vld [vmem:[#allocation8 + $0x80] sm:$0xf]
        %v2661 = vld [vmem:[#allocation8 + $0x84] sm:$0xf]
        %v2662 = vld [vmem:[#allocation8 + $0x88] sm:$0xf]
        %v2663 = vld [vmem:[#allocation8 + $0x8c] sm:$0xf]
        %v2664 = vld [vmem:[#allocation8 + $0x90] sm:$0xf]
        %v2665 = vld [vmem:[#allocation8 + $0x94] sm:$0xf]
        %v2666 = vld [vmem:[#allocation8 + $0x98] sm:$0xf]
        %v2667 = vld [vmem:[#allocation8 + $0x9c] sm:$0xf]
        %v2668 = vld [vmem:[#allocation8 + $0xa0] sm:$0xf]
        %v2669 = vld [vmem:[#allocation8 + $0xa4] sm:$0xf]
        %v2670 = vld [vmem:[#allocation8 + $0xa8] sm:$0xf]
        %v2671 = vld [vmem:[#allocation8 + $0xac] sm:$0xf]
        %v2672 = vld [vmem:[#allocation8 + $0xb0] sm:$0xf]
        %v2673 = vld [vmem:[#allocation8 + $0xb4] sm:$0xf]
        %v2674 = vld [vmem:[#allocation8 + $0xb8] sm:$0xf]
        %v2675 = vld [vmem:[#allocation8 + $0xbc] sm:$0xf]
        %v2676 = vld [vmem:[#allocation8 + $0xc0] sm:$0xf]
        %v2677 = vld [vmem:[#allocation8 + $0xc4] sm:$0xf]
        %v2678 = vld [vmem:[#allocation8 + $0xc8] sm:$0xf]
        %v2679 = vld [vmem:[#allocation8 + $0xcc] sm:$0xf]
        %v2680 = vld [vmem:[#allocation8 + $0xd0] sm:$0xf]
        %v2681 = vld [vmem:[#allocation8 + $0xd4] sm:$0xf]
        %v2682 = vld [vmem:[#allocation8 + $0xd8] sm:$0xf]
        %v2683 = vld [vmem:[#allocation8 + $0xdc] sm:$0xf]
        %v2684 = vld [vmem:[#allocation8 + $0xe0] sm:$0xf]
        %v2685 = vld [vmem:[#allocation8 + $0xe4] sm:$0xf]
        %v2686 = vld [vmem:[#allocation8 + $0xe8] sm:$0xf]
        %v2687 = vld [vmem:[#allocation8 + $0xec] sm:$0xf]
        %v2688 = vld [vmem:[#allocation8 + $0xf0] sm:$0xf]
        %v2689 = vld [vmem:[#allocation8 + $0xf4] sm:$0xf]
        %v2690 = vld [vmem:[#allocation8 + $0xf8] sm:$0xf]
        %v2691 = vld [vmem:[#allocation8 + $0xfc] sm:$0xf]
        %v2692 = vld [vmem:[%s12] sm:$0x1]
        %v2694 = vlaneseq
        %v2695 = vshrl.u32 %v2694, 7
        %v2696 = vsub.s32 0, %v2695
        %v2697 = vrot.slane %v2692, %v2696
        %v2763 = vunpack.c.l.b16 %v2628
        %v2764 = vunpack.c.l.b16 %v2629
        %v2765 = vunpack.c.l.b16 %v2630
        %v2766 = vunpack.c.l.b16 %v2631
        %v2767 = vunpack.c.l.b16 %v2632
        %v2768 = vunpack.c.l.b16 %v2633
        %v2769 = vunpack.c.l.b16 %v2634
        %v2770 = vunpack.c.l.b16 %v2635
        %v2771 = vunpack.c.l.b16 %v2636
        %v2772 = vunpack.c.l.b16 %v2637
        %v2773 = vunpack.c.l.b16 %v2638
        %v2774 = vunpack.c.l.b16 %v2639
        %v2775 = vunpack.c.l.b16 %v2640
        %v2776 = vunpack.c.l.b16 %v2641
        %v2777 = vunpack.c.l.b16 %v2642
        %v2778 = vunpack.c.l.b16 %v2643
        %v2779 = vunpack.c.l.b16 %v2644
        %v2780 = vunpack.c.l.b16 %v2645
        %v2781 = vunpack.c.l.b16 %v2646
        %v2782 = vunpack.c.l.b16 %v2647
        %v2783 = vunpack.c.l.b16 %v2648
        %v2784 = vunpack.c.l.b16 %v2649
        %v2785 = vunpack.c.l.b16 %v2650
        %v2786 = vunpack.c.l.b16 %v2651
        %v2787 = vunpack.c.l.b16 %v2652
        %v2788 = vunpack.c.l.b16 %v2653
        %v2789 = vunpack.c.l.b16 %v2654
        %v2790 = vunpack.c.l.b16 %v2655
        %v2791 = vunpack.c.l.b16 %v2656
        %v2792 = vunpack.c.l.b16 %v2657
        %v2793 = vunpack.c.l.b16 %v2658
        %v2794 = vunpack.c.l.b16 %v2659
        %v2795 = vunpack.c.l.b16 %v2660
        %v2796 = vunpack.c.l.b16 %v2661
        %v2797 = vunpack.c.l.b16 %v2662
        %v2798 = vunpack.c.l.b16 %v2663
        %v2799 = vunpack.c.l.b16 %v2664
        %v2800 = vunpack.c.l.b16 %v2665
        %v2801 = vunpack.c.l.b16 %v2666
        %v2802 = vunpack.c.l.b16 %v2667
        %v2803 = vunpack.c.l.b16 %v2668
        %v2804 = vunpack.c.l.b16 %v2669
        %v2805 = vunpack.c.l.b16 %v2670
        %v2806 = vunpack.c.l.b16 %v2671
        %v2807 = vunpack.c.l.b16 %v2672
        %v2808 = vunpack.c.l.b16 %v2673
        %v2809 = vunpack.c.l.b16 %v2674
        %v2810 = vunpack.c.l.b16 %v2675
        %v2811 = vunpack.c.l.b16 %v2676
        %v2812 = vunpack.c.l.b16 %v2677
        %v2813 = vunpack.c.l.b16 %v2678
        %v2814 = vunpack.c.l.b16 %v2679
        %v2815 = vunpack.c.l.b16 %v2680
        %v2816 = vunpack.c.l.b16 %v2681
        %v2817 = vunpack.c.l.b16 %v2682
        %v2818 = vunpack.c.l.b16 %v2683
        %v2819 = vunpack.c.l.b16 %v2684
        %v2820 = vunpack.c.l.b16 %v2685
        %v2821 = vunpack.c.l.b16 %v2686
        %v2822 = vunpack.c.l.b16 %v2687
        %v2823 = vunpack.c.l.b16 %v2688
        %v2824 = vunpack.c.l.b16 %v2689
        %v2825 = vunpack.c.l.b16 %v2690
        %v2826 = vunpack.c.l.b16 %v2691
        %v2827 = vpack.c.b16 %v2764, %v2763
        %v2828 = vpack.c.b16 %v2766, %v2765
        %v2829 = vpack.c.b16 %v2768, %v2767
        %v2830 = vpack.c.b16 %v2770, %v2769
        %v2831 = vpack.c.b16 %v2772, %v2771
        %v2832 = vpack.c.b16 %v2774, %v2773
        %v2833 = vpack.c.b16 %v2776, %v2775
        %v2834 = vpack.c.b16 %v2778, %v2777
        %v2835 = vpack.c.b16 %v2780, %v2779
        %v2836 = vpack.c.b16 %v2782, %v2781
        %v2837 = vpack.c.b16 %v2784, %v2783
        %v2838 = vpack.c.b16 %v2786, %v2785
        %v2839 = vpack.c.b16 %v2788, %v2787
        %v2840 = vpack.c.b16 %v2790, %v2789
        %v2841 = vpack.c.b16 %v2792, %v2791
        %v2842 = vpack.c.b16 %v2794, %v2793
        %v2843 = vpack.c.b16 %v2796, %v2795
        %v2844 = vpack.c.b16 %v2798, %v2797
        %v2845 = vpack.c.b16 %v2800, %v2799
        %v2846 = vpack.c.b16 %v2802, %v2801
        %v2847 = vpack.c.b16 %v2804, %v2803
        %v2848 = vpack.c.b16 %v2806, %v2805
        %v2849 = vpack.c.b16 %v2808, %v2807
        %v2850 = vpack.c.b16 %v2810, %v2809
        %v2851 = vpack.c.b16 %v2812, %v2811
        %v2852 = vpack.c.b16 %v2814, %v2813
        %v2853 = vpack.c.b16 %v2816, %v2815
        %v2854 = vpack.c.b16 %v2818, %v2817
        %v2855 = vpack.c.b16 %v2820, %v2819
        %v2856 = vpack.c.b16 %v2822, %v2821
        %v2857 = vpack.c.b16 %v2824, %v2823
        %v2858 = vpack.c.b16 %v2826, %v2825
        %2891 = vmatprep.subr.bf16.mxu0 0
        %2892 = vmatpush1.bf16.msra.mxu0 %v2834
        %2893 = vmatprep.subr.bf16.mxu0 0
        %2894 = vmatpush1.bf16.msra.mxu0 %v2833
        %2895 = vmatprep.subr.bf16.mxu0 0
        %2896 = vmatpush1.bf16.msra.mxu0 %v2832
        %2897 = vmatprep.subr.bf16.mxu0 0
        %2898 = vmatpush1.bf16.msra.mxu0 %v2831
        %2899 = vmatprep.subr.bf16.mxu0 0
        %2900 = vmatpush1.bf16.msra.mxu0 %v2830
        %2901 = vmatprep.subr.bf16.mxu0 0
        %2902 = vmatpush1.bf16.msra.mxu0 %v2829
        %2903 = vmatprep.subr.bf16.mxu0 0
        %2904 = vmatpush1.bf16.msra.mxu0 %v2828
        %2905 = vmatprep.subr.bf16.mxu0 0
        %2906 = vmatpush1.bf16.msra.mxu0 %v2827
        %2907 = vmatprep.subr.bf16.mxu0 0
        %2908 = vmatpush2.bf16.msra.mxu0 %v2842
        %2909 = vmatprep.subr.bf16.mxu0 0
        %2910 = vmatpush2.bf16.msra.mxu0 %v2841
        %2911 = vmatprep.subr.bf16.mxu0 0
        %2912 = vmatpush2.bf16.msra.mxu0 %v2840
        %2913 = vmatprep.subr.bf16.mxu0 0
        %2914 = vmatpush2.bf16.msra.mxu0 %v2839
        %2915 = vmatprep.subr.bf16.mxu0 0
        %2916 = vmatpush2.bf16.msra.mxu0 %v2838
        %2917 = vmatprep.subr.bf16.mxu0 0
        %2918 = vmatpush2.bf16.msra.mxu0 %v2837
        %2919 = vmatprep.subr.bf16.mxu0 0
        %2920 = vmatpush2.bf16.msra.mxu0 %v2836
        %2921 = vmatprep.subr.bf16.mxu0 0
        %2922 = vmatpush2.bf16.msra.mxu0 %v2835
        %2923 = vmatprep.mubr.bf16.mxu0 %v2597
        %2924 = vmatmul.mubr.bf16.gmra.mxu0 %v2596
        %v2925 = vpop.f32.mrf.mxu0
        %v2926 = vadd.f32 %v2697, %v2925
        %v2927 = vpop.f32.mrf.mxu0
        %v2928 = vpop.f32.mrf.mxu0
        %v2929 = vadd.f32 %v2697, %v2928
        %v2930 = vpop.f32.mrf.mxu0
        %2931 = vmatprep.mubr.bf16.mxu0 %v2601
        %2932 = vmatmul.mubr.bf16.gmra.mxu0 %v2600
        %v2933 = vpop.f32.mrf.mxu0
        %v2934 = vadd.f32 %v2697, %v2933
        %v2935 = vpop.f32.mrf.mxu0
        %v2936 = vpop.f32.mrf.mxu0
        %v2937 = vadd.f32 %v2697, %v2936
        %v2938 = vpop.f32.mrf.mxu0
        %2939 = vmatprep.mubr.bf16.mxu0 %v2605
        %2940 = vmatmul.mubr.bf16.gmra.mxu0 %v2604
        %v2941 = vpop.f32.mrf.mxu0
        %v2942 = vadd.f32 %v2697, %v2941
        %v2943 = vpop.f32.mrf.mxu0
        %v2944 = vpop.f32.mrf.mxu0
        %v2945 = vadd.f32 %v2697, %v2944
        %v2946 = vpop.f32.mrf.mxu0
        %2947 = vmatprep.mubr.bf16.mxu0 %v2609
        %2948 = vmatmul.mubr.bf16.gmra.mxu0 %v2608
        %v2949 = vpop.f32.mrf.mxu0
        %v2950 = vadd.f32 %v2697, %v2949
        %v2951 = vpop.f32.mrf.mxu0
        %v2952 = vpop.f32.mrf.mxu0
        %v2953 = vadd.f32 %v2697, %v2952
        %v2954 = vpop.f32.mrf.mxu0
        %2955 = vmatprep.mubr.bf16.mxu0 %v2613
        %2956 = vmatmul.mubr.bf16.gmra.mxu0 %v2612
        %v2957 = vpop.f32.mrf.mxu0
        %v2958 = vadd.f32 %v2697, %v2957
        %v2959 = vpop.f32.mrf.mxu0
        %v2960 = vpop.f32.mrf.mxu0
        %v2961 = vadd.f32 %v2697, %v2960
        %v2962 = vpop.f32.mrf.mxu0
        %2963 = vmatprep.mubr.bf16.mxu0 %v2617
        %2964 = vmatmul.mubr.bf16.gmra.mxu0 %v2616
        %v2965 = vpop.f32.mrf.mxu0
        %v2966 = vadd.f32 %v2697, %v2965
        %v2967 = vpop.f32.mrf.mxu0
        %v2968 = vpop.f32.mrf.mxu0
        %v2969 = vadd.f32 %v2697, %v2968
        %v2970 = vpop.f32.mrf.mxu0
        %2971 = vmatprep.mubr.bf16.mxu0 %v2621
        %2972 = vmatmul.mubr.bf16.gmra.mxu0 %v2620
        %v2973 = vpop.f32.mrf.mxu0
        %v2974 = vadd.f32 %v2697, %v2973
        %v2975 = vpop.f32.mrf.mxu0
        %v2976 = vpop.f32.mrf.mxu0
        %v2977 = vadd.f32 %v2697, %v2976
        %v2978 = vpop.f32.mrf.mxu0
        %2979 = vmatprep.mubr.bf16.mxu0 %v2625
        %2980 = vmatmul.mubr.bf16.gmra.mxu0 %v2624
        %v2981 = vpop.f32.mrf.mxu0
        %v2982 = vadd.f32 %v2697, %v2981
        %v2983 = vpop.f32.mrf.mxu0
        %v2984 = vpop.f32.mrf.mxu0
        %v2985 = vadd.f32 %v2697, %v2984
        %v2986 = vpop.f32.mrf.mxu0
        %2987 = vdwg.mxu0
        %2988 = vmatprep.subr.bf16.mxu0 0
        %2989 = vmatpush1.bf16.msra.mxu0 %v2850
        %2990 = vmatprep.subr.bf16.mxu0 0
        %2991 = vmatpush1.bf16.msra.mxu0 %v2849
        %2992 = vmatprep.subr.bf16.mxu0 0
        %2993 = vmatpush1.bf16.msra.mxu0 %v2848
        %2994 = vmatprep.subr.bf16.mxu0 0
        %2995 = vmatpush1.bf16.msra.mxu0 %v2847
        %2996 = vmatprep.subr.bf16.mxu0 0
        %2997 = vmatpush1.bf16.msra.mxu0 %v2846
        %2998 = vmatprep.subr.bf16.mxu0 0
        %2999 = vmatpush1.bf16.msra.mxu0 %v2845
        %3000 = vmatprep.subr.bf16.mxu0 0
        %3001 = vmatpush1.bf16.msra.mxu0 %v2844
        %3002 = vmatprep.subr.bf16.mxu0 0
        %3003 = vmatpush1.bf16.msra.mxu0 %v2843
        %3004 = vmatprep.subr.bf16.mxu0 0
        %3005 = vmatpush2.bf16.msra.mxu0 %v2858
        %3006 = vmatprep.subr.bf16.mxu0 0
        %3007 = vmatpush2.bf16.msra.mxu0 %v2857
        %3008 = vmatprep.subr.bf16.mxu0 0
        %3009 = vmatpush2.bf16.msra.mxu0 %v2856
        %3010 = vmatprep.subr.bf16.mxu0 0
        %3011 = vmatpush2.bf16.msra.mxu0 %v2855
        %3012 = vmatprep.subr.bf16.mxu0 0
        %3013 = vmatpush2.bf16.msra.mxu0 %v2854
        %3014 = vmatprep.subr.bf16.mxu0 0
        %3015 = vmatpush2.bf16.msra.mxu0 %v2853
        %3016 = vmatprep.subr.bf16.mxu0 0
        %3017 = vmatpush2.bf16.msra.mxu0 %v2852
        %3018 = vmatprep.subr.bf16.mxu0 0
        %3019 = vmatpush2.bf16.msra.mxu0 %v2851
        %3020 = vmatprep.mubr.bf16.mxu0 %v2599
        %3021 = vmatmul.mubr.bf16.gmra.mxu0 %v2598
        %v3022 = vpop.f32.mrf.mxu0
        %v3023 = vadd.f32 %v2926, %v3022
        %v3024 = vpop.f32.mrf.mxu0
        %v3025 = vpop.f32.mrf.mxu0
        %v3026 = vadd.f32 %v2929, %v3025
        %v3027 = vpop.f32.mrf.mxu0
        %3028 = vmatprep.mubr.bf16.mxu0 %v2603
        %3029 = vmatmul.mubr.bf16.gmra.mxu0 %v2602
        %v3030 = vpop.f32.mrf.mxu0
        %v3031 = vadd.f32 %v2934, %v3030
        %v3032 = vpop.f32.mrf.mxu0
        %v3033 = vpop.f32.mrf.mxu0
        %v3034 = vadd.f32 %v2937, %v3033
        %v3035 = vpop.f32.mrf.mxu0
        %3036 = vmatprep.mubr.bf16.mxu0 %v2607
        %3037 = vmatmul.mubr.bf16.gmra.mxu0 %v2606
        %v3038 = vpop.f32.mrf.mxu0
        %v3039 = vadd.f32 %v2942, %v3038
        %v3040 = vpop.f32.mrf.mxu0
        %v3041 = vpop.f32.mrf.mxu0
        %v3042 = vadd.f32 %v2945, %v3041
        %v3043 = vpop.f32.mrf.mxu0
        %3044 = vmatprep.mubr.bf16.mxu0 %v2611
        %3045 = vmatmul.mubr.bf16.gmra.mxu0 %v2610
        %v3046 = vpop.f32.mrf.mxu0
        %v3047 = vadd.f32 %v2950, %v3046
        %v3048 = vpop.f32.mrf.mxu0
        %v3049 = vpop.f32.mrf.mxu0
        %v3050 = vadd.f32 %v2953, %v3049
        %v3051 = vpop.f32.mrf.mxu0
        %3052 = vmatprep.mubr.bf16.mxu0 %v2615
        %3053 = vmatmul.mubr.bf16.gmra.mxu0 %v2614
        %v3054 = vpop.f32.mrf.mxu0
        %v3055 = vadd.f32 %v2958, %v3054
        %v3056 = vpop.f32.mrf.mxu0
        %v3057 = vpop.f32.mrf.mxu0
        %v3058 = vadd.f32 %v2961, %v3057
        %v3059 = vpop.f32.mrf.mxu0
        %3060 = vmatprep.mubr.bf16.mxu0 %v2619
        %3061 = vmatmul.mubr.bf16.gmra.mxu0 %v2618
        %v3062 = vpop.f32.mrf.mxu0
        %v3063 = vadd.f32 %v2966, %v3062
        %v3064 = vpop.f32.mrf.mxu0
        %v3065 = vpop.f32.mrf.mxu0
        %v3066 = vadd.f32 %v2969, %v3065
        %v3067 = vpop.f32.mrf.mxu0
        %3068 = vmatprep.mubr.bf16.mxu0 %v2623
        %3069 = vmatmul.mubr.bf16.gmra.mxu0 %v2622
        %v3070 = vpop.f32.mrf.mxu0
        %v3071 = vadd.f32 %v2974, %v3070
        %v3072 = vpop.f32.mrf.mxu0
        %v3073 = vpop.f32.mrf.mxu0
        %v3074 = vadd.f32 %v2977, %v3073
        %v3075 = vpop.f32.mrf.mxu0
        %3076 = vmatprep.mubr.bf16.mxu0 %v2627
        %3077 = vmatmul.mubr.bf16.gmra.mxu0 %v2626
        %v3078 = vpop.f32.mrf.mxu0
        %v3079 = vadd.f32 %v2982, %v3078
        %v3080 = vpop.f32.mrf.mxu0
        %v3081 = vpop.f32.mrf.mxu0
        %v3082 = vadd.f32 %v2985, %v3081
        %v3083 = vpop.f32.mrf.mxu0
        %3084 = vdwg.mxu0
        %v3085 = vadd.f32 %v1334, %v3023
        %v3086 = vadd.f32 %v1335, %v3026
        %v3087 = vadd.f32 %v1336, %v3031
        %v3088 = vadd.f32 %v1337, %v3034
        %v3089 = vadd.f32 %v1338, %v3039
        %v3090 = vadd.f32 %v1339, %v3042
        %v3091 = vadd.f32 %v1340, %v3047
        %v3092 = vadd.f32 %v1341, %v3050
        %v3093 = vadd.f32 %v1342, %v3055
        %v3094 = vadd.f32 %v1343, %v3058
        %v3095 = vadd.f32 %v1344, %v3063
        %v3096 = vadd.f32 %v1345, %v3066
        %v3097 = vadd.f32 %v1346, %v3071
        %v3098 = vadd.f32 %v1347, %v3074
        %v3099 = vadd.f32 %v1348, %v3079
        %v3100 = vadd.f32 %v1349, %v3082
        %v3101 = vld [vmem:[%s13] sm:$0x1]
        %v3102 = vld [vmem:[%s14] sm:$0x1]
        %3103 = vadd.xlane.f32.xlu0 %v3085
        %v3104 = vpop.xlane.xlu0 %3103
        %3105 = vadd.xlane.f32.xlu0 %v3086
        %v3106 = vpop.xlane.xlu0 %3105
        %3107 = vadd.xlane.f32.xlu0 %v3087
        %v3108 = vpop.xlane.xlu0 %3107
        %3109 = vadd.xlane.f32.xlu0 %v3088
        %v3110 = vpop.xlane.xlu0 %3109
        %3111 = vadd.xlane.f32.xlu0 %v3089
        %v3112 = vpop.xlane.xlu0 %3111
        %3113 = vadd.xlane.f32.xlu0 %v3090
        %v3114 = vpop.xlane.xlu0 %3113
        %3115 = vadd.xlane.f32.xlu0 %v3091
        %v3116 = vpop.xlane.xlu0 %3115
        %3117 = vadd.xlane.f32.xlu0 %v3092
        %v3118 = vpop.xlane.xlu0 %3117
        %3119 = vadd.xlane.f32.xlu0 %v3093
        %v3120 = vpop.xlane.xlu0 %3119
        %3121 = vadd.xlane.f32.xlu0 %v3094
        %v3122 = vpop.xlane.xlu0 %3121
        %3123 = vadd.xlane.f32.xlu0 %v3095
        %v3124 = vpop.xlane.xlu0 %3123
        %3125 = vadd.xlane.f32.xlu0 %v3096
        %v3126 = vpop.xlane.xlu0 %3125
        %3127 = vadd.xlane.f32.xlu0 %v3097
        %v3128 = vpop.xlane.xlu0 %3127
        %3129 = vadd.xlane.f32.xlu0 %v3098
        %v3130 = vpop.xlane.xlu0 %3129
        %3131 = vadd.xlane.f32.xlu0 %v3099
        %v3132 = vpop.xlane.xlu0 %3131
        %3133 = vadd.xlane.f32.xlu0 %v3100
        %v3134 = vpop.xlane.xlu0 %3133
        %v3135 = vmul.f32 %v3104, %v642
        %v3136 = vmul.f32 %v3106, %v642
        %v3137 = vmul.f32 %v3108, %v642
        %v3138 = vmul.f32 %v3110, %v642
        %v3139 = vmul.f32 %v3112, %v642
        %v3140 = vmul.f32 %v3114, %v642
        %v3141 = vmul.f32 %v3116, %v642
        %v3142 = vmul.f32 %v3118, %v642
        %v3143 = vmul.f32 %v3120, %v642
        %v3144 = vmul.f32 %v3122, %v642
        %v3145 = vmul.f32 %v3124, %v642
        %v3146 = vmul.f32 %v3126, %v642
        %v3147 = vmul.f32 %v3128, %v642
        %v3148 = vmul.f32 %v3130, %v642
        %v3149 = vmul.f32 %v3132, %v642
        %v3150 = vmul.f32 %v3134, %v642
        %v3151 = vsub.f32 %v3085, %v3135
        %v3152 = vsub.f32 %v3086, %v3136
        %v3153 = vsub.f32 %v3087, %v3137
        %v3154 = vsub.f32 %v3088, %v3138
        %v3155 = vsub.f32 %v3089, %v3139
        %v3156 = vsub.f32 %v3090, %v3140
        %v3157 = vsub.f32 %v3091, %v3141
        %v3158 = vsub.f32 %v3092, %v3142
        %v3159 = vsub.f32 %v3093, %v3143
        %v3160 = vsub.f32 %v3094, %v3144
        %v3161 = vsub.f32 %v3095, %v3145
        %v3162 = vsub.f32 %v3096, %v3146
        %v3163 = vsub.f32 %v3097, %v3147
        %v3164 = vsub.f32 %v3098, %v3148
        %v3165 = vsub.f32 %v3099, %v3149
        %v3166 = vsub.f32 %v3100, %v3150
        %v3167 = vmul.f32 %v3151, %v3151
        %v3168 = vmul.f32 %v3152, %v3152
        %v3169 = vmul.f32 %v3153, %v3153
        %v3170 = vmul.f32 %v3154, %v3154
        %v3171 = vmul.f32 %v3155, %v3155
        %v3172 = vmul.f32 %v3156, %v3156
        %v3173 = vmul.f32 %v3157, %v3157
        %v3174 = vmul.f32 %v3158, %v3158
        %v3175 = vmul.f32 %v3159, %v3159
        %v3176 = vmul.f32 %v3160, %v3160
        %v3177 = vmul.f32 %v3161, %v3161
        %v3178 = vmul.f32 %v3162, %v3162
        %v3179 = vmul.f32 %v3163, %v3163
        %v3180 = vmul.f32 %v3164, %v3164
        %v3181 = vmul.f32 %v3165, %v3165
        %v3182 = vmul.f32 %v3166, %v3166
        %3183 = vadd.xlane.f32.xlu0 %v3167
        %v3184 = vpop.xlane.xlu0 %3183
        %3185 = vadd.xlane.f32.xlu0 %v3168
        %v3186 = vpop.xlane.xlu0 %3185
        %3187 = vadd.xlane.f32.xlu0 %v3169
        %v3188 = vpop.xlane.xlu0 %3187
        %3189 = vadd.xlane.f32.xlu0 %v3170
        %v3190 = vpop.xlane.xlu0 %3189
        %3191 = vadd.xlane.f32.xlu0 %v3171
        %v3192 = vpop.xlane.xlu0 %3191
        %3193 = vadd.xlane.f32.xlu0 %v3172
        %v3194 = vpop.xlane.xlu0 %3193
        %3195 = vadd.xlane.f32.xlu0 %v3173
        %v3196 = vpop.xlane.xlu0 %3195
        %3197 = vadd.xlane.f32.xlu0 %v3174
        %v3198 = vpop.xlane.xlu0 %3197
        %3199 = vadd.xlane.f32.xlu0 %v3175
        %v3200 = vpop.xlane.xlu0 %3199
        %3201 = vadd.xlane.f32.xlu0 %v3176
        %v3202 = vpop.xlane.xlu0 %3201
        %3203 = vadd.xlane.f32.xlu0 %v3177
        %v3204 = vpop.xlane.xlu0 %3203
        %3205 = vadd.xlane.f32.xlu0 %v3178
        %v3206 = vpop.xlane.xlu0 %3205
        %3207 = vadd.xlane.f32.xlu0 %v3179
        %v3208 = vpop.xlane.xlu0 %3207
        %3209 = vadd.xlane.f32.xlu0 %v3180
        %v3210 = vpop.xlane.xlu0 %3209
        %3211 = vadd.xlane.f32.xlu0 %v3181
        %v3212 = vpop.xlane.xlu0 %3211
        %3213 = vadd.xlane.f32.xlu0 %v3182
        %v3214 = vpop.xlane.xlu0 %3213
        %v3215 = vmul.f32 %v3184, %v642
        %v3216 = vmul.f32 %v3186, %v642
        %v3217 = vmul.f32 %v3188, %v642
        %v3218 = vmul.f32 %v3190, %v642
        %v3219 = vmul.f32 %v3192, %v642
        %v3220 = vmul.f32 %v3194, %v642
        %v3221 = vmul.f32 %v3196, %v642
        %v3222 = vmul.f32 %v3198, %v642
        %v3223 = vmul.f32 %v3200, %v642
        %v3224 = vmul.f32 %v3202, %v642
        %v3225 = vmul.f32 %v3204, %v642
        %v3226 = vmul.f32 %v3206, %v642
        %v3227 = vmul.f32 %v3208, %v642
        %v3228 = vmul.f32 %v3210, %v642
        %v3229 = vmul.f32 %v3212, %v642
        %v3230 = vmul.f32 %v3214, %v642
        %v3231 = vadd.f32 %v3215, 1e-05
        %v3232 = vadd.f32 %v3216, 1e-05
        %v3233 = vadd.f32 %v3217, 1e-05
        %v3234 = vadd.f32 %v3218, 1e-05
        %v3235 = vadd.f32 %v3219, 1e-05
        %v3236 = vadd.f32 %v3220, 1e-05
        %v3237 = vadd.f32 %v3221, 1e-05
        %v3238 = vadd.f32 %v3222, 1e-05
        %v3239 = vadd.f32 %v3223, 1e-05
        %v3240 = vadd.f32 %v3224, 1e-05
        %v3241 = vadd.f32 %v3225, 1e-05
        %v3242 = vadd.f32 %v3226, 1e-05
        %v3243 = vadd.f32 %v3227, 1e-05
        %v3244 = vadd.f32 %v3228, 1e-05
        %v3245 = vadd.f32 %v3229, 1e-05
        %v3246 = vadd.f32 %v3230, 1e-05
        %v3247 = vrsqrt.pop %v3231
        %v3248 = vrsqrt.pop %v3232
        %v3249 = vrsqrt.pop %v3233
        %v3250 = vrsqrt.pop %v3234
        %v3251 = vrsqrt.pop %v3235
        %v3252 = vrsqrt.pop %v3236
        %v3253 = vrsqrt.pop %v3237
        %v3254 = vrsqrt.pop %v3238
        %v3255 = vrsqrt.pop %v3239
        %v3256 = vrsqrt.pop %v3240
        %v3257 = vrsqrt.pop %v3241
        %v3258 = vrsqrt.pop %v3242
        %v3259 = vrsqrt.pop %v3243
        %v3260 = vrsqrt.pop %v3244
        %v3261 = vrsqrt.pop %v3245
        %v3262 = vrsqrt.pop %v3246
        %v3263 = vmul.f32 %v3151, %v3247
        %v3264 = vmul.f32 %v3152, %v3248
        %v3265 = vmul.f32 %v3153, %v3249
        %v3266 = vmul.f32 %v3154, %v3250
        %v3267 = vmul.f32 %v3155, %v3251
        %v3268 = vmul.f32 %v3156, %v3252
        %v3269 = vmul.f32 %v3157, %v3253
        %v3270 = vmul.f32 %v3158, %v3254
        %v3271 = vmul.f32 %v3159, %v3255
        %v3272 = vmul.f32 %v3160, %v3256
        %v3273 = vmul.f32 %v3161, %v3257
        %v3274 = vmul.f32 %v3162, %v3258
        %v3275 = vmul.f32 %v3163, %v3259
        %v3276 = vmul.f32 %v3164, %v3260
        %v3277 = vmul.f32 %v3165, %v3261
        %v3278 = vmul.f32 %v3166, %v3262
        %v3280 = vlaneseq
        %v3281 = vshrl.u32 %v3280, 7
        %v3282 = vsub.s32 0, %v3281
        %v3283 = vrot.slane %v3101, %v3282
        %v3285 = vmul.f32 %v3263, %v3283
        %v3286 = vmul.f32 %v3264, %v3283
        %v3287 = vmul.f32 %v3265, %v3283
        %v3288 = vmul.f32 %v3266, %v3283
        %v3289 = vmul.f32 %v3267, %v3283
        %v3290 = vmul.f32 %v3268, %v3283
        %v3291 = vmul.f32 %v3269, %v3283
        %v3292 = vmul.f32 %v3270, %v3283
        %v3293 = vmul.f32 %v3271, %v3283
        %v3294 = vmul.f32 %v3272, %v3283
        %v3295 = vmul.f32 %v3273, %v3283
        %v3296 = vmul.f32 %v3274, %v3283
        %v3297 = vmul.f32 %v3275, %v3283
        %v3298 = vmul.f32 %v3276, %v3283
        %v3299 = vmul.f32 %v3277, %v3283
        %v3300 = vmul.f32 %v3278, %v3283
        %v3302 = vlaneseq
        %v3303 = vshrl.u32 %v3302, 7
        %v3304 = vsub.s32 0, %v3303
        %v3305 = vrot.slane %v3102, %v3304
        %v3307 = vadd.f32 %v3285, %v3305
        %v3308 = vadd.f32 %v3286, %v3305
        %v3309 = vadd.f32 %v3287, %v3305
        %v3310 = vadd.f32 %v3288, %v3305
        %v3311 = vadd.f32 %v3289, %v3305
        %v3312 = vadd.f32 %v3290, %v3305
        %v3313 = vadd.f32 %v3291, %v3305
        %v3314 = vadd.f32 %v3292, %v3305
        %v3315 = vadd.f32 %v3293, %v3305
        %v3316 = vadd.f32 %v3294, %v3305
        %v3317 = vadd.f32 %v3295, %v3305
        %v3318 = vadd.f32 %v3296, %v3305
        %v3319 = vadd.f32 %v3297, %v3305
        %v3320 = vadd.f32 %v3298, %v3305
        %v3321 = vadd.f32 %v3299, %v3305
        %v3322 = vadd.f32 %v3300, %v3305
        %v3323 = vrot.slane %v3307, 4
        %v3324 = vadd.f32 %v3307, %v3323
        %v3325 = vrot.slane %v3324, 2
        %v3326 = vadd.f32 %v3324, %v3325
        %v3327 = vrot.slane %v3326, 1
        %v3328 = vadd.f32 %v3326, %v3327
        %v3329 = vrot.slane %v3308, 4
        %v3330 = vadd.f32 %v3308, %v3329
        %v3331 = vrot.slane %v3330, 2
        %v3332 = vadd.f32 %v3330, %v3331
        %v3333 = vrot.slane %v3332, 1
        %v3334 = vadd.f32 %v3332, %v3333
        %v3335 = vrot.slane %v3309, 4
        %v3336 = vadd.f32 %v3309, %v3335
        %v3337 = vrot.slane %v3336, 2
        %v3338 = vadd.f32 %v3336, %v3337
        %v3339 = vrot.slane %v3338, 1
        %v3340 = vadd.f32 %v3338, %v3339
        %v3341 = vrot.slane %v3310, 4
        %v3342 = vadd.f32 %v3310, %v3341
        %v3343 = vrot.slane %v3342, 2
        %v3344 = vadd.f32 %v3342, %v3343
        %v3345 = vrot.slane %v3344, 1
        %v3346 = vadd.f32 %v3344, %v3345
        %v3347 = vrot.slane %v3311, 4
        %v3348 = vadd.f32 %v3311, %v3347
        %v3349 = vrot.slane %v3348, 2
        %v3350 = vadd.f32 %v3348, %v3349
        %v3351 = vrot.slane %v3350, 1
        %v3352 = vadd.f32 %v3350, %v3351
        %v3353 = vrot.slane %v3312, 4
        %v3354 = vadd.f32 %v3312, %v3353
        %v3355 = vrot.slane %v3354, 2
        %v3356 = vadd.f32 %v3354, %v3355
        %v3357 = vrot.slane %v3356, 1
        %v3358 = vadd.f32 %v3356, %v3357
        %v3359 = vrot.slane %v3313, 4
        %v3360 = vadd.f32 %v3313, %v3359
        %v3361 = vrot.slane %v3360, 2
        %v3362 = vadd.f32 %v3360, %v3361
        %v3363 = vrot.slane %v3362, 1
        %v3364 = vadd.f32 %v3362, %v3363
        %v3365 = vrot.slane %v3314, 4
        %v3366 = vadd.f32 %v3314, %v3365
        %v3367 = vrot.slane %v3366, 2
        %v3368 = vadd.f32 %v3366, %v3367
        %v3369 = vrot.slane %v3368, 1
        %v3370 = vadd.f32 %v3368, %v3369
        %v3371 = vrot.slane %v3315, 4
        %v3372 = vadd.f32 %v3315, %v3371
        %v3373 = vrot.slane %v3372, 2
        %v3374 = vadd.f32 %v3372, %v3373
        %v3375 = vrot.slane %v3374, 1
        %v3376 = vadd.f32 %v3374, %v3375
        %v3377 = vrot.slane %v3316, 4
        %v3378 = vadd.f32 %v3316, %v3377
        %v3379 = vrot.slane %v3378, 2
        %v3380 = vadd.f32 %v3378, %v3379
        %v3381 = vrot.slane %v3380, 1
        %v3382 = vadd.f32 %v3380, %v3381
        %v3383 = vrot.slane %v3317, 4
        %v3384 = vadd.f32 %v3317, %v3383
        %v3385 = vrot.slane %v3384, 2
        %v3386 = vadd.f32 %v3384, %v3385
        %v3387 = vrot.slane %v3386, 1
        %v3388 = vadd.f32 %v3386, %v3387
        %v3389 = vrot.slane %v3318, 4
        %v3390 = vadd.f32 %v3318, %v3389
        %v3391 = vrot.slane %v3390, 2
        %v3392 = vadd.f32 %v3390, %v3391
        %v3393 = vrot.slane %v3392, 1
        %v3394 = vadd.f32 %v3392, %v3393
        %v3395 = vrot.slane %v3319, 4
        %v3396 = vadd.f32 %v3319, %v3395
        %v3397 = vrot.slane %v3396, 2
        %v3398 = vadd.f32 %v3396, %v3397
        %v3399 = vrot.slane %v3398, 1
        %v3400 = vadd.f32 %v3398, %v3399
        %v3401 = vrot.slane %v3320, 4
        %v3402 = vadd.f32 %v3320, %v3401
        %v3403 = vrot.slane %v3402, 2
        %v3404 = vadd.f32 %v3402, %v3403
        %v3405 = vrot.slane %v3404, 1
        %v3406 = vadd.f32 %v3404, %v3405
        %v3407 = vrot.slane %v3321, 4
        %v3408 = vadd.f32 %v3321, %v3407
        %v3409 = vrot.slane %v3408, 2
        %v3410 = vadd.f32 %v3408, %v3409
        %v3411 = vrot.slane %v3410, 1
        %v3412 = vadd.f32 %v3410, %v3411
        %v3413 = vrot.slane %v3322, 4
        %v3414 = vadd.f32 %v3322, %v3413
        %v3415 = vrot.slane %v3414, 2
        %v3416 = vadd.f32 %v3414, %v3415
        %v3417 = vrot.slane %v3416, 1
        %v3418 = vadd.f32 %v3416, %v3417
        %v3419 = vmul.f32 %v3328, 0.125
        %v3420 = vmul.f32 %v3334, 0.125
        %v3421 = vmul.f32 %v3340, 0.125
        %v3422 = vmul.f32 %v3346, 0.125
        %v3423 = vmul.f32 %v3352, 0.125
        %v3424 = vmul.f32 %v3358, 0.125
        %v3425 = vmul.f32 %v3364, 0.125
        %v3426 = vmul.f32 %v3370, 0.125
        %v3427 = vmul.f32 %v3376, 0.125
        %v3428 = vmul.f32 %v3382, 0.125
        %v3429 = vmul.f32 %v3388, 0.125
        %v3430 = vmul.f32 %v3394, 0.125
        %v3431 = vmul.f32 %v3400, 0.125
        %v3432 = vmul.f32 %v3406, 0.125
        %v3433 = vmul.f32 %v3412, 0.125
        %v3434 = vmul.f32 %v3418, 0.125
        %v3435 = vpack.c.bf16 %v3419, %v3419
        %v3436 = vpack.c.bf16 %v3420, %v3420
        %v3437 = vpack.c.bf16 %v3421, %v3421
        %v3438 = vpack.c.bf16 %v3422, %v3422
        %v3439 = vpack.c.bf16 %v3423, %v3423
        %v3440 = vpack.c.bf16 %v3424, %v3424
        %v3441 = vpack.c.bf16 %v3425, %v3425
        %v3442 = vpack.c.bf16 %v3426, %v3426
        %v3443 = vpack.c.bf16 %v3427, %v3427
        %v3444 = vpack.c.bf16 %v3428, %v3428
        %v3445 = vpack.c.bf16 %v3429, %v3429
        %v3446 = vpack.c.bf16 %v3430, %v3430
        %v3447 = vpack.c.bf16 %v3431, %v3431
        %v3448 = vpack.c.bf16 %v3432, %v3432
        %v3449 = vpack.c.bf16 %v3433, %v3433
        %v3450 = vpack.c.bf16 %v3434, %v3434
        %v3451 = vld [vmem:[#allocation10] sm:$0xf]
        %v3452 = vld [vmem:[#allocation10 + $0x4] sm:$0xf]
        %v3453 = vld [vmem:[#allocation10 + $0x8] sm:$0xf]
        %v3454 = vld [vmem:[#allocation10 + $0xc] sm:$0xf]
        %v3455 = vld [vmem:[#allocation10 + $0x10] sm:$0xf]
        %v3456 = vld [vmem:[#allocation10 + $0x14] sm:$0xf]
        %v3457 = vld [vmem:[#allocation10 + $0x18] sm:$0xf]
        %v3458 = vld [vmem:[#allocation10 + $0x1c] sm:$0xf]
        %v3459 = vld [vmem:[#allocation10 + $0x20] sm:$0xf]
        %v3460 = vld [vmem:[#allocation10 + $0x24] sm:$0xf]
        %v3461 = vld [vmem:[#allocation10 + $0x28] sm:$0xf]
        %v3462 = vld [vmem:[#allocation10 + $0x2c] sm:$0xf]
        %v3463 = vld [vmem:[#allocation10 + $0x30] sm:$0xf]
        %v3464 = vld [vmem:[#allocation10 + $0x34] sm:$0xf]
        %v3465 = vld [vmem:[#allocation10 + $0x38] sm:$0xf]
        %v3466 = vld [vmem:[#allocation10 + $0x3c] sm:$0xf]
        %v3483 = vunpack.c.l.b16 %v3435
        %v3484 = vunpack.c.l.b16 %v3436
        %v3485 = vunpack.c.l.b16 %v3437
        %v3486 = vunpack.c.l.b16 %v3438
        %v3487 = vunpack.c.l.b16 %v3439
        %v3488 = vunpack.c.l.b16 %v3440
        %v3489 = vunpack.c.l.b16 %v3441
        %v3490 = vunpack.c.l.b16 %v3442
        %v3491 = vunpack.c.l.b16 %v3443
        %v3492 = vunpack.c.l.b16 %v3444
        %v3493 = vunpack.c.l.b16 %v3445
        %v3494 = vunpack.c.l.b16 %v3446
        %v3495 = vunpack.c.l.b16 %v3447
        %v3496 = vunpack.c.l.b16 %v3448
        %v3497 = vunpack.c.l.b16 %v3449
        %v3498 = vunpack.c.l.b16 %v3450
        %vm3499 = vcmask 1041409
        %v3500 = vsel %vm3499, %v3484, %v3483
        %vm3501 = vcmask 1042434
        %v3502 = vsel %vm3501, %v3485, %v3500
        %vm3503 = vcmask 1043459
        %v3504 = vsel %vm3503, %v3486, %v3502
        %vm3505 = vcmask 1044484
        %v3506 = vsel %vm3505, %v3487, %v3504
        %vm3507 = vcmask 1045509
        %v3508 = vsel %vm3507, %v3488, %v3506
        %vm3509 = vcmask 1046534
        %v3510 = vsel %vm3509, %v3489, %v3508
        %vm3511 = vcmask 1047559
        %v3512 = vsel %vm3511, %v3490, %v3510
        %v3513 = vsel %vm3499, %v3492, %v3491
        %v3514 = vsel %vm3501, %v3493, %v3513
        %v3515 = vsel %vm3503, %v3494, %v3514
        %v3516 = vsel %vm3505, %v3495, %v3515
        %v3517 = vsel %vm3507, %v3496, %v3516
        %v3518 = vsel %vm3509, %v3497, %v3517
        %v3519 = vsel %vm3511, %v3498, %v3518
        %v3520 = vpack.c.b16 %v3519, %v3512
        %v3538 = vunpack.c.l.b16 %v3451
        %v3539 = vunpack.c.l.b16 %v3452
        %v3540 = vunpack.c.l.b16 %v3453
        %v3541 = vunpack.c.l.b16 %v3454
        %v3542 = vunpack.c.l.b16 %v3455
        %v3543 = vunpack.c.l.b16 %v3456
        %v3544 = vunpack.c.l.b16 %v3457
        %v3545 = vunpack.c.l.b16 %v3458
        %v3546 = vunpack.c.l.b16 %v3459
        %v3547 = vunpack.c.l.b16 %v3460
        %v3548 = vunpack.c.l.b16 %v3461
        %v3549 = vunpack.c.l.b16 %v3462
        %v3550 = vunpack.c.l.b16 %v3463
        %v3551 = vunpack.c.l.b16 %v3464
        %v3552 = vunpack.c.l.b16 %v3465
        %v3553 = vunpack.c.l.b16 %v3466
        %v3554 = vpack.c.b16 %v3539, %v3538
        %v3555 = vpack.c.b16 %v3541, %v3540
        %v3556 = vpack.c.b16 %v3543, %v3542
        %v3557 = vpack.c.b16 %v3545, %v3544
        %v3558 = vpack.c.b16 %v3547, %v3546
        %v3559 = vpack.c.b16 %v3549, %v3548
        %v3560 = vpack.c.b16 %v3551, %v3550
        %v3561 = vpack.c.b16 %v3553, %v3552
        %3570 = vmatprep.subr.bf16.mxu0 0
        %3571 = vmatpush1.bf16.msra.mxu0 %v3561
        %3572 = vmatprep.subr.bf16.mxu0 0
        %3573 = vmatpush1.bf16.msra.mxu0 %v3560
        %3574 = vmatprep.subr.bf16.mxu0 0
        %3575 = vmatpush1.bf16.msra.mxu0 %v3559
        %3576 = vmatprep.subr.bf16.mxu0 0
        %3577 = vmatpush1.bf16.msra.mxu0 %v3558
        %3578 = vmatprep.subr.bf16.mxu0 0
        %3579 = vmatpush1.bf16.msra.mxu0 %v3557
        %3580 = vmatprep.subr.bf16.mxu0 0
        %3581 = vmatpush1.bf16.msra.mxu0 %v3556
        %3582 = vmatprep.subr.bf16.mxu0 0
        %3583 = vmatpush1.bf16.msra.mxu0 %v3555
        %3584 = vmatprep.subr.bf16.mxu0 0
        %3585 = vmatpush1.bf16.msra.mxu0 %v3554
        %3586 = vmatprep.subr.bf16.mxu0 0
        %3587 = vmatpush2.bf16.msra.mxu0 0
        %3588 = vmatprep.subr.bf16.mxu0 0
        %3589 = vmatpush2.bf16.msra.mxu0 0
        %3590 = vmatprep.subr.bf16.mxu0 0
        %3591 = vmatpush2.bf16.msra.mxu0 0
        %3592 = vmatprep.subr.bf16.mxu0 0
        %3593 = vmatpush2.bf16.msra.mxu0 0
        %3594 = vmatprep.subr.bf16.mxu0 0
        %3595 = vmatpush2.bf16.msra.mxu0 0
        %3596 = vmatprep.subr.bf16.mxu0 0
        %3597 = vmatpush2.bf16.msra.mxu0 0
        %3598 = vmatprep.subr.bf16.mxu0 0
        %3599 = vmatpush2.bf16.msra.mxu0 0
        %3600 = vmatprep.subr.bf16.mxu0 0
        %3601 = vmatpush2.bf16.msra.mxu0 0
        %3602 = vmatprep.mubr.bf16.mxu0 0
        %3603 = vmatmul.mubr.bf16.gmra.mxu0 %v3520
        %v3604 = vpop.f32.mrf.mxu0
        %v3605 = vadd.f32 0.0, %v3604
        %v3606 = vpop.f32.mrf.mxu0
        %v3607 = vpop.f32.mrf.mxu0
        %v3608 = vadd.f32 0.0, %v3607
        %v3609 = vpop.f32.mrf.mxu0
        %3610 = vdwg.mxu0
        %3611 = vst [vmem:[%s585] sm:$0xff] %v3605
        %3612 = vst [vmem:[%s585 + $0x8] sm:$0xff] %v3608
        %s3613 = sand.u32 %s382, 1
        %s3614 = scalar_lea.sflag [#allocation4], %s3613
        %s3615 = sand.u32 %s382, 1
        %s3616 = smul.addr %s3615, 16
        %s3617 = scalar_lea.vmem [#allocation11], %s3616
        // Predicated region
        $region105: #{tpu_custom_call.1} parent=83 // pred_check
          %p3618 = pneg %p392
        $region106: #{tpu_custom_call.1} parent=83 // pred_check_branch
          %3620 = sbr.rel (%p3618) target = $region108
        $region107: #{tpu_custom_call.1} parent=83 // pred_region
          %s3622 = ssub.s32 256, 256
          %3623 = vsyncadd %s3614, %s3622
          %s3624 = smul.addr %s33, 2
          %s3625 = smul.addr %s3624, 128
          %s3626 = scalar_lea.hbm %s16, %s3625
          %s3627 = sshll.u32 %s3617, 4
          %s3628 = int_to_ptr.vmem [resolvable:$true] %s3627
          %3633 = dma.vmem_to_hbm [thread:$0]  %s3628, 256, %s3626, %s3614, 128, 128, 8
        $region108: #{tpu_custom_call.1} parent=83 // pred_fallthru
          _
      $region84: #{tpu_custom_call.1} parent=5 // pred_fallthru
        _
      %p3634 = scmp.le.s32.totalorder 2, %s28
      // Predicated region
      $region109: #{tpu_custom_call.1} parent=5 // pred_check
        %p3635 = pneg %p3634
      $region110: #{tpu_custom_call.1} parent=5 // pred_check_branch
        %3637 = sbr.rel (%p3635) target = $region112
      $region111: #{tpu_custom_call.1} parent=5 // pred_region
        %s3638 = ssub.s32 %s28, 2
        // Predicated region
        $region113: #{tpu_custom_call.1} parent=111 // pred_check
          %p3639 = pneg %p398
        $region114: #{tpu_custom_call.1} parent=111 // pred_check_branch
          %3641 = sbr.rel (%p3639) target = $region116
        $region115: #{tpu_custom_call.1} parent=111 // pred_region
          %s3642 = sand.u32 %s383, 1
          %s3643 = scalar_lea.sflag [#allocation4], %s3642
          %s3644 = sand.u32 %s383, 1
          %s3645 = smul.addr %s3644, 16
          %s3646 = scalar_lea.vmem [#allocation11], %s3645
          %3647 = dma.done %s3643, 256
        $region116: #{tpu_custom_call.1} parent=111 // pred_fallthru
          _
      $region112: #{tpu_custom_call.1} parent=5 // pred_fallthru
        _
    $region6: #{tpu_custom_call.1} parent=1 // loop_footer
      %s32 = sadd.s32 1, %s28
    $region7: #{tpu_custom_call.1} parent=1 // loop_footer_branch
      %27 = sbr.rel target = $region3
    $region8: #{tpu_custom_call.1} parent=1 // loop_exit
      _
    %3648 = vsyncpa [#allocation3], 1
    %s3649 = scalar_lea.sflag [#allocation3], 1
    %3650 = vsyncpa %s3649, 1
    %3651 = vsyncpa [#allocation6], 1
    %3652 = vsyncpa [#allocation9], 1
    %3653 = vsyncpa [#allocation4], 1
    %s3654 = scalar_lea.sflag [#allocation4], 1
    %3655 = vsyncpa %s3654, 1

</llo_original>
